<compile_context>
chip_gen: v6e
topology: v6e:2x2x1
jax: 0.10.0
libtpu: 0.0.40
codegen_flags: <defaults>
</compile_context>

<pallas_src>
import functools
import math

import jax
import jax.numpy as jnp
from jax.experimental import pallas as pl
from jax.experimental.pallas import tpu as pltpu  # noqa: F401  (TPU backend)

HEADS = 4
D1, D2, D3 = 50, 25, 10            # out_channels of conv1 / conv2 / conv3
F1, F2, F3 = 130, 200, 100         # in_channels of conv1 / conv2 / conv3
NCOMP = 4                          # packed components: Q, K, V, skip


def _net_kernel(x_ref, ei_ref, w1_ref, b1_ref, w2_ref, b2_ref, w3_ref,
                b3_ref, out_ref, *, leaky_alpha):
    n = x_ref.shape[0]
    num_edges = ei_ref.shape[1]

    # ---- adjacency built in-kernel from edge_index (one tiny MXU matmul) ----
    ei = ei_ref[...]                                   # [2, E] int32
    src = ei[0:1, :]                                   # [1, E]
    dst = ei[1:2, :]                                   # [1, E]
    node = jax.lax.broadcasted_iota(jnp.int32, (n, num_edges), 0)
    dst_oh = (node == dst).astype(jnp.bfloat16)        # [N, E]
    src_oh = (node == src).astype(jnp.bfloat16)        # [N, E]
    # adj[i, j] = #edges j -> i  (exact small integer counts in f32)
    adj = jax.lax.dot_general(dst_oh, src_oh, (((1,), (1,)), ((), ())),
                              preferred_element_type=jnp.float32)
    mask = (adj > 0.0).astype(jnp.float32)             # [N, N] (dst, src)
    att_bias = jnp.where(adj > 0.0, 0.0, -1e30)        # hoisted: all layers/heads

    def conv(x, w_ref, b_ref, d):
        # Fused Q/K/V/skip projection: ONE MXU matmul, bf16 in, f32 accumulate.
        qkvs = jnp.dot(x.astype(jnp.bfloat16), w_ref[...],
                       preferred_element_type=jnp.float32) + b_ref[...]
        head_outs = []
        for h in range(HEADS):                         # static loop
            def col(c, _h=h):
                return (c * HEADS + _h) * d
            q = qkvs[:, col(0):col(0) + d].astype(jnp.bfloat16)
            k = qkvs[:, col(1):col(1) + d].astype(jnp.bfloat16)
            v = qkvs[:, col(2):col(2) + d].astype(jnp.bfloat16)
            sk = qkvs[:, col(3):col(3) + d]            # skip path stays f32
            # q already carries the 1/sqrt(d) scale (folded into Wq at init).
            s = jax.lax.dot_general(q, k, (((1,), (1,)), ((), ())),
                                    preferred_element_type=jnp.float32)
            s = s + att_bias                           # attend only over in-edges
            m = jnp.max(s, axis=-1, keepdims=True)
            p = jnp.exp(s - m) * mask
            denom = jnp.sum(p, axis=-1, keepdims=True)
            denom = jnp.where(denom == 0.0, 1.0, denom)  # isolated node -> skip only
            agg = jnp.dot(p.astype(jnp.bfloat16), v,
                          preferred_element_type=jnp.float32)
            head_outs.append(agg * pl.reciprocal(denom, approx=True) + sk)
        return jnp.concatenate(head_outs, axis=-1)     # dense [N, HEADS*d]

    def leaky(y):
        return jnp.where(y >= 0.0, y, leaky_alpha * y)

    h1 = leaky(conv(x_ref[...], w1_ref, b1_ref, D1))   # [N, 200]
    # TODO(synk): F.dropout is treated as identity (inference semantics).
    h2 = leaky(conv(h1, w2_ref, b2_ref, D2))           # [N, 100]
    h3 = conv(h2, w3_ref, b3_ref, D3)                  # [N, 40]

    # log_softmax (dim=1) on the already-dense [N, 40] result, stored directly.
    mx = jnp.max(h3, axis=-1, keepdims=True)
    lse = jnp.log(jnp.sum(jnp.exp(h3 - mx), axis=-1, keepdims=True))
    out_ref[...] = h3 - mx - lse


def net_forward(x, edge_index, params, leaky_relu_alpha=0.1):
    n = x.shape[0]
    (w1, b1), (w2, b2), (w3, b3) = params
    kernel = functools.partial(_net_kernel, leaky_alpha=leaky_relu_alpha)
    # Single fused, gridless call: graph + dense weights (<1 MiB) live in VMEM.
    # TODO(synk): for large N, switch to a dst-node-tiled "parallel" grid
    # (v7x: 2 TCs / 64 MiB VMEM) and set vmem_limit_bytes (v5e default 16 MiB).
    return pl.pallas_call(
        kernel,
        out_shape=jax.ShapeDtypeStruct((n, HEADS * D3), jnp.float32),
    )(x, edge_index.astype(jnp.int32), w1, b1, w2, b2, w3, b3)


# ----------------------------- parameters -----------------------------------

def init_linear(key, fin, fout):
    kw, kb = jax.random.split(key)
    w = jax.random.normal(kw, (fin, fout), jnp.float32) * (1.0 / math.sqrt(fin))
    b = jax.random.normal(kb, (1, fout), jnp.float32) * 0.01
    return w, b


def init_transformer_conv(key, fin, out_channels):
    ks = jax.random.split(key, 4)
    fout = HEADS * out_channels
    # (lin_query, lin_key, lin_value, lin_skip) — PyG TransformerConv layout.
    return tuple(init_linear(k, fin, fout) for k in ks)


def pack_transformer_conv(dense, out_channels):
    """Pack (Wq,bq),(Wk,bk),(Wv,bv),(Ws,bs) into ONE DENSE bf16 matrix
    [fin, 4*H*d] plus an f32 bias row [1, 4*H*d].

    Column layout is [component, head, d] with NO lane padding: the kernel is
    weight-DMA bound, so dense HBM storage beats 128-aligned in-kernel slices
    at this size. The 1/sqrt(d) attention scale is folded into the Q columns.
    bf16 weights deviate slightly from an f32 reference (documented tradeoff).
    """
    d = out_channels
    scale = 1.0 / math.sqrt(d)
    (wq, bq), (wk, bk), (wv, bv), (ws, bs) = dense
    comps = ((wq * scale, bq * scale), (wk, bk), (wv, bv), (ws, bs))
    w = jnp.concatenate([wc for wc, _ in comps], axis=1)   # [fin, 4*H*d]
    b = jnp.concatenate([bc for _, bc in comps], axis=1)   # [1,  4*H*d]
    return w.astype(jnp.bfloat16), b


def init_net(key):
    k1, k2, k3 = jax.random.split(key, 3)
    return (
        pack_transformer_conv(init_transformer_conv(k1, F1, D1), D1),
        pack_transformer_conv(init_transformer_conv(k2, F2, D2), D2),
        pack_transformer_conv(init_transformer_conv(k3, F3, D3), D3),
    )


if __name__ == "__main__":
    key = jax.random.PRNGKey(0)
    kx, kp = jax.random.split(key)

    num_nodes = 16
    x = jax.random.normal(kx, (num_nodes, F1), jnp.float32)

    # Simple bidirectional ring graph: edge_index is [2, E] = [src; dst].
    idx = jnp.arange(num_nodes, dtype=jnp.int32)
    src = jnp.concatenate([idx, (idx + 1) % num_nodes])
    dst = jnp.concatenate([(idx + 1) % num_nodes, idx])
    edge_index = jnp.stack([src, dst])

    params = init_net(kp)

    fwd = jax.jit(net_forward)
    out = fwd(x, edge_index, params)
    jax.block_until_ready(out)
    assert out.shape == (num_nodes, HEADS * D3)
    print("KERNEL_OK")
</pallas_src>

<mosaic_0001>
module attributes {stable_mosaic.version = 11 : i64} {
  func.func @_net_kernel(%arg0: memref<16x130xf32, #tpu.memory_space<vmem>>, %arg1: memref<2x32xi32, #tpu.memory_space<vmem>>, %arg2: memref<130x800xbf16, #tpu.memory_space<vmem>>, %arg3: memref<1x800xf32, #tpu.memory_space<vmem>>, %arg4: memref<200x400xbf16, #tpu.memory_space<vmem>>, %arg5: memref<1x400xf32, #tpu.memory_space<vmem>>, %arg6: memref<100x160xbf16, #tpu.memory_space<vmem>>, %arg7: memref<1x160xf32, #tpu.memory_space<vmem>>, %arg8: memref<16x40xf32, #tpu.memory_space<vmem>>) attributes {dimension_semantics = [], scalar_prefetch = 0 : i64, scratch_operands = 0 : i64, tpu.core_type = #tpu.core_type<tc>} {
    %c0 = arith.constant 0 : index
    %c0_0 = arith.constant 0 : index
    %0 = vector.load %arg1[%c0, %c0_0] : memref<2x32xi32, #tpu.memory_space<vmem>>, vector<2x32xi32>
    %1 = vector.extract_strided_slice %0 {offsets = [0, 0], sizes = [1, 32], strides = [1, 1]} : vector<2x32xi32> to vector<1x32xi32>
    %2 = vector.extract_strided_slice %0 {offsets = [1, 0], sizes = [1, 32], strides = [1, 1]} : vector<2x32xi32> to vector<1x32xi32>
    %3 = tpu.iota {dimensions = array<i32: 0>} : vector<16x32xi32>
    %4 = vector.broadcast %2 : vector<1x32xi32> to vector<16x32xi32>
    %5 = arith.cmpi eq, %3, %4 : vector<16x32xi32>
    %6 = arith.extui %5 : vector<16x32xi1> to vector<16x32xi32>
    %7 = arith.sitofp %6 : vector<16x32xi32> to vector<16x32xf32>
    %8 = arith.truncf %7 : vector<16x32xf32> to vector<16x32xbf16>
    %9 = vector.broadcast %1 : vector<1x32xi32> to vector<16x32xi32>
    %10 = arith.cmpi eq, %3, %9 : vector<16x32xi32>
    %11 = arith.extui %10 : vector<16x32xi1> to vector<16x32xi32>
    %12 = arith.sitofp %11 : vector<16x32xi32> to vector<16x32xf32>
    %13 = arith.truncf %12 : vector<16x32xf32> to vector<16x32xbf16>
    %cst = arith.constant dense<0.000000e+00> : vector<16x16xf32>
    %14 = tpu.matmul %8, %13, %cst {dimension_numbers = #tpu.dot_dimension_numbers<[1], [1], [0], [0], [0, 0, 1, 0], [], []>} : vector<16x32xbf16>, vector<16x32xbf16>, vector<16x16xf32> -> vector<16x16xf32>
    %cst_1 = arith.constant 0.000000e+00 : f32
    %15 = vector.broadcast %cst_1 : f32 to vector<16x16xf32>
    %16 = arith.cmpf ogt, %14, %15 : vector<16x16xf32>
    %17 = arith.extui %16 : vector<16x16xi1> to vector<16x16xi32>
    %18 = arith.sitofp %17 : vector<16x16xi32> to vector<16x16xf32>
    %cst_2 = arith.constant 0.000000e+00 : f32
    %19 = vector.broadcast %cst_2 : f32 to vector<16x16xf32>
    %20 = arith.cmpf ogt, %14, %19 : vector<16x16xf32>
    %cst_3 = arith.constant 0.000000e+00 : f32
    %cst_4 = arith.constant -1.000000e+30 : f32
    %21 = vector.broadcast %cst_3 : f32 to vector<16x16xf32>
    %22 = vector.broadcast %cst_4 : f32 to vector<16x16xf32>
    %23 = arith.select %20, %21, %22 : vector<16x16xi1>, vector<16x16xf32>
    %c0_5 = arith.constant 0 : index
    %c0_6 = arith.constant 0 : index
    %24 = vector.load %arg0[%c0_5, %c0_6] : memref<16x130xf32, #tpu.memory_space<vmem>>, vector<16x130xf32>
    %25 = arith.truncf %24 : vector<16x130xf32> to vector<16x130xbf16>
    %c0_7 = arith.constant 0 : index
    %c0_8 = arith.constant 0 : index
    %26 = vector.load %arg2[%c0_7, %c0_8] : memref<130x800xbf16, #tpu.memory_space<vmem>>, vector<130x800xbf16>
    %cst_9 = arith.constant dense<0.000000e+00> : vector<16x800xf32>
    %27 = tpu.matmul %25, %26, %cst_9 {dimension_numbers = #tpu.dot_dimension_numbers<[1], [0], [0], [1], [0, 0, 1, 1], [], []>} : vector<16x130xbf16>, vector<130x800xbf16>, vector<16x800xf32> -> vector<16x800xf32>
    %c0_10 = arith.constant 0 : index
    %c0_11 = arith.constant 0 : index
    %28 = vector.load %arg3[%c0_10, %c0_11] : memref<1x800xf32, #tpu.memory_space<vmem>>, vector<1x800xf32>
    %29 = vector.broadcast %28 : vector<1x800xf32> to vector<16x800xf32>
    %30 = arith.addf %27, %29 : vector<16x800xf32>
    %31 = vector.extract_strided_slice %30 {offsets = [0, 0], sizes = [16, 50], strides = [1, 1]} : vector<16x800xf32> to vector<16x50xf32>
    %32 = arith.truncf %31 : vector<16x50xf32> to vector<16x50xbf16>
    %33 = vector.extract_strided_slice %30 {offsets = [0, 200], sizes = [16, 50], strides = [1, 1]} : vector<16x800xf32> to vector<16x50xf32>
    %34 = arith.truncf %33 : vector<16x50xf32> to vector<16x50xbf16>
    %35 = vector.extract_strided_slice %30 {offsets = [0, 400], sizes = [16, 50], strides = [1, 1]} : vector<16x800xf32> to vector<16x50xf32>
    %36 = arith.truncf %35 : vector<16x50xf32> to vector<16x50xbf16>
    %37 = vector.extract_strided_slice %30 {offsets = [0, 600], sizes = [16, 50], strides = [1, 1]} : vector<16x800xf32> to vector<16x50xf32>
    %cst_12 = arith.constant dense<0.000000e+00> : vector<16x16xf32>
    %38 = tpu.matmul %32, %34, %cst_12 {dimension_numbers = #tpu.dot_dimension_numbers<[1], [1], [0], [0], [0, 0, 1, 0], [], []>} : vector<16x50xbf16>, vector<16x50xbf16>, vector<16x16xf32> -> vector<16x16xf32>
    %39 = arith.addf %38, %23 : vector<16x16xf32>
    %cst_13 = arith.constant dense<0xFF800000> : vector<16xf32>
    %40 = vector.multi_reduction <maximumf>, %39, %cst_13 [1] : vector<16x16xf32> to vector<16xf32>
    %41 = vector.shape_cast %40 : vector<16xf32> to vector<16x1xf32>
    %42 = vector.broadcast %41 : vector<16x1xf32> to vector<16x16xf32>
    %43 = arith.subf %39, %42 : vector<16x16xf32>
    %44 = math.exp %43 : vector<16x16xf32>
    %45 = arith.mulf %44, %18 : vector<16x16xf32>
    %cst_14 = arith.constant dense<0.000000e+00> : vector<16xf32>
    %46 = vector.multi_reduction <add>, %45, %cst_14 [1] : vector<16x16xf32> to vector<16xf32>
    %47 = vector.shape_cast %46 : vector<16xf32> to vector<16x1xf32>
    %cst_15 = arith.constant 0.000000e+00 : f32
    %48 = vector.broadcast %cst_15 : f32 to vector<16x1xf32>
    %49 = arith.cmpf oeq, %47, %48 : vector<16x1xf32>
    %cst_16 = arith.constant 1.000000e+00 : f32
    %50 = vector.broadcast %cst_16 : f32 to vector<16x1xf32>
    %51 = arith.select %49, %50, %47 : vector<16x1xi1>, vector<16x1xf32>
    %52 = arith.truncf %45 : vector<16x16xf32> to vector<16x16xbf16>
    %cst_17 = arith.constant dense<0.000000e+00> : vector<16x50xf32>
    %53 = tpu.matmul %52, %36, %cst_17 {dimension_numbers = #tpu.dot_dimension_numbers<[1], [0], [0], [1], [0, 0, 1, 1], [], []>} : vector<16x16xbf16>, vector<16x50xbf16>, vector<16x50xf32> -> vector<16x50xf32>
    %54 = tpu.reciprocal %51 {approx = true} : vector<16x1xf32> -> vector<16x1xf32>
    %55 = vector.broadcast %54 : vector<16x1xf32> to vector<16x50xf32>
    %56 = arith.mulf %53, %55 : vector<16x50xf32>
    %57 = arith.addf %56, %37 : vector<16x50xf32>
    %58 = vector.extract_strided_slice %30 {offsets = [0, 50], sizes = [16, 50], strides = [1, 1]} : vector<16x800xf32> to vector<16x50xf32>
    %59 = arith.truncf %58 : vector<16x50xf32> to vector<16x50xbf16>
    %60 = vector.extract_strided_slice %30 {offsets = [0, 250], sizes = [16, 50], strides = [1, 1]} : vector<16x800xf32> to vector<16x50xf32>
    %61 = arith.truncf %60 : vector<16x50xf32> to vector<16x50xbf16>
    %62 = vector.extract_strided_slice %30 {offsets = [0, 450], sizes = [16, 50], strides = [1, 1]} : vector<16x800xf32> to vector<16x50xf32>
    %63 = arith.truncf %62 : vector<16x50xf32> to vector<16x50xbf16>
    %64 = vector.extract_strided_slice %30 {offsets = [0, 650], sizes = [16, 50], strides = [1, 1]} : vector<16x800xf32> to vector<16x50xf32>
    %cst_18 = arith.constant dense<0.000000e+00> : vector<16x16xf32>
    %65 = tpu.matmul %59, %61, %cst_18 {dimension_numbers = #tpu.dot_dimension_numbers<[1], [1], [0], [0], [0, 0, 1, 0], [], []>} : vector<16x50xbf16>, vector<16x50xbf16>, vector<16x16xf32> -> vector<16x16xf32>
    %66 = arith.addf %65, %23 : vector<16x16xf32>
    %cst_19 = arith.constant dense<0xFF800000> : vector<16xf32>
    %67 = vector.multi_reduction <maximumf>, %66, %cst_19 [1] : vector<16x16xf32> to vector<16xf32>
    %68 = vector.shape_cast %67 : vector<16xf32> to vector<16x1xf32>
    %69 = vector.broadcast %68 : vector<16x1xf32> to vector<16x16xf32>
    %70 = arith.subf %66, %69 : vector<16x16xf32>
    %71 = math.exp %70 : vector<16x16xf32>
    %72 = arith.mulf %71, %18 : vector<16x16xf32>
    %cst_20 = arith.constant dense<0.000000e+00> : vector<16xf32>
    %73 = vector.multi_reduction <add>, %72, %cst_20 [1] : vector<16x16xf32> to vector<16xf32>
    %74 = vector.shape_cast %73 : vector<16xf32> to vector<16x1xf32>
    %cst_21 = arith.constant 0.000000e+00 : f32
    %75 = vector.broadcast %cst_21 : f32 to vector<16x1xf32>
    %76 = arith.cmpf oeq, %74, %75 : vector<16x1xf32>
    %cst_22 = arith.constant 1.000000e+00 : f32
    %77 = vector.broadcast %cst_22 : f32 to vector<16x1xf32>
    %78 = arith.select %76, %77, %74 : vector<16x1xi1>, vector<16x1xf32>
    %79 = arith.truncf %72 : vector<16x16xf32> to vector<16x16xbf16>
    %cst_23 = arith.constant dense<0.000000e+00> : vector<16x50xf32>
    %80 = tpu.matmul %79, %63, %cst_23 {dimension_numbers = #tpu.dot_dimension_numbers<[1], [0], [0], [1], [0, 0, 1, 1], [], []>} : vector<16x16xbf16>, vector<16x50xbf16>, vector<16x50xf32> -> vector<16x50xf32>
    %81 = tpu.reciprocal %78 {approx = true} : vector<16x1xf32> -> vector<16x1xf32>
    %82 = vector.broadcast %81 : vector<16x1xf32> to vector<16x50xf32>
    %83 = arith.mulf %80, %82 : vector<16x50xf32>
    %84 = arith.addf %83, %64 : vector<16x50xf32>
    %85 = vector.extract_strided_slice %30 {offsets = [0, 100], sizes = [16, 50], strides = [1, 1]} : vector<16x800xf32> to vector<16x50xf32>
    %86 = arith.truncf %85 : vector<16x50xf32> to vector<16x50xbf16>
    %87 = vector.extract_strided_slice %30 {offsets = [0, 300], sizes = [16, 50], strides = [1, 1]} : vector<16x800xf32> to vector<16x50xf32>
    %88 = arith.truncf %87 : vector<16x50xf32> to vector<16x50xbf16>
    %89 = vector.extract_strided_slice %30 {offsets = [0, 500], sizes = [16, 50], strides = [1, 1]} : vector<16x800xf32> to vector<16x50xf32>
    %90 = arith.truncf %89 : vector<16x50xf32> to vector<16x50xbf16>
    %91 = vector.extract_strided_slice %30 {offsets = [0, 700], sizes = [16, 50], strides = [1, 1]} : vector<16x800xf32> to vector<16x50xf32>
    %cst_24 = arith.constant dense<0.000000e+00> : vector<16x16xf32>
    %92 = tpu.matmul %86, %88, %cst_24 {dimension_numbers = #tpu.dot_dimension_numbers<[1], [1], [0], [0], [0, 0, 1, 0], [], []>} : vector<16x50xbf16>, vector<16x50xbf16>, vector<16x16xf32> -> vector<16x16xf32>
    %93 = arith.addf %92, %23 : vector<16x16xf32>
    %cst_25 = arith.constant dense<0xFF800000> : vector<16xf32>
    %94 = vector.multi_reduction <maximumf>, %93, %cst_25 [1] : vector<16x16xf32> to vector<16xf32>
    %95 = vector.shape_cast %94 : vector<16xf32> to vector<16x1xf32>
    %96 = vector.broadcast %95 : vector<16x1xf32> to vector<16x16xf32>
    %97 = arith.subf %93, %96 : vector<16x16xf32>
    %98 = math.exp %97 : vector<16x16xf32>
    %99 = arith.mulf %98, %18 : vector<16x16xf32>
    %cst_26 = arith.constant dense<0.000000e+00> : vector<16xf32>
    %100 = vector.multi_reduction <add>, %99, %cst_26 [1] : vector<16x16xf32> to vector<16xf32>
    %101 = vector.shape_cast %100 : vector<16xf32> to vector<16x1xf32>
    %cst_27 = arith.constant 0.000000e+00 : f32
    %102 = vector.broadcast %cst_27 : f32 to vector<16x1xf32>
    %103 = arith.cmpf oeq, %101, %102 : vector<16x1xf32>
    %cst_28 = arith.constant 1.000000e+00 : f32
    %104 = vector.broadcast %cst_28 : f32 to vector<16x1xf32>
    %105 = arith.select %103, %104, %101 : vector<16x1xi1>, vector<16x1xf32>
    %106 = arith.truncf %99 : vector<16x16xf32> to vector<16x16xbf16>
    %cst_29 = arith.constant dense<0.000000e+00> : vector<16x50xf32>
    %107 = tpu.matmul %106, %90, %cst_29 {dimension_numbers = #tpu.dot_dimension_numbers<[1], [0], [0], [1], [0, 0, 1, 1], [], []>} : vector<16x16xbf16>, vector<16x50xbf16>, vector<16x50xf32> -> vector<16x50xf32>
    %108 = tpu.reciprocal %105 {approx = true} : vector<16x1xf32> -> vector<16x1xf32>
    %109 = vector.broadcast %108 : vector<16x1xf32> to vector<16x50xf32>
    %110 = arith.mulf %107, %109 : vector<16x50xf32>
    %111 = arith.addf %110, %91 : vector<16x50xf32>
    %112 = vector.extract_strided_slice %30 {offsets = [0, 150], sizes = [16, 50], strides = [1, 1]} : vector<16x800xf32> to vector<16x50xf32>
    %113 = arith.truncf %112 : vector<16x50xf32> to vector<16x50xbf16>
    %114 = vector.extract_strided_slice %30 {offsets = [0, 350], sizes = [16, 50], strides = [1, 1]} : vector<16x800xf32> to vector<16x50xf32>
    %115 = arith.truncf %114 : vector<16x50xf32> to vector<16x50xbf16>
    %116 = vector.extract_strided_slice %30 {offsets = [0, 550], sizes = [16, 50], strides = [1, 1]} : vector<16x800xf32> to vector<16x50xf32>
    %117 = arith.truncf %116 : vector<16x50xf32> to vector<16x50xbf16>
    %118 = vector.extract_strided_slice %30 {offsets = [0, 750], sizes = [16, 50], strides = [1, 1]} : vector<16x800xf32> to vector<16x50xf32>
    %cst_30 = arith.constant dense<0.000000e+00> : vector<16x16xf32>
    %119 = tpu.matmul %113, %115, %cst_30 {dimension_numbers = #tpu.dot_dimension_numbers<[1], [1], [0], [0], [0, 0, 1, 0], [], []>} : vector<16x50xbf16>, vector<16x50xbf16>, vector<16x16xf32> -> vector<16x16xf32>
    %120 = arith.addf %119, %23 : vector<16x16xf32>
    %cst_31 = arith.constant dense<0xFF800000> : vector<16xf32>
    %121 = vector.multi_reduction <maximumf>, %120, %cst_31 [1] : vector<16x16xf32> to vector<16xf32>
    %122 = vector.shape_cast %121 : vector<16xf32> to vector<16x1xf32>
    %123 = vector.broadcast %122 : vector<16x1xf32> to vector<16x16xf32>
    %124 = arith.subf %120, %123 : vector<16x16xf32>
    %125 = math.exp %124 : vector<16x16xf32>
    %126 = arith.mulf %125, %18 : vector<16x16xf32>
    %cst_32 = arith.constant dense<0.000000e+00> : vector<16xf32>
    %127 = vector.multi_reduction <add>, %126, %cst_32 [1] : vector<16x16xf32> to vector<16xf32>
    %128 = vector.shape_cast %127 : vector<16xf32> to vector<16x1xf32>
    %cst_33 = arith.constant 0.000000e+00 : f32
    %129 = vector.broadcast %cst_33 : f32 to vector<16x1xf32>
    %130 = arith.cmpf oeq, %128, %129 : vector<16x1xf32>
    %cst_34 = arith.constant 1.000000e+00 : f32
    %131 = vector.broadcast %cst_34 : f32 to vector<16x1xf32>
    %132 = arith.select %130, %131, %128 : vector<16x1xi1>, vector<16x1xf32>
    %133 = arith.truncf %126 : vector<16x16xf32> to vector<16x16xbf16>
    %cst_35 = arith.constant dense<0.000000e+00> : vector<16x50xf32>
    %134 = tpu.matmul %133, %117, %cst_35 {dimension_numbers = #tpu.dot_dimension_numbers<[1], [0], [0], [1], [0, 0, 1, 1], [], []>} : vector<16x16xbf16>, vector<16x50xbf16>, vector<16x50xf32> -> vector<16x50xf32>
    %135 = tpu.reciprocal %132 {approx = true} : vector<16x1xf32> -> vector<16x1xf32>
    %136 = vector.broadcast %135 : vector<16x1xf32> to vector<16x50xf32>
    %137 = arith.mulf %134, %136 : vector<16x50xf32>
    %138 = arith.addf %137, %118 : vector<16x50xf32>
    %139 = tpu.concatenate %57, %84, %111, %138 in 1 : vector<16x50xf32>, vector<16x50xf32>, vector<16x50xf32>, vector<16x50xf32> -> vector<16x200xf32>
    %cst_36 = arith.constant 0.000000e+00 : f32
    %140 = vector.broadcast %cst_36 : f32 to vector<16x200xf32>
    %141 = arith.cmpf oge, %139, %140 : vector<16x200xf32>
    %cst_37 = arith.constant 1.000000e-01 : f32
    %142 = vector.broadcast %cst_37 : f32 to vector<16x200xf32>
    %143 = arith.mulf %142, %139 : vector<16x200xf32>
    %144 = arith.select %141, %139, %143 : vector<16x200xi1>, vector<16x200xf32>
    %145 = arith.truncf %144 : vector<16x200xf32> to vector<16x200xbf16>
    %c0_38 = arith.constant 0 : index
    %c0_39 = arith.constant 0 : index
    %146 = vector.load %arg4[%c0_38, %c0_39] : memref<200x400xbf16, #tpu.memory_space<vmem>>, vector<200x400xbf16>
    %cst_40 = arith.constant dense<0.000000e+00> : vector<16x400xf32>
    %147 = tpu.matmul %145, %146, %cst_40 {dimension_numbers = #tpu.dot_dimension_numbers<[1], [0], [0], [1], [0, 0, 1, 1], [], []>} : vector<16x200xbf16>, vector<200x400xbf16>, vector<16x400xf32> -> vector<16x400xf32>
    %c0_41 = arith.constant 0 : index
    %c0_42 = arith.constant 0 : index
    %148 = vector.load %arg5[%c0_41, %c0_42] : memref<1x400xf32, #tpu.memory_space<vmem>>, vector<1x400xf32>
    %149 = vector.broadcast %148 : vector<1x400xf32> to vector<16x400xf32>
    %150 = arith.addf %147, %149 : vector<16x400xf32>
    %151 = vector.extract_strided_slice %150 {offsets = [0, 0], sizes = [16, 25], strides = [1, 1]} : vector<16x400xf32> to vector<16x25xf32>
    %152 = arith.truncf %151 : vector<16x25xf32> to vector<16x25xbf16>
    %153 = vector.extract_strided_slice %150 {offsets = [0, 100], sizes = [16, 25], strides = [1, 1]} : vector<16x400xf32> to vector<16x25xf32>
    %154 = arith.truncf %153 : vector<16x25xf32> to vector<16x25xbf16>
    %155 = vector.extract_strided_slice %150 {offsets = [0, 200], sizes = [16, 25], strides = [1, 1]} : vector<16x400xf32> to vector<16x25xf32>
    %156 = arith.truncf %155 : vector<16x25xf32> to vector<16x25xbf16>
    %157 = vector.extract_strided_slice %150 {offsets = [0, 300], sizes = [16, 25], strides = [1, 1]} : vector<16x400xf32> to vector<16x25xf32>
    %cst_43 = arith.constant dense<0.000000e+00> : vector<16x16xf32>
    %158 = tpu.matmul %152, %154, %cst_43 {dimension_numbers = #tpu.dot_dimension_numbers<[1], [1], [0], [0], [0, 0, 1, 0], [], []>} : vector<16x25xbf16>, vector<16x25xbf16>, vector<16x16xf32> -> vector<16x16xf32>
    %159 = arith.addf %158, %23 : vector<16x16xf32>
    %cst_44 = arith.constant dense<0xFF800000> : vector<16xf32>
    %160 = vector.multi_reduction <maximumf>, %159, %cst_44 [1] : vector<16x16xf32> to vector<16xf32>
    %161 = vector.shape_cast %160 : vector<16xf32> to vector<16x1xf32>
    %162 = vector.broadcast %161 : vector<16x1xf32> to vector<16x16xf32>
    %163 = arith.subf %159, %162 : vector<16x16xf32>
    %164 = math.exp %163 : vector<16x16xf32>
    %165 = arith.mulf %164, %18 : vector<16x16xf32>
    %cst_45 = arith.constant dense<0.000000e+00> : vector<16xf32>
    %166 = vector.multi_reduction <add>, %165, %cst_45 [1] : vector<16x16xf32> to vector<16xf32>
    %167 = vector.shape_cast %166 : vector<16xf32> to vector<16x1xf32>
    %cst_46 = arith.constant 0.000000e+00 : f32
    %168 = vector.broadcast %cst_46 : f32 to vector<16x1xf32>
    %169 = arith.cmpf oeq, %167, %168 : vector<16x1xf32>
    %cst_47 = arith.constant 1.000000e+00 : f32
    %170 = vector.broadcast %cst_47 : f32 to vector<16x1xf32>
    %171 = arith.select %169, %170, %167 : vector<16x1xi1>, vector<16x1xf32>
    %172 = arith.truncf %165 : vector<16x16xf32> to vector<16x16xbf16>
    %cst_48 = arith.constant dense<0.000000e+00> : vector<16x25xf32>
    %173 = tpu.matmul %172, %156, %cst_48 {dimension_numbers = #tpu.dot_dimension_numbers<[1], [0], [0], [1], [0, 0, 1, 1], [], []>} : vector<16x16xbf16>, vector<16x25xbf16>, vector<16x25xf32> -> vector<16x25xf32>
    %174 = tpu.reciprocal %171 {approx = true} : vector<16x1xf32> -> vector<16x1xf32>
    %175 = vector.broadcast %174 : vector<16x1xf32> to vector<16x25xf32>
    %176 = arith.mulf %173, %175 : vector<16x25xf32>
    %177 = arith.addf %176, %157 : vector<16x25xf32>
    %178 = vector.extract_strided_slice %150 {offsets = [0, 25], sizes = [16, 25], strides = [1, 1]} : vector<16x400xf32> to vector<16x25xf32>
    %179 = arith.truncf %178 : vector<16x25xf32> to vector<16x25xbf16>
    %180 = vector.extract_strided_slice %150 {offsets = [0, 125], sizes = [16, 25], strides = [1, 1]} : vector<16x400xf32> to vector<16x25xf32>
    %181 = arith.truncf %180 : vector<16x25xf32> to vector<16x25xbf16>
    %182 = vector.extract_strided_slice %150 {offsets = [0, 225], sizes = [16, 25], strides = [1, 1]} : vector<16x400xf32> to vector<16x25xf32>
    %183 = arith.truncf %182 : vector<16x25xf32> to vector<16x25xbf16>
    %184 = vector.extract_strided_slice %150 {offsets = [0, 325], sizes = [16, 25], strides = [1, 1]} : vector<16x400xf32> to vector<16x25xf32>
    %cst_49 = arith.constant dense<0.000000e+00> : vector<16x16xf32>
    %185 = tpu.matmul %179, %181, %cst_49 {dimension_numbers = #tpu.dot_dimension_numbers<[1], [1], [0], [0], [0, 0, 1, 0], [], []>} : vector<16x25xbf16>, vector<16x25xbf16>, vector<16x16xf32> -> vector<16x16xf32>
    %186 = arith.addf %185, %23 : vector<16x16xf32>
    %cst_50 = arith.constant dense<0xFF800000> : vector<16xf32>
    %187 = vector.multi_reduction <maximumf>, %186, %cst_50 [1] : vector<16x16xf32> to vector<16xf32>
    %188 = vector.shape_cast %187 : vector<16xf32> to vector<16x1xf32>
    %189 = vector.broadcast %188 : vector<16x1xf32> to vector<16x16xf32>
    %190 = arith.subf %186, %189 : vector<16x16xf32>
    %191 = math.exp %190 : vector<16x16xf32>
    %192 = arith.mulf %191, %18 : vector<16x16xf32>
    %cst_51 = arith.constant dense<0.000000e+00> : vector<16xf32>
    %193 = vector.multi_reduction <add>, %192, %cst_51 [1] : vector<16x16xf32> to vector<16xf32>
    %194 = vector.shape_cast %193 : vector<16xf32> to vector<16x1xf32>
    %cst_52 = arith.constant 0.000000e+00 : f32
    %195 = vector.broadcast %cst_52 : f32 to vector<16x1xf32>
    %196 = arith.cmpf oeq, %194, %195 : vector<16x1xf32>
    %cst_53 = arith.constant 1.000000e+00 : f32
    %197 = vector.broadcast %cst_53 : f32 to vector<16x1xf32>
    %198 = arith.select %196, %197, %194 : vector<16x1xi1>, vector<16x1xf32>
    %199 = arith.truncf %192 : vector<16x16xf32> to vector<16x16xbf16>
    %cst_54 = arith.constant dense<0.000000e+00> : vector<16x25xf32>
    %200 = tpu.matmul %199, %183, %cst_54 {dimension_numbers = #tpu.dot_dimension_numbers<[1], [0], [0], [1], [0, 0, 1, 1], [], []>} : vector<16x16xbf16>, vector<16x25xbf16>, vector<16x25xf32> -> vector<16x25xf32>
    %201 = tpu.reciprocal %198 {approx = true} : vector<16x1xf32> -> vector<16x1xf32>
    %202 = vector.broadcast %201 : vector<16x1xf32> to vector<16x25xf32>
    %203 = arith.mulf %200, %202 : vector<16x25xf32>
    %204 = arith.addf %203, %184 : vector<16x25xf32>
    %205 = vector.extract_strided_slice %150 {offsets = [0, 50], sizes = [16, 25], strides = [1, 1]} : vector<16x400xf32> to vector<16x25xf32>
    %206 = arith.truncf %205 : vector<16x25xf32> to vector<16x25xbf16>
    %207 = vector.extract_strided_slice %150 {offsets = [0, 150], sizes = [16, 25], strides = [1, 1]} : vector<16x400xf32> to vector<16x25xf32>
    %208 = arith.truncf %207 : vector<16x25xf32> to vector<16x25xbf16>
    %209 = vector.extract_strided_slice %150 {offsets = [0, 250], sizes = [16, 25], strides = [1, 1]} : vector<16x400xf32> to vector<16x25xf32>
    %210 = arith.truncf %209 : vector<16x25xf32> to vector<16x25xbf16>
    %211 = vector.extract_strided_slice %150 {offsets = [0, 350], sizes = [16, 25], strides = [1, 1]} : vector<16x400xf32> to vector<16x25xf32>
    %cst_55 = arith.constant dense<0.000000e+00> : vector<16x16xf32>
    %212 = tpu.matmul %206, %208, %cst_55 {dimension_numbers = #tpu.dot_dimension_numbers<[1], [1], [0], [0], [0, 0, 1, 0], [], []>} : vector<16x25xbf16>, vector<16x25xbf16>, vector<16x16xf32> -> vector<16x16xf32>
    %213 = arith.addf %212, %23 : vector<16x16xf32>
    %cst_56 = arith.constant dense<0xFF800000> : vector<16xf32>
    %214 = vector.multi_reduction <maximumf>, %213, %cst_56 [1] : vector<16x16xf32> to vector<16xf32>
    %215 = vector.shape_cast %214 : vector<16xf32> to vector<16x1xf32>
    %216 = vector.broadcast %215 : vector<16x1xf32> to vector<16x16xf32>
    %217 = arith.subf %213, %216 : vector<16x16xf32>
    %218 = math.exp %217 : vector<16x16xf32>
    %219 = arith.mulf %218, %18 : vector<16x16xf32>
    %cst_57 = arith.constant dense<0.000000e+00> : vector<16xf32>
    %220 = vector.multi_reduction <add>, %219, %cst_57 [1] : vector<16x16xf32> to vector<16xf32>
    %221 = vector.shape_cast %220 : vector<16xf32> to vector<16x1xf32>
    %cst_58 = arith.constant 0.000000e+00 : f32
    %222 = vector.broadcast %cst_58 : f32 to vector<16x1xf32>
    %223 = arith.cmpf oeq, %221, %222 : vector<16x1xf32>
    %cst_59 = arith.constant 1.000000e+00 : f32
    %224 = vector.broadcast %cst_59 : f32 to vector<16x1xf32>
    %225 = arith.select %223, %224, %221 : vector<16x1xi1>, vector<16x1xf32>
    %226 = arith.truncf %219 : vector<16x16xf32> to vector<16x16xbf16>
    %cst_60 = arith.constant dense<0.000000e+00> : vector<16x25xf32>
    %227 = tpu.matmul %226, %210, %cst_60 {dimension_numbers = #tpu.dot_dimension_numbers<[1], [0], [0], [1], [0, 0, 1, 1], [], []>} : vector<16x16xbf16>, vector<16x25xbf16>, vector<16x25xf32> -> vector<16x25xf32>
    %228 = tpu.reciprocal %225 {approx = true} : vector<16x1xf32> -> vector<16x1xf32>
    %229 = vector.broadcast %228 : vector<16x1xf32> to vector<16x25xf32>
    %230 = arith.mulf %227, %229 : vector<16x25xf32>
    %231 = arith.addf %230, %211 : vector<16x25xf32>
    %232 = vector.extract_strided_slice %150 {offsets = [0, 75], sizes = [16, 25], strides = [1, 1]} : vector<16x400xf32> to vector<16x25xf32>
    %233 = arith.truncf %232 : vector<16x25xf32> to vector<16x25xbf16>
    %234 = vector.extract_strided_slice %150 {offsets = [0, 175], sizes = [16, 25], strides = [1, 1]} : vector<16x400xf32> to vector<16x25xf32>
    %235 = arith.truncf %234 : vector<16x25xf32> to vector<16x25xbf16>
    %236 = vector.extract_strided_slice %150 {offsets = [0, 275], sizes = [16, 25], strides = [1, 1]} : vector<16x400xf32> to vector<16x25xf32>
    %237 = arith.truncf %236 : vector<16x25xf32> to vector<16x25xbf16>
    %238 = vector.extract_strided_slice %150 {offsets = [0, 375], sizes = [16, 25], strides = [1, 1]} : vector<16x400xf32> to vector<16x25xf32>
    %cst_61 = arith.constant dense<0.000000e+00> : vector<16x16xf32>
    %239 = tpu.matmul %233, %235, %cst_61 {dimension_numbers = #tpu.dot_dimension_numbers<[1], [1], [0], [0], [0, 0, 1, 0], [], []>} : vector<16x25xbf16>, vector<16x25xbf16>, vector<16x16xf32> -> vector<16x16xf32>
    %240 = arith.addf %239, %23 : vector<16x16xf32>
    %cst_62 = arith.constant dense<0xFF800000> : vector<16xf32>
    %241 = vector.multi_reduction <maximumf>, %240, %cst_62 [1] : vector<16x16xf32> to vector<16xf32>
    %242 = vector.shape_cast %241 : vector<16xf32> to vector<16x1xf32>
    %243 = vector.broadcast %242 : vector<16x1xf32> to vector<16x16xf32>
    %244 = arith.subf %240, %243 : vector<16x16xf32>
    %245 = math.exp %244 : vector<16x16xf32>
    %246 = arith.mulf %245, %18 : vector<16x16xf32>
    %cst_63 = arith.constant dense<0.000000e+00> : vector<16xf32>
    %247 = vector.multi_reduction <add>, %246, %cst_63 [1] : vector<16x16xf32> to vector<16xf32>
    %248 = vector.shape_cast %247 : vector<16xf32> to vector<16x1xf32>
    %cst_64 = arith.constant 0.000000e+00 : f32
    %249 = vector.broadcast %cst_64 : f32 to vector<16x1xf32>
    %250 = arith.cmpf oeq, %248, %249 : vector<16x1xf32>
    %cst_65 = arith.constant 1.000000e+00 : f32
    %251 = vector.broadcast %cst_65 : f32 to vector<16x1xf32>
    %252 = arith.select %250, %251, %248 : vector<16x1xi1>, vector<16x1xf32>
    %253 = arith.truncf %246 : vector<16x16xf32> to vector<16x16xbf16>
    %cst_66 = arith.constant dense<0.000000e+00> : vector<16x25xf32>
    %254 = tpu.matmul %253, %237, %cst_66 {dimension_numbers = #tpu.dot_dimension_numbers<[1], [0], [0], [1], [0, 0, 1, 1], [], []>} : vector<16x16xbf16>, vector<16x25xbf16>, vector<16x25xf32> -> vector<16x25xf32>
    %255 = tpu.reciprocal %252 {approx = true} : vector<16x1xf32> -> vector<16x1xf32>
    %256 = vector.broadcast %255 : vector<16x1xf32> to vector<16x25xf32>
    %257 = arith.mulf %254, %256 : vector<16x25xf32>
    %258 = arith.addf %257, %238 : vector<16x25xf32>
    %259 = tpu.concatenate %177, %204, %231, %258 in 1 : vector<16x25xf32>, vector<16x25xf32>, vector<16x25xf32>, vector<16x25xf32> -> vector<16x100xf32>
    %cst_67 = arith.constant 0.000000e+00 : f32
    %260 = vector.broadcast %cst_67 : f32 to vector<16x100xf32>
    %261 = arith.cmpf oge, %259, %260 : vector<16x100xf32>
    %cst_68 = arith.constant 1.000000e-01 : f32
    %262 = vector.broadcast %cst_68 : f32 to vector<16x100xf32>
    %263 = arith.mulf %262, %259 : vector<16x100xf32>
    %264 = arith.select %261, %259, %263 : vector<16x100xi1>, vector<16x100xf32>
    %265 = arith.truncf %264 : vector<16x100xf32> to vector<16x100xbf16>
    %c0_69 = arith.constant 0 : index
    %c0_70 = arith.constant 0 : index
    %266 = vector.load %arg6[%c0_69, %c0_70] : memref<100x160xbf16, #tpu.memory_space<vmem>>, vector<100x160xbf16>
    %cst_71 = arith.constant dense<0.000000e+00> : vector<16x160xf32>
    %267 = tpu.matmul %265, %266, %cst_71 {dimension_numbers = #tpu.dot_dimension_numbers<[1], [0], [0], [1], [0, 0, 1, 1], [], []>} : vector<16x100xbf16>, vector<100x160xbf16>, vector<16x160xf32> -> vector<16x160xf32>
    %c0_72 = arith.constant 0 : index
    %c0_73 = arith.constant 0 : index
    %268 = vector.load %arg7[%c0_72, %c0_73] : memref<1x160xf32, #tpu.memory_space<vmem>>, vector<1x160xf32>
    %269 = vector.broadcast %268 : vector<1x160xf32> to vector<16x160xf32>
    %270 = arith.addf %267, %269 : vector<16x160xf32>
    %271 = vector.extract_strided_slice %270 {offsets = [0, 0], sizes = [16, 10], strides = [1, 1]} : vector<16x160xf32> to vector<16x10xf32>
    %272 = arith.truncf %271 : vector<16x10xf32> to vector<16x10xbf16>
    %273 = vector.extract_strided_slice %270 {offsets = [0, 40], sizes = [16, 10], strides = [1, 1]} : vector<16x160xf32> to vector<16x10xf32>
    %274 = arith.truncf %273 : vector<16x10xf32> to vector<16x10xbf16>
    %275 = vector.extract_strided_slice %270 {offsets = [0, 80], sizes = [16, 10], strides = [1, 1]} : vector<16x160xf32> to vector<16x10xf32>
    %276 = arith.truncf %275 : vector<16x10xf32> to vector<16x10xbf16>
    %277 = vector.extract_strided_slice %270 {offsets = [0, 120], sizes = [16, 10], strides = [1, 1]} : vector<16x160xf32> to vector<16x10xf32>
    %cst_74 = arith.constant dense<0.000000e+00> : vector<16x16xf32>
    %278 = tpu.matmul %272, %274, %cst_74 {dimension_numbers = #tpu.dot_dimension_numbers<[1], [1], [0], [0], [0, 0, 1, 0], [], []>} : vector<16x10xbf16>, vector<16x10xbf16>, vector<16x16xf32> -> vector<16x16xf32>
    %279 = arith.addf %278, %23 : vector<16x16xf32>
    %cst_75 = arith.constant dense<0xFF800000> : vector<16xf32>
    %280 = vector.multi_reduction <maximumf>, %279, %cst_75 [1] : vector<16x16xf32> to vector<16xf32>
    %281 = vector.shape_cast %280 : vector<16xf32> to vector<16x1xf32>
    %282 = vector.broadcast %281 : vector<16x1xf32> to vector<16x16xf32>
    %283 = arith.subf %279, %282 : vector<16x16xf32>
    %284 = math.exp %283 : vector<16x16xf32>
    %285 = arith.mulf %284, %18 : vector<16x16xf32>
    %cst_76 = arith.constant dense<0.000000e+00> : vector<16xf32>
    %286 = vector.multi_reduction <add>, %285, %cst_76 [1] : vector<16x16xf32> to vector<16xf32>
    %287 = vector.shape_cast %286 : vector<16xf32> to vector<16x1xf32>
    %cst_77 = arith.constant 0.000000e+00 : f32
    %288 = vector.broadcast %cst_77 : f32 to vector<16x1xf32>
    %289 = arith.cmpf oeq, %287, %288 : vector<16x1xf32>
    %cst_78 = arith.constant 1.000000e+00 : f32
    %290 = vector.broadcast %cst_78 : f32 to vector<16x1xf32>
    %291 = arith.select %289, %290, %287 : vector<16x1xi1>, vector<16x1xf32>
    %292 = arith.truncf %285 : vector<16x16xf32> to vector<16x16xbf16>
    %cst_79 = arith.constant dense<0.000000e+00> : vector<16x10xf32>
    %293 = tpu.matmul %292, %276, %cst_79 {dimension_numbers = #tpu.dot_dimension_numbers<[1], [0], [0], [1], [0, 0, 1, 1], [], []>} : vector<16x16xbf16>, vector<16x10xbf16>, vector<16x10xf32> -> vector<16x10xf32>
    %294 = tpu.reciprocal %291 {approx = true} : vector<16x1xf32> -> vector<16x1xf32>
    %295 = vector.broadcast %294 : vector<16x1xf32> to vector<16x10xf32>
    %296 = arith.mulf %293, %295 : vector<16x10xf32>
    %297 = arith.addf %296, %277 : vector<16x10xf32>
    %298 = vector.extract_strided_slice %270 {offsets = [0, 10], sizes = [16, 10], strides = [1, 1]} : vector<16x160xf32> to vector<16x10xf32>
    %299 = arith.truncf %298 : vector<16x10xf32> to vector<16x10xbf16>
    %300 = vector.extract_strided_slice %270 {offsets = [0, 50], sizes = [16, 10], strides = [1, 1]} : vector<16x160xf32> to vector<16x10xf32>
    %301 = arith.truncf %300 : vector<16x10xf32> to vector<16x10xbf16>
    %302 = vector.extract_strided_slice %270 {offsets = [0, 90], sizes = [16, 10], strides = [1, 1]} : vector<16x160xf32> to vector<16x10xf32>
    %303 = arith.truncf %302 : vector<16x10xf32> to vector<16x10xbf16>
    %304 = vector.extract_strided_slice %270 {offsets = [0, 130], sizes = [16, 10], strides = [1, 1]} : vector<16x160xf32> to vector<16x10xf32>
    %cst_80 = arith.constant dense<0.000000e+00> : vector<16x16xf32>
    %305 = tpu.matmul %299, %301, %cst_80 {dimension_numbers = #tpu.dot_dimension_numbers<[1], [1], [0], [0], [0, 0, 1, 0], [], []>} : vector<16x10xbf16>, vector<16x10xbf16>, vector<16x16xf32> -> vector<16x16xf32>
    %306 = arith.addf %305, %23 : vector<16x16xf32>
    %cst_81 = arith.constant dense<0xFF800000> : vector<16xf32>
    %307 = vector.multi_reduction <maximumf>, %306, %cst_81 [1] : vector<16x16xf32> to vector<16xf32>
    %308 = vector.shape_cast %307 : vector<16xf32> to vector<16x1xf32>
    %309 = vector.broadcast %308 : vector<16x1xf32> to vector<16x16xf32>
    %310 = arith.subf %306, %309 : vector<16x16xf32>
    %311 = math.exp %310 : vector<16x16xf32>
    %312 = arith.mulf %311, %18 : vector<16x16xf32>
    %cst_82 = arith.constant dense<0.000000e+00> : vector<16xf32>
    %313 = vector.multi_reduction <add>, %312, %cst_82 [1] : vector<16x16xf32> to vector<16xf32>
    %314 = vector.shape_cast %313 : vector<16xf32> to vector<16x1xf32>
    %cst_83 = arith.constant 0.000000e+00 : f32
    %315 = vector.broadcast %cst_83 : f32 to vector<16x1xf32>
    %316 = arith.cmpf oeq, %314, %315 : vector<16x1xf32>
    %cst_84 = arith.constant 1.000000e+00 : f32
    %317 = vector.broadcast %cst_84 : f32 to vector<16x1xf32>
    %318 = arith.select %316, %317, %314 : vector<16x1xi1>, vector<16x1xf32>
    %319 = arith.truncf %312 : vector<16x16xf32> to vector<16x16xbf16>
    %cst_85 = arith.constant dense<0.000000e+00> : vector<16x10xf32>
    %320 = tpu.matmul %319, %303, %cst_85 {dimension_numbers = #tpu.dot_dimension_numbers<[1], [0], [0], [1], [0, 0, 1, 1], [], []>} : vector<16x16xbf16>, vector<16x10xbf16>, vector<16x10xf32> -> vector<16x10xf32>
    %321 = tpu.reciprocal %318 {approx = true} : vector<16x1xf32> -> vector<16x1xf32>
    %322 = vector.broadcast %321 : vector<16x1xf32> to vector<16x10xf32>
    %323 = arith.mulf %320, %322 : vector<16x10xf32>
    %324 = arith.addf %323, %304 : vector<16x10xf32>
    %325 = vector.extract_strided_slice %270 {offsets = [0, 20], sizes = [16, 10], strides = [1, 1]} : vector<16x160xf32> to vector<16x10xf32>
    %326 = arith.truncf %325 : vector<16x10xf32> to vector<16x10xbf16>
    %327 = vector.extract_strided_slice %270 {offsets = [0, 60], sizes = [16, 10], strides = [1, 1]} : vector<16x160xf32> to vector<16x10xf32>
    %328 = arith.truncf %327 : vector<16x10xf32> to vector<16x10xbf16>
    %329 = vector.extract_strided_slice %270 {offsets = [0, 100], sizes = [16, 10], strides = [1, 1]} : vector<16x160xf32> to vector<16x10xf32>
    %330 = arith.truncf %329 : vector<16x10xf32> to vector<16x10xbf16>
    %331 = vector.extract_strided_slice %270 {offsets = [0, 140], sizes = [16, 10], strides = [1, 1]} : vector<16x160xf32> to vector<16x10xf32>
    %cst_86 = arith.constant dense<0.000000e+00> : vector<16x16xf32>
    %332 = tpu.matmul %326, %328, %cst_86 {dimension_numbers = #tpu.dot_dimension_numbers<[1], [1], [0], [0], [0, 0, 1, 0], [], []>} : vector<16x10xbf16>, vector<16x10xbf16>, vector<16x16xf32> -> vector<16x16xf32>
    %333 = arith.addf %332, %23 : vector<16x16xf32>
    %cst_87 = arith.constant dense<0xFF800000> : vector<16xf32>
    %334 = vector.multi_reduction <maximumf>, %333, %cst_87 [1] : vector<16x16xf32> to vector<16xf32>
    %335 = vector.shape_cast %334 : vector<16xf32> to vector<16x1xf32>
    %336 = vector.broadcast %335 : vector<16x1xf32> to vector<16x16xf32>
    %337 = arith.subf %333, %336 : vector<16x16xf32>
    %338 = math.exp %337 : vector<16x16xf32>
    %339 = arith.mulf %338, %18 : vector<16x16xf32>
    %cst_88 = arith.constant dense<0.000000e+00> : vector<16xf32>
    %340 = vector.multi_reduction <add>, %339, %cst_88 [1] : vector<16x16xf32> to vector<16xf32>
    %341 = vector.shape_cast %340 : vector<16xf32> to vector<16x1xf32>
    %cst_89 = arith.constant 0.000000e+00 : f32
    %342 = vector.broadcast %cst_89 : f32 to vector<16x1xf32>
    %343 = arith.cmpf oeq, %341, %342 : vector<16x1xf32>
    %cst_90 = arith.constant 1.000000e+00 : f32
    %344 = vector.broadcast %cst_90 : f32 to vector<16x1xf32>
    %345 = arith.select %343, %344, %341 : vector<16x1xi1>, vector<16x1xf32>
    %346 = arith.truncf %339 : vector<16x16xf32> to vector<16x16xbf16>
    %cst_91 = arith.constant dense<0.000000e+00> : vector<16x10xf32>
    %347 = tpu.matmul %346, %330, %cst_91 {dimension_numbers = #tpu.dot_dimension_numbers<[1], [0], [0], [1], [0, 0, 1, 1], [], []>} : vector<16x16xbf16>, vector<16x10xbf16>, vector<16x10xf32> -> vector<16x10xf32>
    %348 = tpu.reciprocal %345 {approx = true} : vector<16x1xf32> -> vector<16x1xf32>
    %349 = vector.broadcast %348 : vector<16x1xf32> to vector<16x10xf32>
    %350 = arith.mulf %347, %349 : vector<16x10xf32>
    %351 = arith.addf %350, %331 : vector<16x10xf32>
    %352 = vector.extract_strided_slice %270 {offsets = [0, 30], sizes = [16, 10], strides = [1, 1]} : vector<16x160xf32> to vector<16x10xf32>
    %353 = arith.truncf %352 : vector<16x10xf32> to vector<16x10xbf16>
    %354 = vector.extract_strided_slice %270 {offsets = [0, 70], sizes = [16, 10], strides = [1, 1]} : vector<16x160xf32> to vector<16x10xf32>
    %355 = arith.truncf %354 : vector<16x10xf32> to vector<16x10xbf16>
    %356 = vector.extract_strided_slice %270 {offsets = [0, 110], sizes = [16, 10], strides = [1, 1]} : vector<16x160xf32> to vector<16x10xf32>
    %357 = arith.truncf %356 : vector<16x10xf32> to vector<16x10xbf16>
    %358 = vector.extract_strided_slice %270 {offsets = [0, 150], sizes = [16, 10], strides = [1, 1]} : vector<16x160xf32> to vector<16x10xf32>
    %cst_92 = arith.constant dense<0.000000e+00> : vector<16x16xf32>
    %359 = tpu.matmul %353, %355, %cst_92 {dimension_numbers = #tpu.dot_dimension_numbers<[1], [1], [0], [0], [0, 0, 1, 0], [], []>} : vector<16x10xbf16>, vector<16x10xbf16>, vector<16x16xf32> -> vector<16x16xf32>
    %360 = arith.addf %359, %23 : vector<16x16xf32>
    %cst_93 = arith.constant dense<0xFF800000> : vector<16xf32>
    %361 = vector.multi_reduction <maximumf>, %360, %cst_93 [1] : vector<16x16xf32> to vector<16xf32>
    %362 = vector.shape_cast %361 : vector<16xf32> to vector<16x1xf32>
    %363 = vector.broadcast %362 : vector<16x1xf32> to vector<16x16xf32>
    %364 = arith.subf %360, %363 : vector<16x16xf32>
    %365 = math.exp %364 : vector<16x16xf32>
    %366 = arith.mulf %365, %18 : vector<16x16xf32>
    %cst_94 = arith.constant dense<0.000000e+00> : vector<16xf32>
    %367 = vector.multi_reduction <add>, %366, %cst_94 [1] : vector<16x16xf32> to vector<16xf32>
    %368 = vector.shape_cast %367 : vector<16xf32> to vector<16x1xf32>
    %cst_95 = arith.constant 0.000000e+00 : f32
    %369 = vector.broadcast %cst_95 : f32 to vector<16x1xf32>
    %370 = arith.cmpf oeq, %368, %369 : vector<16x1xf32>
    %cst_96 = arith.constant 1.000000e+00 : f32
    %371 = vector.broadcast %cst_96 : f32 to vector<16x1xf32>
    %372 = arith.select %370, %371, %368 : vector<16x1xi1>, vector<16x1xf32>
    %373 = arith.truncf %366 : vector<16x16xf32> to vector<16x16xbf16>
    %cst_97 = arith.constant dense<0.000000e+00> : vector<16x10xf32>
    %374 = tpu.matmul %373, %357, %cst_97 {dimension_numbers = #tpu.dot_dimension_numbers<[1], [0], [0], [1], [0, 0, 1, 1], [], []>} : vector<16x16xbf16>, vector<16x10xbf16>, vector<16x10xf32> -> vector<16x10xf32>
    %375 = tpu.reciprocal %372 {approx = true} : vector<16x1xf32> -> vector<16x1xf32>
    %376 = vector.broadcast %375 : vector<16x1xf32> to vector<16x10xf32>
    %377 = arith.mulf %374, %376 : vector<16x10xf32>
    %378 = arith.addf %377, %358 : vector<16x10xf32>
    %379 = tpu.concatenate %297, %324, %351, %378 in 1 : vector<16x10xf32>, vector<16x10xf32>, vector<16x10xf32>, vector<16x10xf32> -> vector<16x40xf32>
    %cst_98 = arith.constant dense<0xFF800000> : vector<16xf32>
    %380 = vector.multi_reduction <maximumf>, %379, %cst_98 [1] : vector<16x40xf32> to vector<16xf32>
    %381 = vector.shape_cast %380 : vector<16xf32> to vector<16x1xf32>
    %382 = vector.broadcast %381 : vector<16x1xf32> to vector<16x40xf32>
    %383 = arith.subf %379, %382 : vector<16x40xf32>
    %384 = math.exp %383 : vector<16x40xf32>
    %cst_99 = arith.constant dense<0.000000e+00> : vector<16xf32>
    %385 = vector.multi_reduction <add>, %384, %cst_99 [1] : vector<16x40xf32> to vector<16xf32>
    %386 = vector.shape_cast %385 : vector<16xf32> to vector<16x1xf32>
    %387 = math.log %386 : vector<16x1xf32>
    %388 = vector.broadcast %381 : vector<16x1xf32> to vector<16x40xf32>
    %389 = arith.subf %379, %388 : vector<16x40xf32>
    %390 = vector.broadcast %387 : vector<16x1xf32> to vector<16x40xf32>
    %391 = arith.subf %389, %390 : vector<16x40xf32>
    %c0_100 = arith.constant 0 : index
    %c0_101 = arith.constant 0 : index
    %392 = vector.load %arg8[%c0_100, %c0_101] : memref<16x40xf32, #tpu.memory_space<vmem>>, vector<16x40xf32>
    tpu.vector_store %arg8[%c0_100, %c0_101], %391 {strides = array<i32>} : memref<16x40xf32, #tpu.memory_space<vmem>>, vector<16x40xf32>,
    return
  }
}

</mosaic_0001>

<llo_original>
// kernel: net_forward.1
$region0: #{net_forward.1}
  #allocation0 [shape = 'u32[]', space=smem, size = 0x4, offset = 0x4, fixed_abs, tag = 'smem constant byte address 0x4 - core index']
  #allocation1 [shape = 'u32[144,128]{1,0:T(1,128)}', space=vmem, size = 0x12000, scoped, tag = 'internal scratch']
  %s0 = inlined_call_operand.vmem [shape: f32[16,130], index: 0, kind: input, shape index: {}]
  %s1 = inlined_call_operand.vmem [shape: s32[2,32], index: 1, kind: input, shape index: {}]
  %s2 = inlined_call_operand.hbm [shape: bf16[130,800], index: 2, kind: input, shape index: {}]
  %s3 = inlined_call_operand.vmem [shape: f32[1,800], index: 3, kind: input, shape index: {}]
  %s4 = inlined_call_operand.hbm [shape: bf16[200,400], index: 4, kind: input, shape index: {}]
  %s5 = inlined_call_operand.vmem [shape: f32[1,400], index: 5, kind: input, shape index: {}]
  %s6 = inlined_call_operand.vmem [shape: bf16[100,160], index: 6, kind: input, shape index: {}]
  %s7 = inlined_call_operand.vmem [shape: f32[1,160], index: 7, kind: input, shape index: {}]
  %s8 = inlined_call_operand.hbm [shape: f32[16,40], index: 8, kind: output, shape index: {}]
  %s9 = sld [smem:[#allocation0]]
  $region50: #{net_forward.1} parent=0
    _
  %s11 = ssub.s32 1, %s9
  %s12 = scalar_select 0, %s11, %s9
  $region1: #{net_forward.1} parent=0
    #allocation2 [shape = 'u8[243712]{0}', space=vmem, size = 0x3b800, scoped, tag = 'input window, operand 2, single buffered']
    #allocation3 [shape = 's32[1]{0}', space=sflag, size = 0x4, scoped, tag = 'scoped memory for net_forward.1']
    #allocation4 [shape = 's32[1]{0}', space=sflag, size = 0x4, scoped, tag = 'scoped memory for net_forward.1']
    #allocation5 [shape = 'u8[204800]{0}', space=vmem, size = 0x32000, scoped, tag = 'input window, operand 4, single buffered']
    #allocation6 [shape = 's32[1]{0}', space=sflag, size = 0x4, scoped, tag = 'scoped memory for net_forward.1']
    #allocation7 [shape = 'u8[8192]{0}', space=vmem, size = 0x2000, scoped, tag = 'output window, operand 0, single buffered']
    %13 = vsyncpa [#allocation3], 0
    %14 = vsyncpa [#allocation6], 0
    %15 = vsyncpa [#allocation4], 0
    // Predicated region
    $region2: #{net_forward.1} parent=1 // pred_check
      _
    $region3: #{net_forward.1} parent=1 // pred_check_branch
      %17 = sbr.rel (0) target = $region5
    $region4: #{net_forward.1} parent=1 // pred_region
      _
    $region5: #{net_forward.1} parent=1 // pred_fallthru
      _
    // Predicated region
    $region6: #{net_forward.1} parent=1 // pred_check
      _
    $region7: #{net_forward.1} parent=1 // pred_check_branch
      %19 = sbr.rel (0) target = $region9
    $region8: #{net_forward.1} parent=1 // pred_region
      _
    $region9: #{net_forward.1} parent=1 // pred_fallthru
      _
    // Predicated region
    $region10: #{net_forward.1} parent=1 // pred_check
      _
    $region11: #{net_forward.1} parent=1 // pred_check_branch
      %21 = sbr.rel (0) target = $region13
    $region12: #{net_forward.1} parent=1 // pred_region
      %s23 = ssub.s32 7616, 7616
      %24 = vsyncadd [#allocation3], %s23
      %s25 = sshll.u32 [#allocation2], 4
      %s26 = int_to_ptr.vmem [resolvable:$true] %s25
      %31 = dma.hbm_to_vmem [thread:$0]  %s2, 7616, %s26, [#allocation3], 448, 448, 28
    $region13: #{net_forward.1} parent=1 // pred_fallthru
      _
    // Predicated region
    $region14: #{net_forward.1} parent=1 // pred_check
      _
    $region15: #{net_forward.1} parent=1 // pred_check_branch
      %33 = sbr.rel (0) target = $region17
    $region16: #{net_forward.1} parent=1 // pred_region
      _
    $region17: #{net_forward.1} parent=1 // pred_fallthru
      _
    // Predicated region
    $region18: #{net_forward.1} parent=1 // pred_check
      _
    $region19: #{net_forward.1} parent=1 // pred_check_branch
      %35 = sbr.rel (0) target = $region21
    $region20: #{net_forward.1} parent=1 // pred_region
      %s37 = ssub.s32 6400, 6400
      %38 = vsyncadd [#allocation6], %s37
      %s39 = sshll.u32 [#allocation5], 4
      %s40 = int_to_ptr.vmem [resolvable:$true] %s39
      %45 = dma.hbm_to_vmem [thread:$0]  %s4, 6400, %s40, [#allocation6], 256, 256, 16
    $region21: #{net_forward.1} parent=1 // pred_fallthru
      _
    // Predicated region
    $region22: #{net_forward.1} parent=1 // pred_check
      _
    $region23: #{net_forward.1} parent=1 // pred_check_branch
      %47 = sbr.rel (0) target = $region25
    $region24: #{net_forward.1} parent=1 // pred_region
      _
    $region25: #{net_forward.1} parent=1 // pred_fallthru
      _
    // Predicated region
    $region26: #{net_forward.1} parent=1 // pred_check
      _
    $region27: #{net_forward.1} parent=1 // pred_check_branch
      %49 = sbr.rel (0) target = $region29
    $region28: #{net_forward.1} parent=1 // pred_region
      _
    $region29: #{net_forward.1} parent=1 // pred_fallthru
      _
    // Predicated region
    $region30: #{net_forward.1} parent=1 // pred_check
      _
    $region31: #{net_forward.1} parent=1 // pred_check_branch
      %51 = sbr.rel (0) target = $region33
    $region32: #{net_forward.1} parent=1 // pred_region
      _
    $region33: #{net_forward.1} parent=1 // pred_fallthru
      _
    // Predicated region
    $region34: #{net_forward.1} parent=1 // pred_check
      _
    $region35: #{net_forward.1} parent=1 // pred_check_branch
      %53 = sbr.rel (0) target = $region37
    $region36: #{net_forward.1} parent=1 // pred_region
      %54 = dma.done [#allocation3], 7616
    $region37: #{net_forward.1} parent=1 // pred_fallthru
      _
    // Predicated region
    $region38: #{net_forward.1} parent=1 // pred_check
      _
    $region39: #{net_forward.1} parent=1 // pred_check_branch
      %56 = sbr.rel (0) target = $region41
    $region40: #{net_forward.1} parent=1 // pred_region
      %57 = dma.done [#allocation6], 6400
    $region41: #{net_forward.1} parent=1 // pred_fallthru
      _
    %v59 = vld [vmem:[%s1] sm:$0x3]
    %v60 = vlaneseq
    %v61 = vshrl.u32 %v60, 7
    %v62 = vadd.s32 %v61, 8
    %v63 = vlaneseq
    %v64 = vshrl.u32 %v63, 7
    %v65 = vsub.s32 1, %v64
    %v66 = vrot.slane %v59, %v65
    %vm67 = vcmp.eq.s32.totalorder %v61, %v66
    %vm68 = vcmp.eq.s32.totalorder %v62, %v66
    %v69 = vsel %vm67, 1, 0
    %v70 = vsel %vm68, 1, 0
    %v71 = vcvt.s32.f32 %v69
    %v72 = vcvt.s32.f32 %v70
    %v73 = vpack.c.bf16 %v72, %v71
    %v74 = vlaneseq
    %v75 = vshrl.u32 %v74, 7
    %v76 = vsub.s32 0, %v75
    %v77 = vrot.slane %v59, %v76
    %vm78 = vcmp.eq.s32.totalorder %v61, %v77
    %vm79 = vcmp.eq.s32.totalorder %v62, %v77
    %v80 = vsel %vm78, 1, 0
    %v81 = vsel %vm79, 1, 0
    %v82 = vcvt.s32.f32 %v80
    %v83 = vcvt.s32.f32 %v81
    %v84 = vpack.c.bf16 %v83, %v82
    %vm85 = vcmask 261120
    %v87 = vsel %vm85, %v73, 0
    %v90 = vsel %vm85, %v84, 0
    %92 = vmatprep.subr.bf16.mxu0 0
    %93 = vmatpush1.bf16.xpose.msra.mxu0 0
    %94 = vmatprep.subr.bf16.mxu0 0
    %95 = vmatpush1.bf16.xpose.msra.mxu0 0
    %96 = vmatprep.subr.bf16.mxu0 0
    %97 = vmatpush1.bf16.xpose.msra.mxu0 0
    %98 = vmatprep.subr.bf16.mxu0 0
    %99 = vmatpush1.bf16.xpose.msra.mxu0 0
    %100 = vmatprep.subr.bf16.mxu0 0
    %101 = vmatpush1.bf16.xpose.msra.mxu0 0
    %102 = vmatprep.subr.bf16.mxu0 0
    %103 = vmatpush1.bf16.xpose.msra.mxu0 0
    %104 = vmatprep.subr.bf16.mxu0 0
    %105 = vmatpush1.bf16.xpose.msra.mxu0 0
    %106 = vmatprep.subr.bf16.mxu0 0
    %107 = vmatpush1.bf16.xpose.msra.mxu0 %v90
    %108 = vmatprep.subr.bf16.mxu0 0
    %109 = vmatpush2.bf16.xpose.msra.mxu0 0
    %110 = vmatprep.subr.bf16.mxu0 0
    %111 = vmatpush2.bf16.xpose.msra.mxu0 0
    %112 = vmatprep.subr.bf16.mxu0 0
    %113 = vmatpush2.bf16.xpose.msra.mxu0 0
    %114 = vmatprep.subr.bf16.mxu0 0
    %115 = vmatpush2.bf16.xpose.msra.mxu0 0
    %116 = vmatprep.subr.bf16.mxu0 0
    %117 = vmatpush2.bf16.xpose.msra.mxu0 0
    %118 = vmatprep.subr.bf16.mxu0 0
    %119 = vmatpush2.bf16.xpose.msra.mxu0 0
    %120 = vmatprep.subr.bf16.mxu0 0
    %121 = vmatpush2.bf16.xpose.msra.mxu0 0
    %122 = vmatprep.subr.bf16.mxu0 0
    %123 = vmatpush2.bf16.xpose.msra.mxu0 0
    %124 = vmatprep.mubr.bf16.mxu0 0
    %125 = vmatmul.mubr.bf16.gmra.mxu0 %v87
    %v126 = vpop.f32.mrf.mxu0
    %v127 = vadd.f32 0.0, %v126
    %v128 = vpop.f32.mrf.mxu0
    %v129 = vpop.f32.mrf.mxu0
    %v130 = vadd.f32 0.0, %v129
    %v131 = vpop.f32.mrf.mxu0
    %132 = vdwg.mxu0
    %vm133 = vcmp.gt.f32.partialorder %v127, 0.0
    %vm134 = vcmp.gt.f32.partialorder %v130, 0.0
    %v135 = vsel %vm133, 1, 0
    %v136 = vsel %vm134, 1, 0
    %v137 = vcvt.s32.f32 %v135
    %v138 = vcvt.s32.f32 %v136
    %v139 = vsel %vm133, 0.0, -1e+30
    %v140 = vsel %vm134, 0.0, -1e+30
    %v141 = vld [vmem:[%s0] sm:$0xff]
    %v142 = vld [vmem:[%s0 + $0x8] sm:$0xff]
    %v143 = vld [vmem:[%s0 + $0x10] sm:$0xff]
    %v144 = vld [vmem:[%s0 + $0x18] sm:$0xff]
    %v145 = vpack.c.bf16 %v143, %v141
    %v146 = vpack.c.bf16 %v144, %v142
    %v147 = vld [vmem:[#allocation2] sm:$0xff]
    %v148 = vld [vmem:[#allocation2 + $0x8] sm:$0xff]
    %v149 = vld [vmem:[#allocation2 + $0x10] sm:$0xff]
    %v150 = vld [vmem:[#allocation2 + $0x18] sm:$0xf]
    %v151 = vld [vmem:[#allocation2 + $0x1c] sm:$0xff]
    %v152 = vld [vmem:[#allocation2 + $0x24] sm:$0xff]
    %v153 = vld [vmem:[#allocation2 + $0x2c] sm:$0xff]
    %v154 = vld [vmem:[#allocation2 + $0x34] sm:$0xf]
    %v155 = vld [vmem:[#allocation2 + $0x38] sm:$0xff]
    %v156 = vld [vmem:[#allocation2 + $0x40] sm:$0xff]
    %v157 = vld [vmem:[#allocation2 + $0x48] sm:$0xff]
    %v158 = vld [vmem:[#allocation2 + $0x50] sm:$0xf]
    %v159 = vld [vmem:[#allocation2 + $0x54] sm:$0xff]
    %v160 = vld [vmem:[#allocation2 + $0x5c] sm:$0xff]
    %v161 = vld [vmem:[#allocation2 + $0x64] sm:$0xff]
    %v162 = vld [vmem:[#allocation2 + $0x6c] sm:$0xf]
    %v163 = vld [vmem:[#allocation2 + $0x70] sm:$0xff]
    %v164 = vld [vmem:[#allocation2 + $0x78] sm:$0xff]
    %v165 = vld [vmem:[#allocation2 + $0x80] sm:$0xff]
    %v166 = vld [vmem:[#allocation2 + $0x88] sm:$0xf]
    %v167 = vld [vmem:[#allocation2 + $0x8c] sm:$0xff]
    %v168 = vld [vmem:[#allocation2 + $0x94] sm:$0xff]
    %v169 = vld [vmem:[#allocation2 + $0x9c] sm:$0xff]
    %v170 = vld [vmem:[#allocation2 + $0xa4] sm:$0xf]
    %v171 = vld [vmem:[#allocation2 + $0xa8] sm:$0xff]
    %v172 = vld [vmem:[#allocation2 + $0xb0] sm:$0xff]
    %v173 = vld [vmem:[#allocation2 + $0xb8] sm:$0xff]
    %v174 = vld [vmem:[#allocation2 + $0xc0] sm:$0xf]
    %v175 = vld [vmem:[#allocation2 + $0xc4] sm:$0xff]
    %v176 = vld [vmem:[#allocation2 + $0xcc] sm:$0xff]
    %v177 = vld [vmem:[#allocation2 + $0xd4] sm:$0xff]
    %v178 = vld [vmem:[#allocation2 + $0xdc] sm:$0xf]
    %v179 = vld [vmem:[#allocation2 + $0xe0] sm:$0xff]
    %v180 = vld [vmem:[#allocation2 + $0xe8] sm:$0xff]
    %v181 = vld [vmem:[#allocation2 + $0xf0] sm:$0xff]
    %v182 = vld [vmem:[#allocation2 + $0xf8] sm:$0xf]
    %v183 = vld [vmem:[#allocation2 + $0xfc] sm:$0xff]
    %v184 = vld [vmem:[#allocation2 + $0x104] sm:$0xff]
    %v185 = vld [vmem:[#allocation2 + $0x10c] sm:$0xff]
    %v186 = vld [vmem:[#allocation2 + $0x114] sm:$0xf]
    %v187 = vld [vmem:[#allocation2 + $0x118] sm:$0xff]
    %v188 = vld [vmem:[#allocation2 + $0x120] sm:$0xff]
    %v189 = vld [vmem:[#allocation2 + $0x128] sm:$0xff]
    %v190 = vld [vmem:[#allocation2 + $0x130] sm:$0xf]
    %v191 = vld [vmem:[#allocation2 + $0x134] sm:$0xff]
    %v192 = vld [vmem:[#allocation2 + $0x13c] sm:$0xff]
    %v193 = vld [vmem:[#allocation2 + $0x144] sm:$0xff]
    %v194 = vld [vmem:[#allocation2 + $0x14c] sm:$0xf]
    %v195 = vld [vmem:[#allocation2 + $0x150] sm:$0xff]
    %v196 = vld [vmem:[#allocation2 + $0x158] sm:$0xff]
    %v197 = vld [vmem:[#allocation2 + $0x160] sm:$0xff]
    %v198 = vld [vmem:[#allocation2 + $0x168] sm:$0xf]
    %v199 = vld [vmem:[#allocation2 + $0x16c] sm:$0xff]
    %v200 = vld [vmem:[#allocation2 + $0x174] sm:$0xff]
    %v201 = vld [vmem:[#allocation2 + $0x17c] sm:$0xff]
    %v202 = vld [vmem:[#allocation2 + $0x184] sm:$0xf]
    %v203 = vld [vmem:[#allocation2 + $0x188] sm:$0xff]
    %v204 = vld [vmem:[#allocation2 + $0x190] sm:$0xff]
    %v205 = vld [vmem:[#allocation2 + $0x198] sm:$0xff]
    %v206 = vld [vmem:[#allocation2 + $0x1a0] sm:$0xf]
    %v207 = vld [vmem:[#allocation2 + $0x1a4] sm:$0xff]
    %v208 = vld [vmem:[#allocation2 + $0x1ac] sm:$0xff]
    %v209 = vld [vmem:[#allocation2 + $0x1b4] sm:$0xff]
    %v210 = vld [vmem:[#allocation2 + $0x1bc] sm:$0xf]
    %v211 = vld [vmem:[#allocation2 + $0x1c0] sm:$0x11]
    %v212 = vld [vmem:[#allocation2 + $0x1c8] sm:$0x11]
    %v213 = vld [vmem:[#allocation2 + $0x1d0] sm:$0x11]
    %v214 = vld [vmem:[#allocation2 + $0x1d8] sm:$0x1]
    %v215 = vld [vmem:[%s3] sm:$0x7f]
    %v217 = vlaneseq
    %v218 = vshrl.u32 %v217, 7
    %v219 = vsub.s32 0, %v218
    %v220 = vrot.slane %v215, %v219
    %v221 = vlaneseq
    %v222 = vshrl.u32 %v221, 7
    %v223 = vsub.s32 1, %v222
    %v224 = vrot.slane %v215, %v223
    %v225 = vlaneseq
    %v226 = vshrl.u32 %v225, 7
    %v227 = vsub.s32 2, %v226
    %v228 = vrot.slane %v215, %v227
    %v229 = vlaneseq
    %v230 = vshrl.u32 %v229, 7
    %v231 = vsub.s32 3, %v230
    %v232 = vrot.slane %v215, %v231
    %v233 = vlaneseq
    %v234 = vshrl.u32 %v233, 7
    %v235 = vsub.s32 4, %v234
    %v236 = vrot.slane %v215, %v235
    %v237 = vlaneseq
    %v238 = vshrl.u32 %v237, 7
    %v239 = vsub.s32 5, %v238
    %v240 = vrot.slane %v215, %v239
    %v241 = vlaneseq
    %v242 = vshrl.u32 %v241, 7
    %v243 = vsub.s32 6, %v242
    %v244 = vrot.slane %v215, %v243
    %v320 = vunpack.c.l.b16 %v147
    %v321 = vunpack.c.h.b16 %v147
    %v322 = vunpack.c.l.b16 %v148
    %v323 = vunpack.c.h.b16 %v148
    %v324 = vunpack.c.l.b16 %v149
    %v325 = vunpack.c.h.b16 %v149
    %v326 = vunpack.c.l.b16 %v150
    %v327 = vunpack.c.l.b16 %v151
    %v328 = vunpack.c.h.b16 %v151
    %v329 = vunpack.c.l.b16 %v152
    %v330 = vunpack.c.h.b16 %v152
    %v331 = vunpack.c.l.b16 %v153
    %v332 = vunpack.c.h.b16 %v153
    %v333 = vunpack.c.l.b16 %v154
    %v334 = vunpack.c.l.b16 %v155
    %v335 = vunpack.c.h.b16 %v155
    %v336 = vunpack.c.l.b16 %v156
    %v337 = vunpack.c.h.b16 %v156
    %v338 = vunpack.c.l.b16 %v157
    %v339 = vunpack.c.h.b16 %v157
    %v340 = vunpack.c.l.b16 %v158
    %v341 = vunpack.c.l.b16 %v159
    %v342 = vunpack.c.h.b16 %v159
    %v343 = vunpack.c.l.b16 %v160
    %v344 = vunpack.c.h.b16 %v160
    %v345 = vunpack.c.l.b16 %v161
    %v346 = vunpack.c.h.b16 %v161
    %v347 = vunpack.c.l.b16 %v162
    %v348 = vunpack.c.l.b16 %v163
    %v349 = vunpack.c.h.b16 %v163
    %v350 = vunpack.c.l.b16 %v164
    %v351 = vunpack.c.h.b16 %v164
    %v352 = vunpack.c.l.b16 %v165
    %v353 = vunpack.c.h.b16 %v165
    %v354 = vunpack.c.l.b16 %v166
    %v355 = vunpack.c.l.b16 %v167
    %v356 = vunpack.c.h.b16 %v167
    %v357 = vunpack.c.l.b16 %v168
    %v358 = vunpack.c.h.b16 %v168
    %v359 = vunpack.c.l.b16 %v169
    %v360 = vunpack.c.h.b16 %v169
    %v361 = vunpack.c.l.b16 %v170
    %v362 = vunpack.c.l.b16 %v171
    %v363 = vunpack.c.h.b16 %v171
    %v364 = vunpack.c.l.b16 %v172
    %v365 = vunpack.c.h.b16 %v172
    %v366 = vunpack.c.l.b16 %v173
    %v367 = vunpack.c.h.b16 %v173
    %v368 = vunpack.c.l.b16 %v174
    %v369 = vunpack.c.l.b16 %v175
    %v370 = vunpack.c.h.b16 %v175
    %v371 = vunpack.c.l.b16 %v176
    %v372 = vunpack.c.h.b16 %v176
    %v373 = vunpack.c.l.b16 %v177
    %v374 = vunpack.c.h.b16 %v177
    %v375 = vunpack.c.l.b16 %v178
    %v376 = vunpack.c.l.b16 %v179
    %v377 = vunpack.c.h.b16 %v179
    %v378 = vunpack.c.l.b16 %v180
    %v379 = vunpack.c.h.b16 %v180
    %v380 = vunpack.c.l.b16 %v181
    %v381 = vunpack.c.h.b16 %v181
    %v382 = vunpack.c.l.b16 %v182
    %v383 = vunpack.c.l.b16 %v183
    %v384 = vunpack.c.h.b16 %v183
    %v385 = vunpack.c.l.b16 %v184
    %v386 = vunpack.c.h.b16 %v184
    %v387 = vunpack.c.l.b16 %v185
    %v388 = vunpack.c.h.b16 %v185
    %v389 = vunpack.c.l.b16 %v186
    %v390 = vunpack.c.l.b16 %v187
    %v391 = vunpack.c.h.b16 %v187
    %v392 = vunpack.c.l.b16 %v188
    %v393 = vunpack.c.h.b16 %v188
    %v394 = vunpack.c.l.b16 %v189
    %v395 = vunpack.c.h.b16 %v189
    %v396 = vunpack.c.l.b16 %v190
    %v397 = vunpack.c.l.b16 %v191
    %v398 = vunpack.c.h.b16 %v191
    %v399 = vunpack.c.l.b16 %v192
    %v400 = vunpack.c.h.b16 %v192
    %v401 = vunpack.c.l.b16 %v193
    %v402 = vunpack.c.h.b16 %v193
    %v403 = vunpack.c.l.b16 %v194
    %v404 = vunpack.c.l.b16 %v195
    %v405 = vunpack.c.h.b16 %v195
    %v406 = vunpack.c.l.b16 %v196
    %v407 = vunpack.c.h.b16 %v196
    %v408 = vunpack.c.l.b16 %v197
    %v409 = vunpack.c.h.b16 %v197
    %v410 = vunpack.c.l.b16 %v198
    %v411 = vunpack.c.l.b16 %v199
    %v412 = vunpack.c.h.b16 %v199
    %v413 = vunpack.c.l.b16 %v200
    %v414 = vunpack.c.h.b16 %v200
    %v415 = vunpack.c.l.b16 %v201
    %v416 = vunpack.c.h.b16 %v201
    %v417 = vunpack.c.l.b16 %v202
    %v418 = vunpack.c.l.b16 %v203
    %v419 = vunpack.c.h.b16 %v203
    %v420 = vunpack.c.l.b16 %v204
    %v421 = vunpack.c.h.b16 %v204
    %v422 = vunpack.c.l.b16 %v205
    %v423 = vunpack.c.h.b16 %v205
    %v424 = vunpack.c.l.b16 %v206
    %v425 = vunpack.c.l.b16 %v207
    %v426 = vunpack.c.h.b16 %v207
    %v427 = vunpack.c.l.b16 %v208
    %v428 = vunpack.c.h.b16 %v208
    %v429 = vunpack.c.l.b16 %v209
    %v430 = vunpack.c.h.b16 %v209
    %v431 = vunpack.c.l.b16 %v210
    %v432 = vunpack.c.l.b16 %v211
    %v433 = vunpack.c.h.b16 %v211
    %v434 = vunpack.c.l.b16 %v212
    %v435 = vunpack.c.h.b16 %v212
    %v436 = vunpack.c.l.b16 %v213
    %v437 = vunpack.c.h.b16 %v213
    %v438 = vunpack.c.l.b16 %v214
    %v439 = vpack.c.b16 %v327, %v320
    %v440 = vpack.c.b16 %v328, %v321
    %v441 = vpack.c.b16 %v329, %v322
    %v442 = vpack.c.b16 %v330, %v323
    %v443 = vpack.c.b16 %v331, %v324
    %v444 = vpack.c.b16 %v332, %v325
    %v445 = vpack.c.b16 %v333, %v326
    %v446 = vpack.c.b16 %v341, %v334
    %v447 = vpack.c.b16 %v342, %v335
    %v448 = vpack.c.b16 %v343, %v336
    %v449 = vpack.c.b16 %v344, %v337
    %v450 = vpack.c.b16 %v345, %v338
    %v451 = vpack.c.b16 %v346, %v339
    %v452 = vpack.c.b16 %v347, %v340
    %v453 = vpack.c.b16 %v355, %v348
    %v454 = vpack.c.b16 %v356, %v349
    %v455 = vpack.c.b16 %v357, %v350
    %v456 = vpack.c.b16 %v358, %v351
    %v457 = vpack.c.b16 %v359, %v352
    %v458 = vpack.c.b16 %v360, %v353
    %v459 = vpack.c.b16 %v361, %v354
    %v460 = vpack.c.b16 %v369, %v362
    %v461 = vpack.c.b16 %v370, %v363
    %v462 = vpack.c.b16 %v371, %v364
    %v463 = vpack.c.b16 %v372, %v365
    %v464 = vpack.c.b16 %v373, %v366
    %v465 = vpack.c.b16 %v374, %v367
    %v466 = vpack.c.b16 %v375, %v368
    %v467 = vpack.c.b16 %v383, %v376
    %v468 = vpack.c.b16 %v384, %v377
    %v469 = vpack.c.b16 %v385, %v378
    %v470 = vpack.c.b16 %v386, %v379
    %v471 = vpack.c.b16 %v387, %v380
    %v472 = vpack.c.b16 %v388, %v381
    %v473 = vpack.c.b16 %v389, %v382
    %v474 = vpack.c.b16 %v397, %v390
    %v475 = vpack.c.b16 %v398, %v391
    %v476 = vpack.c.b16 %v399, %v392
    %v477 = vpack.c.b16 %v400, %v393
    %v478 = vpack.c.b16 %v401, %v394
    %v479 = vpack.c.b16 %v402, %v395
    %v480 = vpack.c.b16 %v403, %v396
    %v481 = vpack.c.b16 %v411, %v404
    %v482 = vpack.c.b16 %v412, %v405
    %v483 = vpack.c.b16 %v413, %v406
    %v484 = vpack.c.b16 %v414, %v407
    %v485 = vpack.c.b16 %v415, %v408
    %v486 = vpack.c.b16 %v416, %v409
    %v487 = vpack.c.b16 %v417, %v410
    %v488 = vpack.c.b16 %v425, %v418
    %v489 = vpack.c.b16 %v426, %v419
    %v490 = vpack.c.b16 %v427, %v420
    %v491 = vpack.c.b16 %v428, %v421
    %v492 = vpack.c.b16 %v429, %v422
    %v493 = vpack.c.b16 %v430, %v423
    %v494 = vpack.c.b16 %v431, %v424
    %v495 = vpack.c.b16 %v432, %v432
    %v496 = vpack.c.b16 %v433, %v433
    %v497 = vpack.c.b16 %v434, %v434
    %v498 = vpack.c.b16 %v435, %v435
    %v499 = vpack.c.b16 %v436, %v436
    %v500 = vpack.c.b16 %v437, %v437
    %v501 = vpack.c.b16 %v438, %v438
    %vm558 = vcmask 15360
    %v560 = vsel %vm558, %v146, 0
    %vm562 = vcmask 1040384
    %v564 = vsel %vm562, %v495, 0
    %v567 = vsel %vm562, %v496, 0
    %v570 = vsel %vm562, %v497, 0
    %v573 = vsel %vm562, %v498, 0
    %v576 = vsel %vm562, %v499, 0
    %v579 = vsel %vm562, %v500, 0
    %v582 = vsel %vm562, %v501, 0
    %584 = vmatprep.subr.bf16.mxu0 %v489
    %585 = vmatpush1.bf16.msra.mxu0 %v488
    %586 = vmatprep.subr.bf16.mxu0 %v482
    %587 = vmatpush1.bf16.msra.mxu0 %v481
    %588 = vmatprep.subr.bf16.mxu0 %v475
    %589 = vmatpush1.bf16.msra.mxu0 %v474
    %590 = vmatprep.subr.bf16.mxu0 %v468
    %591 = vmatpush1.bf16.msra.mxu0 %v467
    %592 = vmatprep.subr.bf16.mxu0 %v461
    %593 = vmatpush1.bf16.msra.mxu0 %v460
    %594 = vmatprep.subr.bf16.mxu0 %v454
    %595 = vmatpush1.bf16.msra.mxu0 %v453
    %596 = vmatprep.subr.bf16.mxu0 %v447
    %597 = vmatpush1.bf16.msra.mxu0 %v446
    %598 = vmatprep.subr.bf16.mxu0 %v440
    %599 = vmatpush1.bf16.msra.mxu0 %v439
    %600 = vmatprep.subr.bf16.mxu0 0
    %601 = vmatpush2.bf16.msra.mxu0 0
    %602 = vmatprep.subr.bf16.mxu0 0
    %603 = vmatpush2.bf16.msra.mxu0 0
    %604 = vmatprep.subr.bf16.mxu0 0
    %605 = vmatpush2.bf16.msra.mxu0 0
    %606 = vmatprep.subr.bf16.mxu0 0
    %607 = vmatpush2.bf16.msra.mxu0 0
    %608 = vmatprep.subr.bf16.mxu0 0
    %609 = vmatpush2.bf16.msra.mxu0 0
    %610 = vmatprep.subr.bf16.mxu0 0
    %611 = vmatpush2.bf16.msra.mxu0 0
    %612 = vmatprep.subr.bf16.mxu0 0
    %613 = vmatpush2.bf16.msra.mxu0 0
    %614 = vmatprep.subr.bf16.mxu0 %v567
    %615 = vmatpush2.bf16.msra.mxu0 %v564
    %616 = vmatprep.mubr.bf16.mxu0 %v560
    %617 = vmatmul.mubr.bf16.gmra.mxu0 %v145
    %v618 = vpop.f32.mrf.mxu0
    %v619 = vadd.f32 %v220, %v618
    %v620 = vpop.f32.mrf.mxu0
    %v621 = vadd.f32 %v224, %v620
    %v622 = vpop.f32.mrf.mxu0
    %v623 = vadd.f32 %v220, %v622
    %v624 = vpop.f32.mrf.mxu0
    %v625 = vadd.f32 %v224, %v624
    %626 = vdwg.mxu0
    %627 = vmatprep.subr.bf16.mxu0 %v491
    %628 = vmatpush1.bf16.msra.mxu0 %v490
    %629 = vmatprep.subr.bf16.mxu0 %v484
    %630 = vmatpush1.bf16.msra.mxu0 %v483
    %631 = vmatprep.subr.bf16.mxu0 %v477
    %632 = vmatpush1.bf16.msra.mxu0 %v476
    %633 = vmatprep.subr.bf16.mxu0 %v470
    %634 = vmatpush1.bf16.msra.mxu0 %v469
    %635 = vmatprep.subr.bf16.mxu0 %v463
    %636 = vmatpush1.bf16.msra.mxu0 %v462
    %637 = vmatprep.subr.bf16.mxu0 %v456
    %638 = vmatpush1.bf16.msra.mxu0 %v455
    %639 = vmatprep.subr.bf16.mxu0 %v449
    %640 = vmatpush1.bf16.msra.mxu0 %v448
    %641 = vmatprep.subr.bf16.mxu0 %v442
    %642 = vmatpush1.bf16.msra.mxu0 %v441
    %643 = vmatprep.subr.bf16.mxu0 0
    %644 = vmatpush2.bf16.msra.mxu0 0
    %645 = vmatprep.subr.bf16.mxu0 0
    %646 = vmatpush2.bf16.msra.mxu0 0
    %647 = vmatprep.subr.bf16.mxu0 0
    %648 = vmatpush2.bf16.msra.mxu0 0
    %649 = vmatprep.subr.bf16.mxu0 0
    %650 = vmatpush2.bf16.msra.mxu0 0
    %651 = vmatprep.subr.bf16.mxu0 0
    %652 = vmatpush2.bf16.msra.mxu0 0
    %653 = vmatprep.subr.bf16.mxu0 0
    %654 = vmatpush2.bf16.msra.mxu0 0
    %655 = vmatprep.subr.bf16.mxu0 0
    %656 = vmatpush2.bf16.msra.mxu0 0
    %657 = vmatprep.subr.bf16.mxu0 %v573
    %658 = vmatpush2.bf16.msra.mxu0 %v570
    %659 = vmatprep.mubr.bf16.mxu0 %v560
    %660 = vmatmul.mubr.bf16.gmra.mxu0 %v145
    %v661 = vpop.f32.mrf.mxu0
    %v662 = vadd.f32 %v228, %v661
    %v663 = vpop.f32.mrf.mxu0
    %v664 = vadd.f32 %v232, %v663
    %v665 = vpop.f32.mrf.mxu0
    %v666 = vadd.f32 %v228, %v665
    %v667 = vpop.f32.mrf.mxu0
    %v668 = vadd.f32 %v232, %v667
    %669 = vdwg.mxu0
    %670 = vmatprep.subr.bf16.mxu0 %v493
    %671 = vmatpush1.bf16.msra.mxu0 %v492
    %672 = vmatprep.subr.bf16.mxu0 %v486
    %673 = vmatpush1.bf16.msra.mxu0 %v485
    %674 = vmatprep.subr.bf16.mxu0 %v479
    %675 = vmatpush1.bf16.msra.mxu0 %v478
    %676 = vmatprep.subr.bf16.mxu0 %v472
    %677 = vmatpush1.bf16.msra.mxu0 %v471
    %678 = vmatprep.subr.bf16.mxu0 %v465
    %679 = vmatpush1.bf16.msra.mxu0 %v464
    %680 = vmatprep.subr.bf16.mxu0 %v458
    %681 = vmatpush1.bf16.msra.mxu0 %v457
    %682 = vmatprep.subr.bf16.mxu0 %v451
    %683 = vmatpush1.bf16.msra.mxu0 %v450
    %684 = vmatprep.subr.bf16.mxu0 %v444
    %685 = vmatpush1.bf16.msra.mxu0 %v443
    %686 = vmatprep.subr.bf16.mxu0 0
    %687 = vmatpush2.bf16.msra.mxu0 0
    %688 = vmatprep.subr.bf16.mxu0 0
    %689 = vmatpush2.bf16.msra.mxu0 0
    %690 = vmatprep.subr.bf16.mxu0 0
    %691 = vmatpush2.bf16.msra.mxu0 0
    %692 = vmatprep.subr.bf16.mxu0 0
    %693 = vmatpush2.bf16.msra.mxu0 0
    %694 = vmatprep.subr.bf16.mxu0 0
    %695 = vmatpush2.bf16.msra.mxu0 0
    %696 = vmatprep.subr.bf16.mxu0 0
    %697 = vmatpush2.bf16.msra.mxu0 0
    %698 = vmatprep.subr.bf16.mxu0 0
    %699 = vmatpush2.bf16.msra.mxu0 0
    %700 = vmatprep.subr.bf16.mxu0 %v579
    %701 = vmatpush2.bf16.msra.mxu0 %v576
    %702 = vmatprep.mubr.bf16.mxu0 %v560
    %703 = vmatmul.mubr.bf16.gmra.mxu0 %v145
    %v704 = vpop.f32.mrf.mxu0
    %v705 = vadd.f32 %v236, %v704
    %v706 = vpop.f32.mrf.mxu0
    %v707 = vadd.f32 %v240, %v706
    %v708 = vpop.f32.mrf.mxu0
    %v709 = vadd.f32 %v236, %v708
    %v710 = vpop.f32.mrf.mxu0
    %v711 = vadd.f32 %v240, %v710
    %712 = vdwg.mxu0
    %713 = vmatprep.subr.bf16.mxu0 0
    %714 = vmatpush1.bf16.msra.mxu0 %v494
    %715 = vmatprep.subr.bf16.mxu0 0
    %716 = vmatpush1.bf16.msra.mxu0 %v487
    %717 = vmatprep.subr.bf16.mxu0 0
    %718 = vmatpush1.bf16.msra.mxu0 %v480
    %719 = vmatprep.subr.bf16.mxu0 0
    %720 = vmatpush1.bf16.msra.mxu0 %v473
    %721 = vmatprep.subr.bf16.mxu0 0
    %722 = vmatpush1.bf16.msra.mxu0 %v466
    %723 = vmatprep.subr.bf16.mxu0 0
    %724 = vmatpush1.bf16.msra.mxu0 %v459
    %725 = vmatprep.subr.bf16.mxu0 0
    %726 = vmatpush1.bf16.msra.mxu0 %v452
    %727 = vmatprep.subr.bf16.mxu0 0
    %728 = vmatpush1.bf16.msra.mxu0 %v445
    %729 = vmatprep.subr.bf16.mxu0 0
    %730 = vmatpush2.bf16.msra.mxu0 0
    %731 = vmatprep.subr.bf16.mxu0 0
    %732 = vmatpush2.bf16.msra.mxu0 0
    %733 = vmatprep.subr.bf16.mxu0 0
    %734 = vmatpush2.bf16.msra.mxu0 0
    %735 = vmatprep.subr.bf16.mxu0 0
    %736 = vmatpush2.bf16.msra.mxu0 0
    %737 = vmatprep.subr.bf16.mxu0 0
    %738 = vmatpush2.bf16.msra.mxu0 0
    %739 = vmatprep.subr.bf16.mxu0 0
    %740 = vmatpush2.bf16.msra.mxu0 0
    %741 = vmatprep.subr.bf16.mxu0 0
    %742 = vmatpush2.bf16.msra.mxu0 0
    %743 = vmatprep.subr.bf16.mxu0 0
    %744 = vmatpush2.bf16.msra.mxu0 %v582
    %745 = vmatprep.mubr.bf16.mxu0 %v560
    %746 = vmatmul.mubr.bf16.gmra.mxu0 %v145
    %v747 = vpop.f32.mrf.mxu0
    %v748 = vadd.f32 %v244, %v747
    %v749 = vpop.f32.mrf.mxu0
    %v750 = vpop.f32.mrf.mxu0
    %v751 = vadd.f32 %v244, %v750
    %v752 = vpop.f32.mrf.mxu0
    %753 = vdwg.mxu0
    %v754 = vpack.c.bf16 %v623, %v619
    %v755 = vpack.c.bf16 %v625, %v621
    %v756 = vpack.c.bf16 %v668, %v664
    %758 = vrot.lane.b32.xlu0 %v755, 56
    %v759 = vpop.permute.xlu0 %758
    %vm760 = vcmask 408576
    %v762 = vsel %vm760, %v754, 0
    %v765 = vsel %vm760, %v759, 0
    %767 = vmatprep.subr.bf16.mxu0 0
    %768 = vmatpush1.bf16.xpose.msra.mxu0 0
    %769 = vmatprep.subr.bf16.mxu0 0
    %770 = vmatpush1.bf16.xpose.msra.mxu0 0
    %771 = vmatprep.subr.bf16.mxu0 0
    %772 = vmatpush1.bf16.xpose.msra.mxu0 0
    %773 = vmatprep.subr.bf16.mxu0 0
    %774 = vmatpush1.bf16.xpose.msra.mxu0 0
    %775 = vmatprep.subr.bf16.mxu0 0
    %776 = vmatpush1.bf16.xpose.msra.mxu0 0
    %777 = vmatprep.subr.bf16.mxu0 0
    %778 = vmatpush1.bf16.xpose.msra.mxu0 0
    %779 = vmatprep.subr.bf16.mxu0 0
    %780 = vmatpush1.bf16.xpose.msra.mxu0 0
    %781 = vmatprep.subr.bf16.mxu0 0
    %782 = vmatpush1.bf16.xpose.msra.mxu0 %v765
    %783 = vmatprep.subr.bf16.mxu0 0
    %784 = vmatpush2.bf16.xpose.msra.mxu0 0
    %785 = vmatprep.subr.bf16.mxu0 0
    %786 = vmatpush2.bf16.xpose.msra.mxu0 0
    %787 = vmatprep.subr.bf16.mxu0 0
    %788 = vmatpush2.bf16.xpose.msra.mxu0 0
    %789 = vmatprep.subr.bf16.mxu0 0
    %790 = vmatpush2.bf16.xpose.msra.mxu0 0
    %791 = vmatprep.subr.bf16.mxu0 0
    %792 = vmatpush2.bf16.xpose.msra.mxu0 0
    %793 = vmatprep.subr.bf16.mxu0 0
    %794 = vmatpush2.bf16.xpose.msra.mxu0 0
    %795 = vmatprep.subr.bf16.mxu0 0
    %796 = vmatpush2.bf16.xpose.msra.mxu0 0
    %797 = vmatprep.subr.bf16.mxu0 0
    %798 = vmatpush2.bf16.xpose.msra.mxu0 0
    %799 = vmatprep.mubr.bf16.mxu0 0
    %800 = vmatmul.mubr.bf16.gmra.mxu0 %v762
    %v801 = vpop.f32.mrf.mxu0
    %v802 = vadd.f32 %v139, %v801
    %v803 = vpop.f32.mrf.mxu0
    %v804 = vpop.f32.mrf.mxu0
    %v805 = vadd.f32 %v140, %v804
    %v806 = vpop.f32.mrf.mxu0
    %807 = vdwg.mxu0
    %vm808 = vcmask 130048
    %v809 = vsel %vm808, %v802, -inf
    %810 = vmax.xlane.f32.xlu0 %v809
    %v811 = vpop.xlane.xlu0 %810
    %v812 = vsel %vm808, %v805, -inf
    %813 = vmax.xlane.f32.xlu0 %v812
    %v814 = vpop.xlane.xlu0 %813
    %v815 = vsub.f32 %v802, %v811
    %v816 = vsub.f32 %v805, %v814
    %v817 = vmul.f32 %v815, 1.442695
    %v818 = vpow.pop %v817
    %v819 = vmul.f32 %v816, 1.442695
    %v820 = vpow.pop %v819
    %v821 = vmul.f32 %v818, %v137
    %v822 = vmul.f32 %v820, %v138
    %v823 = vsel %vm808, %v821, 0.0
    %824 = vadd.xlane.f32.xlu0 %v823
    %v825 = vpop.xlane.xlu0 %824
    %v826 = vsel %vm808, %v822, 0.0
    %827 = vadd.xlane.f32.xlu0 %v826
    %v828 = vpop.xlane.xlu0 %827
    %vm829 = vcmp.eq.f32.partialorder %v825, 0.0
    %vm830 = vcmp.eq.f32.partialorder %v828, 0.0
    %v831 = vsel %vm829, 1.0, %v825
    %v832 = vsel %vm830, 1.0, %v828
    %v833 = vpack.c.bf16 %v822, %v821
    %835 = vrot.lane.b32.xlu0 %v756, 112
    %v836 = vpop.permute.xlu0 %835
    %v839 = vsel %vm808, %v833, 0
    %841 = vmatprep.subr.bf16.mxu0 0
    %842 = vmatpush1.bf16.msra.mxu0 0
    %843 = vmatprep.subr.bf16.mxu0 0
    %844 = vmatpush1.bf16.msra.mxu0 0
    %845 = vmatprep.subr.bf16.mxu0 0
    %846 = vmatpush1.bf16.msra.mxu0 0
    %847 = vmatprep.subr.bf16.mxu0 0
    %848 = vmatpush1.bf16.msra.mxu0 0
    %849 = vmatprep.subr.bf16.mxu0 0
    %850 = vmatpush1.bf16.msra.mxu0 0
    %851 = vmatprep.subr.bf16.mxu0 0
    %852 = vmatpush1.bf16.msra.mxu0 0
    %853 = vmatprep.subr.bf16.mxu0 0
    %854 = vmatpush1.bf16.msra.mxu0 0
    %855 = vmatprep.subr.bf16.mxu0 0
    %856 = vmatpush1.bf16.msra.mxu0 %v836
    %857 = vmatprep.subr.bf16.mxu0 0
    %858 = vmatpush2.bf16.msra.mxu0 0
    %859 = vmatprep.subr.bf16.mxu0 0
    %860 = vmatpush2.bf16.msra.mxu0 0
    %861 = vmatprep.subr.bf16.mxu0 0
    %862 = vmatpush2.bf16.msra.mxu0 0
    %863 = vmatprep.subr.bf16.mxu0 0
    %864 = vmatpush2.bf16.msra.mxu0 0
    %865 = vmatprep.subr.bf16.mxu0 0
    %866 = vmatpush2.bf16.msra.mxu0 0
    %867 = vmatprep.subr.bf16.mxu0 0
    %868 = vmatpush2.bf16.msra.mxu0 0
    %869 = vmatprep.subr.bf16.mxu0 0
    %870 = vmatpush2.bf16.msra.mxu0 0
    %871 = vmatprep.subr.bf16.mxu0 0
    %872 = vmatpush2.bf16.msra.mxu0 0
    %873 = vmatprep.mubr.bf16.mxu0 0
    %874 = vmatmul.mubr.bf16.gmra.mxu0 %v839
    %v875 = vpop.f32.mrf.mxu0
    %v876 = vadd.f32 0.0, %v875
    %v877 = vpop.f32.mrf.mxu0
    %v878 = vpop.f32.mrf.mxu0
    %v879 = vadd.f32 0.0, %v878
    %v880 = vpop.f32.mrf.mxu0
    %881 = vdwg.mxu0
    %v882 = vrcp.pop %v831
    %v883 = vrcp.pop %v832
    %v884 = vmul.f32 %v876, %v882
    %v885 = vmul.f32 %v879, %v883
    %890 = vrot.lane.b32.xlu0 %v705, 40
    %v891 = vpop.permute.xlu0 %890
    %892 = vrot.lane.b32.xlu0 %v707, 40
    %v893 = vpop.permute.xlu0 %892
    %894 = vrot.lane.b32.xlu0 %v709, 40
    %v895 = vpop.permute.xlu0 %894
    %896 = vrot.lane.b32.xlu0 %v711, 40
    %v897 = vpop.permute.xlu0 %896
    %vm898 = vcmask 326656
    %v899 = vsel %vm898, %v891, %v893
    %v900 = vsel %vm898, %v895, %v897
    %v903 = vadd.f32 %v884, %v899
    %v904 = vadd.f32 %v885, %v900
    %v905 = vpack.c.bf16 %v666, %v662
    %907 = vrot.lane.b32.xlu0 %v754, 78
    %v908 = vpop.permute.xlu0 %907
    %910 = vrot.lane.b32.xlu0 %v755, 6
    %v911 = vpop.permute.xlu0 %910
    %912 = vrot.lane.b32.xlu0 %v905, 6
    %v913 = vpop.permute.xlu0 %912
    %vm914 = vcmask 48128
    %v915 = vsel %vm914, %v911, %v913
    %v917 = vsel %vm760, %v908, 0
    %v920 = vsel %vm760, %v915, 0
    %922 = vmatprep.subr.bf16.mxu0 0
    %923 = vmatpush1.bf16.xpose.msra.mxu0 0
    %924 = vmatprep.subr.bf16.mxu0 0
    %925 = vmatpush1.bf16.xpose.msra.mxu0 0
    %926 = vmatprep.subr.bf16.mxu0 0
    %927 = vmatpush1.bf16.xpose.msra.mxu0 0
    %928 = vmatprep.subr.bf16.mxu0 0
    %929 = vmatpush1.bf16.xpose.msra.mxu0 0
    %930 = vmatprep.subr.bf16.mxu0 0
    %931 = vmatpush1.bf16.xpose.msra.mxu0 0
    %932 = vmatprep.subr.bf16.mxu0 0
    %933 = vmatpush1.bf16.xpose.msra.mxu0 0
    %934 = vmatprep.subr.bf16.mxu0 0
    %935 = vmatpush1.bf16.xpose.msra.mxu0 0
    %936 = vmatprep.subr.bf16.mxu0 0
    %937 = vmatpush1.bf16.xpose.msra.mxu0 %v920
    %938 = vmatprep.subr.bf16.mxu0 0
    %939 = vmatpush2.bf16.xpose.msra.mxu0 0
    %940 = vmatprep.subr.bf16.mxu0 0
    %941 = vmatpush2.bf16.xpose.msra.mxu0 0
    %942 = vmatprep.subr.bf16.mxu0 0
    %943 = vmatpush2.bf16.xpose.msra.mxu0 0
    %944 = vmatprep.subr.bf16.mxu0 0
    %945 = vmatpush2.bf16.xpose.msra.mxu0 0
    %946 = vmatprep.subr.bf16.mxu0 0
    %947 = vmatpush2.bf16.xpose.msra.mxu0 0
    %948 = vmatprep.subr.bf16.mxu0 0
    %949 = vmatpush2.bf16.xpose.msra.mxu0 0
    %950 = vmatprep.subr.bf16.mxu0 0
    %951 = vmatpush2.bf16.xpose.msra.mxu0 0
    %952 = vmatprep.subr.bf16.mxu0 0
    %953 = vmatpush2.bf16.xpose.msra.mxu0 0
    %954 = vmatprep.mubr.bf16.mxu0 0
    %955 = vmatmul.mubr.bf16.gmra.mxu0 %v917
    %v956 = vpop.f32.mrf.mxu0
    %v957 = vadd.f32 %v139, %v956
    %v958 = vpop.f32.mrf.mxu0
    %v959 = vpop.f32.mrf.mxu0
    %v960 = vadd.f32 %v140, %v959
    %v961 = vpop.f32.mrf.mxu0
    %962 = vdwg.mxu0
    %v963 = vsel %vm808, %v957, -inf
    %964 = vmax.xlane.f32.xlu0 %v963
    %v965 = vpop.xlane.xlu0 %964
    %v966 = vsel %vm808, %v960, -inf
    %967 = vmax.xlane.f32.xlu0 %v966
    %v968 = vpop.xlane.xlu0 %967
    %v969 = vsub.f32 %v957, %v965
    %v970 = vsub.f32 %v960, %v968
    %v971 = vmul.f32 %v969, 1.442695
    %v972 = vpow.pop %v971
    %v973 = vmul.f32 %v970, 1.442695
    %v974 = vpow.pop %v973
    %v975 = vmul.f32 %v972, %v137
    %v976 = vmul.f32 %v974, %v138
    %v977 = vsel %vm808, %v975, 0.0
    %978 = vadd.xlane.f32.xlu0 %v977
    %v979 = vpop.xlane.xlu0 %978
    %v980 = vsel %vm808, %v976, 0.0
    %981 = vadd.xlane.f32.xlu0 %v980
    %v982 = vpop.xlane.xlu0 %981
    %vm983 = vcmp.eq.f32.partialorder %v979, 0.0
    %vm984 = vcmp.eq.f32.partialorder %v982, 0.0
    %v985 = vsel %vm983, 1.0, %v979
    %v986 = vsel %vm984, 1.0, %v982
    %v987 = vpack.c.bf16 %v976, %v975
    %988 = vrot.lane.b32.xlu0 %v756, 62
    %v989 = vpop.permute.xlu0 %988
    %v992 = vsel %vm808, %v987, 0
    %994 = vmatprep.subr.bf16.mxu0 0
    %995 = vmatpush1.bf16.msra.mxu0 0
    %996 = vmatprep.subr.bf16.mxu0 0
    %997 = vmatpush1.bf16.msra.mxu0 0
    %998 = vmatprep.subr.bf16.mxu0 0
    %999 = vmatpush1.bf16.msra.mxu0 0
    %1000 = vmatprep.subr.bf16.mxu0 0
    %1001 = vmatpush1.bf16.msra.mxu0 0
    %1002 = vmatprep.subr.bf16.mxu0 0
    %1003 = vmatpush1.bf16.msra.mxu0 0
    %1004 = vmatprep.subr.bf16.mxu0 0
    %1005 = vmatpush1.bf16.msra.mxu0 0
    %1006 = vmatprep.subr.bf16.mxu0 0
    %1007 = vmatpush1.bf16.msra.mxu0 0
    %1008 = vmatprep.subr.bf16.mxu0 0
    %1009 = vmatpush1.bf16.msra.mxu0 %v989
    %1010 = vmatprep.subr.bf16.mxu0 0
    %1011 = vmatpush2.bf16.msra.mxu0 0
    %1012 = vmatprep.subr.bf16.mxu0 0
    %1013 = vmatpush2.bf16.msra.mxu0 0
    %1014 = vmatprep.subr.bf16.mxu0 0
    %1015 = vmatpush2.bf16.msra.mxu0 0
    %1016 = vmatprep.subr.bf16.mxu0 0
    %1017 = vmatpush2.bf16.msra.mxu0 0
    %1018 = vmatprep.subr.bf16.mxu0 0
    %1019 = vmatpush2.bf16.msra.mxu0 0
    %1020 = vmatprep.subr.bf16.mxu0 0
    %1021 = vmatpush2.bf16.msra.mxu0 0
    %1022 = vmatprep.subr.bf16.mxu0 0
    %1023 = vmatpush2.bf16.msra.mxu0 0
    %1024 = vmatprep.subr.bf16.mxu0 0
    %1025 = vmatpush2.bf16.msra.mxu0 0
    %1026 = vmatprep.mubr.bf16.mxu0 0
    %1027 = vmatmul.mubr.bf16.gmra.mxu0 %v992
    %v1028 = vpop.f32.mrf.mxu0
    %v1029 = vadd.f32 0.0, %v1028
    %v1030 = vpop.f32.mrf.mxu0
    %v1031 = vpop.f32.mrf.mxu0
    %v1032 = vadd.f32 0.0, %v1031
    %v1033 = vpop.f32.mrf.mxu0
    %1034 = vdwg.mxu0
    %v1035 = vrcp.pop %v985
    %v1036 = vrcp.pop %v986
    %v1037 = vmul.f32 %v1029, %v1035
    %v1038 = vmul.f32 %v1032, %v1036
    %1039 = vrot.lane.b32.xlu0 %v707, 118
    %v1040 = vpop.permute.xlu0 %1039
    %1041 = vrot.lane.b32.xlu0 %v711, 118
    %v1042 = vpop.permute.xlu0 %1041
    %v1045 = vadd.f32 %v1037, %v1040
    %v1046 = vadd.f32 %v1038, %v1042
    %v1047 = vpack.c.bf16 %v709, %v705
    %1048 = vrot.lane.b32.xlu0 %v754, 28
    %v1049 = vpop.permute.xlu0 %1048
    %1050 = vrot.lane.b32.xlu0 %v755, 28
    %v1051 = vpop.permute.xlu0 %1050
    %vm1052 = vcmask 228352
    %v1053 = vsel %vm1052, %v1049, %v1051
    %1054 = vrot.lane.b32.xlu0 %v905, 84
    %v1055 = vpop.permute.xlu0 %1054
    %v1057 = vsel %vm760, %v1053, 0
    %v1060 = vsel %vm760, %v1055, 0
    %1062 = vmatprep.subr.bf16.mxu0 0
    %1063 = vmatpush1.bf16.xpose.msra.mxu0 0
    %1064 = vmatprep.subr.bf16.mxu0 0
    %1065 = vmatpush1.bf16.xpose.msra.mxu0 0
    %1066 = vmatprep.subr.bf16.mxu0 0
    %1067 = vmatpush1.bf16.xpose.msra.mxu0 0
    %1068 = vmatprep.subr.bf16.mxu0 0
    %1069 = vmatpush1.bf16.xpose.msra.mxu0 0
    %1070 = vmatprep.subr.bf16.mxu0 0
    %1071 = vmatpush1.bf16.xpose.msra.mxu0 0
    %1072 = vmatprep.subr.bf16.mxu0 0
    %1073 = vmatpush1.bf16.xpose.msra.mxu0 0
    %1074 = vmatprep.subr.bf16.mxu0 0
    %1075 = vmatpush1.bf16.xpose.msra.mxu0 0
    %1076 = vmatprep.subr.bf16.mxu0 0
    %1077 = vmatpush1.bf16.xpose.msra.mxu0 %v1060
    %1078 = vmatprep.subr.bf16.mxu0 0
    %1079 = vmatpush2.bf16.xpose.msra.mxu0 0
    %1080 = vmatprep.subr.bf16.mxu0 0
    %1081 = vmatpush2.bf16.xpose.msra.mxu0 0
    %1082 = vmatprep.subr.bf16.mxu0 0
    %1083 = vmatpush2.bf16.xpose.msra.mxu0 0
    %1084 = vmatprep.subr.bf16.mxu0 0
    %1085 = vmatpush2.bf16.xpose.msra.mxu0 0
    %1086 = vmatprep.subr.bf16.mxu0 0
    %1087 = vmatpush2.bf16.xpose.msra.mxu0 0
    %1088 = vmatprep.subr.bf16.mxu0 0
    %1089 = vmatpush2.bf16.xpose.msra.mxu0 0
    %1090 = vmatprep.subr.bf16.mxu0 0
    %1091 = vmatpush2.bf16.xpose.msra.mxu0 0
    %1092 = vmatprep.subr.bf16.mxu0 0
    %1093 = vmatpush2.bf16.xpose.msra.mxu0 0
    %1094 = vmatprep.mubr.bf16.mxu0 0
    %1095 = vmatmul.mubr.bf16.gmra.mxu0 %v1057
    %v1096 = vpop.f32.mrf.mxu0
    %v1097 = vadd.f32 %v139, %v1096
    %v1098 = vpop.f32.mrf.mxu0
    %v1099 = vpop.f32.mrf.mxu0
    %v1100 = vadd.f32 %v140, %v1099
    %v1101 = vpop.f32.mrf.mxu0
    %1102 = vdwg.mxu0
    %v1103 = vsel %vm808, %v1097, -inf
    %1104 = vmax.xlane.f32.xlu0 %v1103
    %v1105 = vpop.xlane.xlu0 %1104
    %v1106 = vsel %vm808, %v1100, -inf
    %1107 = vmax.xlane.f32.xlu0 %v1106
    %v1108 = vpop.xlane.xlu0 %1107
    %v1109 = vsub.f32 %v1097, %v1105
    %v1110 = vsub.f32 %v1100, %v1108
    %v1111 = vmul.f32 %v1109, 1.442695
    %v1112 = vpow.pop %v1111
    %v1113 = vmul.f32 %v1110, 1.442695
    %v1114 = vpow.pop %v1113
    %v1115 = vmul.f32 %v1112, %v137
    %v1116 = vmul.f32 %v1114, %v138
    %v1117 = vsel %vm808, %v1115, 0.0
    %1118 = vadd.xlane.f32.xlu0 %v1117
    %v1119 = vpop.xlane.xlu0 %1118
    %v1120 = vsel %vm808, %v1116, 0.0
    %1121 = vadd.xlane.f32.xlu0 %v1120
    %v1122 = vpop.xlane.xlu0 %1121
    %vm1123 = vcmp.eq.f32.partialorder %v1119, 0.0
    %vm1124 = vcmp.eq.f32.partialorder %v1122, 0.0
    %v1125 = vsel %vm1123, 1.0, %v1119
    %v1126 = vsel %vm1124, 1.0, %v1122
    %v1127 = vpack.c.bf16 %v1116, %v1115
    %1129 = vrot.lane.b32.xlu0 %v756, 12
    %v1130 = vpop.permute.xlu0 %1129
    %1131 = vrot.lane.b32.xlu0 %v1047, 12
    %v1132 = vpop.permute.xlu0 %1131
    %vm1133 = vcmask 97280
    %v1134 = vsel %vm1133, %v1130, %v1132
    %v1137 = vsel %vm808, %v1127, 0
    %1139 = vmatprep.subr.bf16.mxu0 0
    %1140 = vmatpush1.bf16.msra.mxu0 0
    %1141 = vmatprep.subr.bf16.mxu0 0
    %1142 = vmatpush1.bf16.msra.mxu0 0
    %1143 = vmatprep.subr.bf16.mxu0 0
    %1144 = vmatpush1.bf16.msra.mxu0 0
    %1145 = vmatprep.subr.bf16.mxu0 0
    %1146 = vmatpush1.bf16.msra.mxu0 0
    %1147 = vmatprep.subr.bf16.mxu0 0
    %1148 = vmatpush1.bf16.msra.mxu0 0
    %1149 = vmatprep.subr.bf16.mxu0 0
    %1150 = vmatpush1.bf16.msra.mxu0 0
    %1151 = vmatprep.subr.bf16.mxu0 0
    %1152 = vmatpush1.bf16.msra.mxu0 0
    %1153 = vmatprep.subr.bf16.mxu0 0
    %1154 = vmatpush1.bf16.msra.mxu0 %v1134
    %1155 = vmatprep.subr.bf16.mxu0 0
    %1156 = vmatpush2.bf16.msra.mxu0 0
    %1157 = vmatprep.subr.bf16.mxu0 0
    %1158 = vmatpush2.bf16.msra.mxu0 0
    %1159 = vmatprep.subr.bf16.mxu0 0
    %1160 = vmatpush2.bf16.msra.mxu0 0
    %1161 = vmatprep.subr.bf16.mxu0 0
    %1162 = vmatpush2.bf16.msra.mxu0 0
    %1163 = vmatprep.subr.bf16.mxu0 0
    %1164 = vmatpush2.bf16.msra.mxu0 0
    %1165 = vmatprep.subr.bf16.mxu0 0
    %1166 = vmatpush2.bf16.msra.mxu0 0
    %1167 = vmatprep.subr.bf16.mxu0 0
    %1168 = vmatpush2.bf16.msra.mxu0 0
    %1169 = vmatprep.subr.bf16.mxu0 0
    %1170 = vmatpush2.bf16.msra.mxu0 0
    %1171 = vmatprep.mubr.bf16.mxu0 0
    %1172 = vmatmul.mubr.bf16.gmra.mxu0 %v1137
    %v1173 = vpop.f32.mrf.mxu0
    %v1174 = vadd.f32 0.0, %v1173
    %v1175 = vpop.f32.mrf.mxu0
    %v1176 = vpop.f32.mrf.mxu0
    %v1177 = vadd.f32 0.0, %v1176
    %v1178 = vpop.f32.mrf.mxu0
    %1179 = vdwg.mxu0
    %v1180 = vrcp.pop %v1125
    %v1181 = vrcp.pop %v1126
    %v1182 = vmul.f32 %v1174, %v1180
    %v1183 = vmul.f32 %v1177, %v1181
    %1184 = vrot.lane.b32.xlu0 %v707, 68
    %v1185 = vpop.permute.xlu0 %1184
    %1186 = vrot.lane.b32.xlu0 %v711, 68
    %v1187 = vpop.permute.xlu0 %1186
    %v1190 = vadd.f32 %v1182, %v1185
    %v1191 = vadd.f32 %v1183, %v1187
    %1192 = vrot.lane.b32.xlu0 %v755, 106
    %v1193 = vpop.permute.xlu0 %1192
    %1194 = vrot.lane.b32.xlu0 %v905, 34
    %v1195 = vpop.permute.xlu0 %1194
    %1196 = vrot.lane.b32.xlu0 %v756, 34
    %v1197 = vpop.permute.xlu0 %1196
    %vm1198 = vcmask 277504
    %v1199 = vsel %vm1198, %v1195, %v1197
    %v1201 = vsel %vm760, %v1193, 0
    %v1204 = vsel %vm760, %v1199, 0
    %1206 = vmatprep.subr.bf16.mxu0 0
    %1207 = vmatpush1.bf16.xpose.msra.mxu0 0
    %1208 = vmatprep.subr.bf16.mxu0 0
    %1209 = vmatpush1.bf16.xpose.msra.mxu0 0
    %1210 = vmatprep.subr.bf16.mxu0 0
    %1211 = vmatpush1.bf16.xpose.msra.mxu0 0
    %1212 = vmatprep.subr.bf16.mxu0 0
    %1213 = vmatpush1.bf16.xpose.msra.mxu0 0
    %1214 = vmatprep.subr.bf16.mxu0 0
    %1215 = vmatpush1.bf16.xpose.msra.mxu0 0
    %1216 = vmatprep.subr.bf16.mxu0 0
    %1217 = vmatpush1.bf16.xpose.msra.mxu0 0
    %1218 = vmatprep.subr.bf16.mxu0 0
    %1219 = vmatpush1.bf16.xpose.msra.mxu0 0
    %1220 = vmatprep.subr.bf16.mxu0 0
    %1221 = vmatpush1.bf16.xpose.msra.mxu0 %v1204
    %1222 = vmatprep.subr.bf16.mxu0 0
    %1223 = vmatpush2.bf16.xpose.msra.mxu0 0
    %1224 = vmatprep.subr.bf16.mxu0 0
    %1225 = vmatpush2.bf16.xpose.msra.mxu0 0
    %1226 = vmatprep.subr.bf16.mxu0 0
    %1227 = vmatpush2.bf16.xpose.msra.mxu0 0
    %1228 = vmatprep.subr.bf16.mxu0 0
    %1229 = vmatpush2.bf16.xpose.msra.mxu0 0
    %1230 = vmatprep.subr.bf16.mxu0 0
    %1231 = vmatpush2.bf16.xpose.msra.mxu0 0
    %1232 = vmatprep.subr.bf16.mxu0 0
    %1233 = vmatpush2.bf16.xpose.msra.mxu0 0
    %1234 = vmatprep.subr.bf16.mxu0 0
    %1235 = vmatpush2.bf16.xpose.msra.mxu0 0
    %1236 = vmatprep.subr.bf16.mxu0 0
    %1237 = vmatpush2.bf16.xpose.msra.mxu0 0
    %1238 = vmatprep.mubr.bf16.mxu0 0
    %1239 = vmatmul.mubr.bf16.gmra.mxu0 %v1201
    %v1240 = vpop.f32.mrf.mxu0
    %v1241 = vadd.f32 %v139, %v1240
    %v1242 = vpop.f32.mrf.mxu0
    %v1243 = vpop.f32.mrf.mxu0
    %v1244 = vadd.f32 %v140, %v1243
    %v1245 = vpop.f32.mrf.mxu0
    %1246 = vdwg.mxu0
    %v1247 = vsel %vm808, %v1241, -inf
    %1248 = vmax.xlane.f32.xlu0 %v1247
    %v1249 = vpop.xlane.xlu0 %1248
    %v1250 = vsel %vm808, %v1244, -inf
    %1251 = vmax.xlane.f32.xlu0 %v1250
    %v1252 = vpop.xlane.xlu0 %1251
    %v1253 = vsub.f32 %v1241, %v1249
    %v1254 = vsub.f32 %v1244, %v1252
    %v1255 = vmul.f32 %v1253, 1.442695
    %v1256 = vpow.pop %v1255
    %v1257 = vmul.f32 %v1254, 1.442695
    %v1258 = vpow.pop %v1257
    %v1259 = vmul.f32 %v1256, %v137
    %v1260 = vmul.f32 %v1258, %v138
    %v1261 = vsel %vm808, %v1259, 0.0
    %1262 = vadd.xlane.f32.xlu0 %v1261
    %v1263 = vpop.xlane.xlu0 %1262
    %v1264 = vsel %vm808, %v1260, 0.0
    %1265 = vadd.xlane.f32.xlu0 %v1264
    %v1266 = vpop.xlane.xlu0 %1265
    %vm1267 = vcmp.eq.f32.partialorder %v1263, 0.0
    %vm1268 = vcmp.eq.f32.partialorder %v1266, 0.0
    %v1269 = vsel %vm1267, 1.0, %v1263
    %v1270 = vsel %vm1268, 1.0, %v1266
    %v1271 = vpack.c.bf16 %v1260, %v1259
    %1272 = vrot.lane.b32.xlu0 %v1047, 90
    %v1273 = vpop.permute.xlu0 %1272
    %v1276 = vsel %vm808, %v1271, 0
    %1278 = vmatprep.subr.bf16.mxu0 0
    %1279 = vmatpush1.bf16.msra.mxu0 0
    %1280 = vmatprep.subr.bf16.mxu0 0
    %1281 = vmatpush1.bf16.msra.mxu0 0
    %1282 = vmatprep.subr.bf16.mxu0 0
    %1283 = vmatpush1.bf16.msra.mxu0 0
    %1284 = vmatprep.subr.bf16.mxu0 0
    %1285 = vmatpush1.bf16.msra.mxu0 0
    %1286 = vmatprep.subr.bf16.mxu0 0
    %1287 = vmatpush1.bf16.msra.mxu0 0
    %1288 = vmatprep.subr.bf16.mxu0 0
    %1289 = vmatpush1.bf16.msra.mxu0 0
    %1290 = vmatprep.subr.bf16.mxu0 0
    %1291 = vmatpush1.bf16.msra.mxu0 0
    %1292 = vmatprep.subr.bf16.mxu0 0
    %1293 = vmatpush1.bf16.msra.mxu0 %v1273
    %1294 = vmatprep.subr.bf16.mxu0 0
    %1295 = vmatpush2.bf16.msra.mxu0 0
    %1296 = vmatprep.subr.bf16.mxu0 0
    %1297 = vmatpush2.bf16.msra.mxu0 0
    %1298 = vmatprep.subr.bf16.mxu0 0
    %1299 = vmatpush2.bf16.msra.mxu0 0
    %1300 = vmatprep.subr.bf16.mxu0 0
    %1301 = vmatpush2.bf16.msra.mxu0 0
    %1302 = vmatprep.subr.bf16.mxu0 0
    %1303 = vmatpush2.bf16.msra.mxu0 0
    %1304 = vmatprep.subr.bf16.mxu0 0
    %1305 = vmatpush2.bf16.msra.mxu0 0
    %1306 = vmatprep.subr.bf16.mxu0 0
    %1307 = vmatpush2.bf16.msra.mxu0 0
    %1308 = vmatprep.subr.bf16.mxu0 0
    %1309 = vmatpush2.bf16.msra.mxu0 0
    %1310 = vmatprep.mubr.bf16.mxu0 0
    %1311 = vmatmul.mubr.bf16.gmra.mxu0 %v1276
    %v1312 = vpop.f32.mrf.mxu0
    %v1313 = vadd.f32 0.0, %v1312
    %v1314 = vpop.f32.mrf.mxu0
    %v1315 = vpop.f32.mrf.mxu0
    %v1316 = vadd.f32 0.0, %v1315
    %v1317 = vpop.f32.mrf.mxu0
    %1318 = vdwg.mxu0
    %v1319 = vrcp.pop %v1269
    %v1320 = vrcp.pop %v1270
    %v1321 = vmul.f32 %v1313, %v1319
    %v1322 = vmul.f32 %v1316, %v1320
    %1325 = vrot.lane.b32.xlu0 %v707, 18
    %v1326 = vpop.permute.xlu0 %1325
    %1327 = vrot.lane.b32.xlu0 %v748, 18
    %v1328 = vpop.permute.xlu0 %1327
    %1329 = vrot.lane.b32.xlu0 %v711, 18
    %v1330 = vpop.permute.xlu0 %1329
    %1331 = vrot.lane.b32.xlu0 %v751, 18
    %v1332 = vpop.permute.xlu0 %1331
    %vm1333 = vcmask 146432
    %v1334 = vsel %vm1333, %v1326, %v1328
    %v1335 = vsel %vm1333, %v1330, %v1332
    %v1338 = vadd.f32 %v1321, %v1334
    %v1339 = vadd.f32 %v1322, %v1335
    %1342 = vrot.lane.b32.xlu0 %v1045, 50
    %v1343 = vpop.permute.xlu0 %1342
    %1344 = vrot.lane.b32.xlu0 %v1046, 50
    %v1345 = vpop.permute.xlu0 %1344
    %1350 = vrot.lane.b32.xlu0 %v1190, 100
    %v1351 = vpop.permute.xlu0 %1350
    %1352 = vrot.lane.b32.xlu0 %v1191, 100
    %v1353 = vpop.permute.xlu0 %1352
    %1358 = vrot.lane.b32.xlu0 %v1338, 22
    %v1359 = vpop.permute.xlu0 %1358
    %1360 = vrot.lane.b32.xlu0 %v1339, 22
    %v1361 = vpop.permute.xlu0 %1360
    %v1364 = vsel %vm760, %v903, %v1343
    %v1365 = vsel %vm760, %v904, %v1345
    %vm1366 = vcmask 818176
    %v1367 = vsel %vm1366, %v1364, %v1351
    %v1368 = vsel %vm1366, %v1365, %v1353
    %vm1369 = vcmask 179200
    %v1370 = vsel %vm1369, %v1351, %v1359
    %v1371 = vsel %vm1369, %v1353, %v1361
    %vm1372 = vcmp.ge.f32.partialorder %v1367, 0.0
    %vm1373 = vcmp.ge.f32.partialorder %v1370, 0.0
    %vm1374 = vcmp.ge.f32.partialorder %v1368, 0.0
    %vm1375 = vcmp.ge.f32.partialorder %v1371, 0.0
    %v1376 = vmul.f32 %v1367, 0.1
    %v1377 = vmul.f32 %v1370, 0.1
    %v1378 = vmul.f32 %v1368, 0.1
    %v1379 = vmul.f32 %v1371, 0.1
    %v1380 = vsel %vm1372, %v1367, %v1376
    %v1381 = vsel %vm1373, %v1370, %v1377
    %v1382 = vsel %vm1374, %v1368, %v1378
    %v1383 = vsel %vm1375, %v1371, %v1379
    %v1384 = vpack.c.bf16 %v1382, %v1380
    %v1385 = vpack.c.bf16 %v1383, %v1381
    %v1386 = vld [vmem:[#allocation5] sm:$0xff]
    %v1387 = vld [vmem:[#allocation5 + $0x8] sm:$0xff]
    %v1388 = vld [vmem:[#allocation5 + $0x10] sm:$0xff]
    %v1389 = vld [vmem:[#allocation5 + $0x18] sm:$0xff]
    %v1390 = vld [vmem:[#allocation5 + $0x20] sm:$0xff]
    %v1391 = vld [vmem:[#allocation5 + $0x28] sm:$0xff]
    %v1392 = vld [vmem:[#allocation5 + $0x30] sm:$0xff]
    %v1393 = vld [vmem:[#allocation5 + $0x38] sm:$0xff]
    %v1394 = vld [vmem:[#allocation5 + $0x40] sm:$0xff]
    %v1395 = vld [vmem:[#allocation5 + $0x48] sm:$0xff]
    %v1396 = vld [vmem:[#allocation5 + $0x50] sm:$0xff]
    %v1397 = vld [vmem:[#allocation5 + $0x58] sm:$0xff]
    %v1398 = vld [vmem:[#allocation5 + $0x60] sm:$0xff]
    %v1399 = vld [vmem:[#allocation5 + $0x68] sm:$0xff]
    %v1400 = vld [vmem:[#allocation5 + $0x70] sm:$0xff]
    %v1401 = vld [vmem:[#allocation5 + $0x78] sm:$0xff]
    %v1402 = vld [vmem:[#allocation5 + $0x80] sm:$0xff]
    %v1403 = vld [vmem:[#allocation5 + $0x88] sm:$0xff]
    %v1404 = vld [vmem:[#allocation5 + $0x90] sm:$0xff]
    %v1405 = vld [vmem:[#allocation5 + $0x98] sm:$0xff]
    %v1406 = vld [vmem:[#allocation5 + $0xa0] sm:$0xff]
    %v1407 = vld [vmem:[#allocation5 + $0xa8] sm:$0xff]
    %v1408 = vld [vmem:[#allocation5 + $0xb0] sm:$0xff]
    %v1409 = vld [vmem:[#allocation5 + $0xb8] sm:$0xff]
    %v1410 = vld [vmem:[#allocation5 + $0xc0] sm:$0xff]
    %v1411 = vld [vmem:[#allocation5 + $0xc8] sm:$0xff]
    %v1412 = vld [vmem:[#allocation5 + $0xd0] sm:$0xff]
    %v1413 = vld [vmem:[#allocation5 + $0xd8] sm:$0xff]
    %v1414 = vld [vmem:[#allocation5 + $0xe0] sm:$0xff]
    %v1415 = vld [vmem:[#allocation5 + $0xe8] sm:$0xff]
    %v1416 = vld [vmem:[#allocation5 + $0xf0] sm:$0xff]
    %v1417 = vld [vmem:[#allocation5 + $0xf8] sm:$0xff]
    %v1418 = vld [vmem:[#allocation5 + $0x100] sm:$0xff]
    %v1419 = vld [vmem:[#allocation5 + $0x108] sm:$0xff]
    %v1420 = vld [vmem:[#allocation5 + $0x110] sm:$0xff]
    %v1421 = vld [vmem:[#allocation5 + $0x118] sm:$0xff]
    %v1422 = vld [vmem:[#allocation5 + $0x120] sm:$0xff]
    %v1423 = vld [vmem:[#allocation5 + $0x128] sm:$0xff]
    %v1424 = vld [vmem:[#allocation5 + $0x130] sm:$0xff]
    %v1425 = vld [vmem:[#allocation5 + $0x138] sm:$0xff]
    %v1426 = vld [vmem:[#allocation5 + $0x140] sm:$0xff]
    %v1427 = vld [vmem:[#allocation5 + $0x148] sm:$0xff]
    %v1428 = vld [vmem:[#allocation5 + $0x150] sm:$0xff]
    %v1429 = vld [vmem:[#allocation5 + $0x158] sm:$0xff]
    %v1430 = vld [vmem:[#allocation5 + $0x160] sm:$0xff]
    %v1431 = vld [vmem:[#allocation5 + $0x168] sm:$0xff]
    %v1432 = vld [vmem:[#allocation5 + $0x170] sm:$0xff]
    %v1433 = vld [vmem:[#allocation5 + $0x178] sm:$0xff]
    %v1434 = vld [vmem:[#allocation5 + $0x180] sm:$0xff]
    %v1435 = vld [vmem:[#allocation5 + $0x188] sm:$0xff]
    %v1436 = vld [vmem:[%s5] sm:$0xf]
    %v1438 = vlaneseq
    %v1439 = vshrl.u32 %v1438, 7
    %v1440 = vsub.s32 0, %v1439
    %v1441 = vrot.slane %v1436, %v1440
    %v1442 = vlaneseq
    %v1443 = vshrl.u32 %v1442, 7
    %v1444 = vsub.s32 1, %v1443
    %v1445 = vrot.slane %v1436, %v1444
    %v1446 = vlaneseq
    %v1447 = vshrl.u32 %v1446, 7
    %v1448 = vsub.s32 2, %v1447
    %v1449 = vrot.slane %v1436, %v1448
    %v1450 = vlaneseq
    %v1451 = vshrl.u32 %v1450, 7
    %v1452 = vsub.s32 3, %v1451
    %v1453 = vrot.slane %v1436, %v1452
    %v1508 = vunpack.c.l.b16 %v1386
    %v1509 = vunpack.c.h.b16 %v1386
    %v1510 = vunpack.c.l.b16 %v1387
    %v1511 = vunpack.c.h.b16 %v1387
    %v1512 = vunpack.c.l.b16 %v1388
    %v1513 = vunpack.c.h.b16 %v1388
    %v1514 = vunpack.c.l.b16 %v1389
    %v1515 = vunpack.c.h.b16 %v1389
    %v1516 = vunpack.c.l.b16 %v1390
    %v1517 = vunpack.c.h.b16 %v1390
    %v1518 = vunpack.c.l.b16 %v1391
    %v1519 = vunpack.c.h.b16 %v1391
    %v1520 = vunpack.c.l.b16 %v1392
    %v1521 = vunpack.c.h.b16 %v1392
    %v1522 = vunpack.c.l.b16 %v1393
    %v1523 = vunpack.c.h.b16 %v1393
    %v1524 = vunpack.c.l.b16 %v1394
    %v1525 = vunpack.c.h.b16 %v1394
    %v1526 = vunpack.c.l.b16 %v1395
    %v1527 = vunpack.c.h.b16 %v1395
    %v1528 = vunpack.c.l.b16 %v1396
    %v1529 = vunpack.c.h.b16 %v1396
    %v1530 = vunpack.c.l.b16 %v1397
    %v1531 = vunpack.c.h.b16 %v1397
    %v1532 = vunpack.c.l.b16 %v1398
    %v1533 = vunpack.c.h.b16 %v1398
    %v1534 = vunpack.c.l.b16 %v1399
    %v1535 = vunpack.c.h.b16 %v1399
    %v1536 = vunpack.c.l.b16 %v1400
    %v1537 = vunpack.c.h.b16 %v1400
    %v1538 = vunpack.c.l.b16 %v1401
    %v1539 = vunpack.c.h.b16 %v1401
    %v1540 = vunpack.c.l.b16 %v1402
    %v1541 = vunpack.c.h.b16 %v1402
    %v1542 = vunpack.c.l.b16 %v1403
    %v1543 = vunpack.c.h.b16 %v1403
    %v1544 = vunpack.c.l.b16 %v1404
    %v1545 = vunpack.c.h.b16 %v1404
    %v1546 = vunpack.c.l.b16 %v1405
    %v1547 = vunpack.c.h.b16 %v1405
    %v1548 = vunpack.c.l.b16 %v1406
    %v1549 = vunpack.c.h.b16 %v1406
    %v1550 = vunpack.c.l.b16 %v1407
    %v1551 = vunpack.c.h.b16 %v1407
    %v1552 = vunpack.c.l.b16 %v1408
    %v1553 = vunpack.c.h.b16 %v1408
    %v1554 = vunpack.c.l.b16 %v1409
    %v1555 = vunpack.c.h.b16 %v1409
    %v1556 = vunpack.c.l.b16 %v1410
    %v1557 = vunpack.c.h.b16 %v1410
    %v1558 = vunpack.c.l.b16 %v1411
    %v1559 = vunpack.c.h.b16 %v1411
    %v1560 = vunpack.c.l.b16 %v1412
    %v1561 = vunpack.c.h.b16 %v1412
    %v1562 = vunpack.c.l.b16 %v1413
    %v1563 = vunpack.c.h.b16 %v1413
    %v1564 = vunpack.c.l.b16 %v1414
    %v1565 = vunpack.c.h.b16 %v1414
    %v1566 = vunpack.c.l.b16 %v1415
    %v1567 = vunpack.c.h.b16 %v1415
    %v1568 = vunpack.c.l.b16 %v1416
    %v1569 = vunpack.c.h.b16 %v1416
    %v1570 = vunpack.c.l.b16 %v1417
    %v1571 = vunpack.c.h.b16 %v1417
    %v1572 = vunpack.c.l.b16 %v1418
    %v1573 = vunpack.c.h.b16 %v1418
    %v1574 = vunpack.c.l.b16 %v1419
    %v1575 = vunpack.c.h.b16 %v1419
    %v1576 = vunpack.c.l.b16 %v1420
    %v1577 = vunpack.c.h.b16 %v1420
    %v1578 = vunpack.c.l.b16 %v1421
    %v1579 = vunpack.c.h.b16 %v1421
    %v1580 = vunpack.c.l.b16 %v1422
    %v1581 = vunpack.c.h.b16 %v1422
    %v1582 = vunpack.c.l.b16 %v1423
    %v1583 = vunpack.c.h.b16 %v1423
    %v1584 = vunpack.c.l.b16 %v1424
    %v1585 = vunpack.c.h.b16 %v1424
    %v1586 = vunpack.c.l.b16 %v1425
    %v1587 = vunpack.c.h.b16 %v1425
    %v1588 = vunpack.c.l.b16 %v1426
    %v1589 = vunpack.c.h.b16 %v1426
    %v1590 = vunpack.c.l.b16 %v1427
    %v1591 = vunpack.c.h.b16 %v1427
    %v1592 = vunpack.c.l.b16 %v1428
    %v1593 = vunpack.c.h.b16 %v1428
    %v1594 = vunpack.c.l.b16 %v1429
    %v1595 = vunpack.c.h.b16 %v1429
    %v1596 = vunpack.c.l.b16 %v1430
    %v1597 = vunpack.c.h.b16 %v1430
    %v1598 = vunpack.c.l.b16 %v1431
    %v1599 = vunpack.c.h.b16 %v1431
    %v1600 = vunpack.c.l.b16 %v1432
    %v1601 = vunpack.c.h.b16 %v1432
    %v1602 = vunpack.c.l.b16 %v1433
    %v1603 = vunpack.c.h.b16 %v1433
    %v1604 = vunpack.c.l.b16 %v1434
    %v1605 = vunpack.c.h.b16 %v1434
    %v1606 = vunpack.c.l.b16 %v1435
    %v1607 = vunpack.c.h.b16 %v1435
    %v1608 = vpack.c.b16 %v1512, %v1508
    %v1609 = vpack.c.b16 %v1513, %v1509
    %v1610 = vpack.c.b16 %v1514, %v1510
    %v1611 = vpack.c.b16 %v1515, %v1511
    %v1612 = vpack.c.b16 %v1520, %v1516
    %v1613 = vpack.c.b16 %v1521, %v1517
    %v1614 = vpack.c.b16 %v1522, %v1518
    %v1615 = vpack.c.b16 %v1523, %v1519
    %v1616 = vpack.c.b16 %v1528, %v1524
    %v1617 = vpack.c.b16 %v1529, %v1525
    %v1618 = vpack.c.b16 %v1530, %v1526
    %v1619 = vpack.c.b16 %v1531, %v1527
    %v1620 = vpack.c.b16 %v1536, %v1532
    %v1621 = vpack.c.b16 %v1537, %v1533
    %v1622 = vpack.c.b16 %v1538, %v1534
    %v1623 = vpack.c.b16 %v1539, %v1535
    %v1624 = vpack.c.b16 %v1544, %v1540
    %v1625 = vpack.c.b16 %v1545, %v1541
    %v1626 = vpack.c.b16 %v1546, %v1542
    %v1627 = vpack.c.b16 %v1547, %v1543
    %v1628 = vpack.c.b16 %v1552, %v1548
    %v1629 = vpack.c.b16 %v1553, %v1549
    %v1630 = vpack.c.b16 %v1554, %v1550
    %v1631 = vpack.c.b16 %v1555, %v1551
    %v1632 = vpack.c.b16 %v1560, %v1556
    %v1633 = vpack.c.b16 %v1561, %v1557
    %v1634 = vpack.c.b16 %v1562, %v1558
    %v1635 = vpack.c.b16 %v1563, %v1559
    %v1636 = vpack.c.b16 %v1568, %v1564
    %v1637 = vpack.c.b16 %v1569, %v1565
    %v1638 = vpack.c.b16 %v1570, %v1566
    %v1639 = vpack.c.b16 %v1571, %v1567
    %v1640 = vpack.c.b16 %v1576, %v1572
    %v1641 = vpack.c.b16 %v1577, %v1573
    %v1642 = vpack.c.b16 %v1578, %v1574
    %v1643 = vpack.c.b16 %v1579, %v1575
    %v1644 = vpack.c.b16 %v1584, %v1580
    %v1645 = vpack.c.b16 %v1585, %v1581
    %v1646 = vpack.c.b16 %v1586, %v1582
    %v1647 = vpack.c.b16 %v1587, %v1583
    %v1648 = vpack.c.b16 %v1592, %v1588
    %v1649 = vpack.c.b16 %v1593, %v1589
    %v1650 = vpack.c.b16 %v1594, %v1590
    %v1651 = vpack.c.b16 %v1595, %v1591
    %v1652 = vpack.c.b16 %v1600, %v1596
    %v1653 = vpack.c.b16 %v1601, %v1597
    %v1654 = vpack.c.b16 %v1602, %v1598
    %v1655 = vpack.c.b16 %v1603, %v1599
    %v1656 = vpack.c.b16 %v1604, %v1604
    %v1657 = vpack.c.b16 %v1605, %v1605
    %v1658 = vpack.c.b16 %v1606, %v1606
    %v1659 = vpack.c.b16 %v1607, %v1607
    %vm1708 = vcmask 588800
    %v1710 = vsel %vm1708, %v1385, 0
    %vm1712 = vcmask 1043456
    %v1714 = vsel %vm1712, %v1656, 0
    %v1717 = vsel %vm1712, %v1657, 0
    %v1720 = vsel %vm1712, %v1658, 0
    %v1723 = vsel %vm1712, %v1659, 0
    %1725 = vmatprep.subr.bf16.mxu0 %v1637
    %1726 = vmatpush1.bf16.msra.mxu0 %v1636
    %1727 = vmatprep.subr.bf16.mxu0 %v1633
    %1728 = vmatpush1.bf16.msra.mxu0 %v1632
    %1729 = vmatprep.subr.bf16.mxu0 %v1629
    %1730 = vmatpush1.bf16.msra.mxu0 %v1628
    %1731 = vmatprep.subr.bf16.mxu0 %v1625
    %1732 = vmatpush1.bf16.msra.mxu0 %v1624
    %1733 = vmatprep.subr.bf16.mxu0 %v1621
    %1734 = vmatpush1.bf16.msra.mxu0 %v1620
    %1735 = vmatprep.subr.bf16.mxu0 %v1617
    %1736 = vmatpush1.bf16.msra.mxu0 %v1616
    %1737 = vmatprep.subr.bf16.mxu0 %v1613
    %1738 = vmatpush1.bf16.msra.mxu0 %v1612
    %1739 = vmatprep.subr.bf16.mxu0 %v1609
    %1740 = vmatpush1.bf16.msra.mxu0 %v1608
    %1741 = vmatprep.subr.bf16.mxu0 0
    %1742 = vmatpush2.bf16.msra.mxu0 0
    %1743 = vmatprep.subr.bf16.mxu0 0
    %1744 = vmatpush2.bf16.msra.mxu0 0
    %1745 = vmatprep.subr.bf16.mxu0 0
    %1746 = vmatpush2.bf16.msra.mxu0 0
    %1747 = vmatprep.subr.bf16.mxu0 %v1717
    %1748 = vmatpush2.bf16.msra.mxu0 %v1714
    %1749 = vmatprep.subr.bf16.mxu0 %v1653
    %1750 = vmatpush2.bf16.msra.mxu0 %v1652
    %1751 = vmatprep.subr.bf16.mxu0 %v1649
    %1752 = vmatpush2.bf16.msra.mxu0 %v1648
    %1753 = vmatprep.subr.bf16.mxu0 %v1645
    %1754 = vmatpush2.bf16.msra.mxu0 %v1644
    %1755 = vmatprep.subr.bf16.mxu0 %v1641
    %1756 = vmatpush2.bf16.msra.mxu0 %v1640
    %1757 = vmatprep.mubr.bf16.mxu0 %v1710
    %1758 = vmatmul.mubr.bf16.gmra.mxu0 %v1384
    %v1759 = vpop.f32.mrf.mxu0
    %v1760 = vadd.f32 %v1441, %v1759
    %v1761 = vpop.f32.mrf.mxu0
    %v1762 = vadd.f32 %v1445, %v1761
    %v1763 = vpop.f32.mrf.mxu0
    %v1764 = vadd.f32 %v1441, %v1763
    %v1765 = vpop.f32.mrf.mxu0
    %v1766 = vadd.f32 %v1445, %v1765
    %1767 = vdwg.mxu0
    %1768 = vmatprep.subr.bf16.mxu0 %v1639
    %1769 = vmatpush1.bf16.msra.mxu0 %v1638
    %1770 = vmatprep.subr.bf16.mxu0 %v1635
    %1771 = vmatpush1.bf16.msra.mxu0 %v1634
    %1772 = vmatprep.subr.bf16.mxu0 %v1631
    %1773 = vmatpush1.bf16.msra.mxu0 %v1630
    %1774 = vmatprep.subr.bf16.mxu0 %v1627
    %1775 = vmatpush1.bf16.msra.mxu0 %v1626
    %1776 = vmatprep.subr.bf16.mxu0 %v1623
    %1777 = vmatpush1.bf16.msra.mxu0 %v1622
    %1778 = vmatprep.subr.bf16.mxu0 %v1619
    %1779 = vmatpush1.bf16.msra.mxu0 %v1618
    %1780 = vmatprep.subr.bf16.mxu0 %v1615
    %1781 = vmatpush1.bf16.msra.mxu0 %v1614
    %1782 = vmatprep.subr.bf16.mxu0 %v1611
    %1783 = vmatpush1.bf16.msra.mxu0 %v1610
    %1784 = vmatprep.subr.bf16.mxu0 0
    %1785 = vmatpush2.bf16.msra.mxu0 0
    %1786 = vmatprep.subr.bf16.mxu0 0
    %1787 = vmatpush2.bf16.msra.mxu0 0
    %1788 = vmatprep.subr.bf16.mxu0 0
    %1789 = vmatpush2.bf16.msra.mxu0 0
    %1790 = vmatprep.subr.bf16.mxu0 %v1723
    %1791 = vmatpush2.bf16.msra.mxu0 %v1720
    %1792 = vmatprep.subr.bf16.mxu0 %v1655
    %1793 = vmatpush2.bf16.msra.mxu0 %v1654
    %1794 = vmatprep.subr.bf16.mxu0 %v1651
    %1795 = vmatpush2.bf16.msra.mxu0 %v1650
    %1796 = vmatprep.subr.bf16.mxu0 %v1647
    %1797 = vmatpush2.bf16.msra.mxu0 %v1646
    %1798 = vmatprep.subr.bf16.mxu0 %v1643
    %1799 = vmatpush2.bf16.msra.mxu0 %v1642
    %1800 = vmatprep.mubr.bf16.mxu0 %v1710
    %1801 = vmatmul.mubr.bf16.gmra.mxu0 %v1384
    %v1802 = vpop.f32.mrf.mxu0
    %v1803 = vadd.f32 %v1449, %v1802
    %v1804 = vpop.f32.mrf.mxu0
    %v1805 = vadd.f32 %v1453, %v1804
    %v1806 = vpop.f32.mrf.mxu0
    %v1807 = vadd.f32 %v1449, %v1806
    %v1808 = vpop.f32.mrf.mxu0
    %v1809 = vadd.f32 %v1453, %v1808
    %1810 = vdwg.mxu0
    %v1811 = vpack.c.bf16 %v1764, %v1760
    %v1812 = vpack.c.bf16 %v1766, %v1762
    %1814 = vrot.lane.b32.xlu0 %v1811, 28
    %v1815 = vpop.permute.xlu0 %1814
    %vm1816 = vcmask 203776
    %v1818 = vsel %vm1816, %v1811, 0
    %v1821 = vsel %vm1816, %v1815, 0
    %1823 = vmatprep.subr.bf16.mxu0 0
    %1824 = vmatpush1.bf16.xpose.msra.mxu0 0
    %1825 = vmatprep.subr.bf16.mxu0 0
    %1826 = vmatpush1.bf16.xpose.msra.mxu0 0
    %1827 = vmatprep.subr.bf16.mxu0 0
    %1828 = vmatpush1.bf16.xpose.msra.mxu0 0
    %1829 = vmatprep.subr.bf16.mxu0 0
    %1830 = vmatpush1.bf16.xpose.msra.mxu0 0
    %1831 = vmatprep.subr.bf16.mxu0 0
    %1832 = vmatpush1.bf16.xpose.msra.mxu0 0
    %1833 = vmatprep.subr.bf16.mxu0 0
    %1834 = vmatpush1.bf16.xpose.msra.mxu0 0
    %1835 = vmatprep.subr.bf16.mxu0 0
    %1836 = vmatpush1.bf16.xpose.msra.mxu0 0
    %1837 = vmatprep.subr.bf16.mxu0 0
    %1838 = vmatpush1.bf16.xpose.msra.mxu0 %v1821
    %1839 = vmatprep.subr.bf16.mxu0 0
    %1840 = vmatpush2.bf16.xpose.msra.mxu0 0
    %1841 = vmatprep.subr.bf16.mxu0 0
    %1842 = vmatpush2.bf16.xpose.msra.mxu0 0
    %1843 = vmatprep.subr.bf16.mxu0 0
    %1844 = vmatpush2.bf16.xpose.msra.mxu0 0
    %1845 = vmatprep.subr.bf16.mxu0 0
    %1846 = vmatpush2.bf16.xpose.msra.mxu0 0
    %1847 = vmatprep.subr.bf16.mxu0 0
    %1848 = vmatpush2.bf16.xpose.msra.mxu0 0
    %1849 = vmatprep.subr.bf16.mxu0 0
    %1850 = vmatpush2.bf16.xpose.msra.mxu0 0
    %1851 = vmatprep.subr.bf16.mxu0 0
    %1852 = vmatpush2.bf16.xpose.msra.mxu0 0
    %1853 = vmatprep.subr.bf16.mxu0 0
    %1854 = vmatpush2.bf16.xpose.msra.mxu0 0
    %1855 = vmatprep.mubr.bf16.mxu0 0
    %1856 = vmatmul.mubr.bf16.gmra.mxu0 %v1818
    %v1857 = vpop.f32.mrf.mxu0
    %v1858 = vadd.f32 %v139, %v1857
    %v1859 = vpop.f32.mrf.mxu0
    %v1860 = vpop.f32.mrf.mxu0
    %v1861 = vadd.f32 %v140, %v1860
    %v1862 = vpop.f32.mrf.mxu0
    %1863 = vdwg.mxu0
    %v1864 = vsel %vm808, %v1858, -inf
    %1865 = vmax.xlane.f32.xlu0 %v1864
    %v1866 = vpop.xlane.xlu0 %1865
    %v1867 = vsel %vm808, %v1861, -inf
    %1868 = vmax.xlane.f32.xlu0 %v1867
    %v1869 = vpop.xlane.xlu0 %1868
    %v1870 = vsub.f32 %v1858, %v1866
    %v1871 = vsub.f32 %v1861, %v1869
    %v1872 = vmul.f32 %v1870, 1.442695
    %v1873 = vpow.pop %v1872
    %v1874 = vmul.f32 %v1871, 1.442695
    %v1875 = vpow.pop %v1874
    %v1876 = vmul.f32 %v1873, %v137
    %v1877 = vmul.f32 %v1875, %v138
    %v1878 = vsel %vm808, %v1876, 0.0
    %1879 = vadd.xlane.f32.xlu0 %v1878
    %v1880 = vpop.xlane.xlu0 %1879
    %v1881 = vsel %vm808, %v1877, 0.0
    %1882 = vadd.xlane.f32.xlu0 %v1881
    %v1883 = vpop.xlane.xlu0 %1882
    %vm1884 = vcmp.eq.f32.partialorder %v1880, 0.0
    %vm1885 = vcmp.eq.f32.partialorder %v1883, 0.0
    %v1886 = vsel %vm1884, 1.0, %v1880
    %v1887 = vsel %vm1885, 1.0, %v1883
    %v1888 = vpack.c.bf16 %v1877, %v1876
    %1890 = vrot.lane.b32.xlu0 %v1812, 56
    %v1891 = vpop.permute.xlu0 %1890
    %v1894 = vsel %vm808, %v1888, 0
    %1896 = vmatprep.subr.bf16.mxu0 0
    %1897 = vmatpush1.bf16.msra.mxu0 0
    %1898 = vmatprep.subr.bf16.mxu0 0
    %1899 = vmatpush1.bf16.msra.mxu0 0
    %1900 = vmatprep.subr.bf16.mxu0 0
    %1901 = vmatpush1.bf16.msra.mxu0 0
    %1902 = vmatprep.subr.bf16.mxu0 0
    %1903 = vmatpush1.bf16.msra.mxu0 0
    %1904 = vmatprep.subr.bf16.mxu0 0
    %1905 = vmatpush1.bf16.msra.mxu0 0
    %1906 = vmatprep.subr.bf16.mxu0 0
    %1907 = vmatpush1.bf16.msra.mxu0 0
    %1908 = vmatprep.subr.bf16.mxu0 0
    %1909 = vmatpush1.bf16.msra.mxu0 0
    %1910 = vmatprep.subr.bf16.mxu0 0
    %1911 = vmatpush1.bf16.msra.mxu0 %v1891
    %1912 = vmatprep.subr.bf16.mxu0 0
    %1913 = vmatpush2.bf16.msra.mxu0 0
    %1914 = vmatprep.subr.bf16.mxu0 0
    %1915 = vmatpush2.bf16.msra.mxu0 0
    %1916 = vmatprep.subr.bf16.mxu0 0
    %1917 = vmatpush2.bf16.msra.mxu0 0
    %1918 = vmatprep.subr.bf16.mxu0 0
    %1919 = vmatpush2.bf16.msra.mxu0 0
    %1920 = vmatprep.subr.bf16.mxu0 0
    %1921 = vmatpush2.bf16.msra.mxu0 0
    %1922 = vmatprep.subr.bf16.mxu0 0
    %1923 = vmatpush2.bf16.msra.mxu0 0
    %1924 = vmatprep.subr.bf16.mxu0 0
    %1925 = vmatpush2.bf16.msra.mxu0 0
    %1926 = vmatprep.subr.bf16.mxu0 0
    %1927 = vmatpush2.bf16.msra.mxu0 0
    %1928 = vmatprep.mubr.bf16.mxu0 0
    %1929 = vmatmul.mubr.bf16.gmra.mxu0 %v1894
    %v1930 = vpop.f32.mrf.mxu0
    %v1931 = vadd.f32 0.0, %v1930
    %v1932 = vpop.f32.mrf.mxu0
    %v1933 = vpop.f32.mrf.mxu0
    %v1934 = vadd.f32 0.0, %v1933
    %v1935 = vpop.f32.mrf.mxu0
    %1936 = vdwg.mxu0
    %v1937 = vrcp.pop %v1886
    %v1938 = vrcp.pop %v1887
    %v1939 = vmul.f32 %v1931, %v1937
    %v1940 = vmul.f32 %v1934, %v1938
    %1943 = vrot.lane.b32.xlu0 %v1803, 84
    %v1944 = vpop.permute.xlu0 %1943
    %1945 = vrot.lane.b32.xlu0 %v1807, 84
    %v1946 = vpop.permute.xlu0 %1945
    %v1949 = vadd.f32 %v1939, %v1944
    %v1950 = vadd.f32 %v1940, %v1946
    %1951 = vrot.lane.b32.xlu0 %v1811, 103
    %v1952 = vpop.permute.xlu0 %1951
    %1953 = vrot.lane.b32.xlu0 %v1811, 3
    %v1954 = vpop.permute.xlu0 %1953
    %1955 = vrot.lane.b32.xlu0 %v1812, 3
    %v1956 = vpop.permute.xlu0 %1955
    %vm1957 = vcmask 23552
    %v1958 = vsel %vm1957, %v1954, %v1956
    %v1960 = vsel %vm1816, %v1952, 0
    %v1963 = vsel %vm1816, %v1958, 0
    %1965 = vmatprep.subr.bf16.mxu0 0
    %1966 = vmatpush1.bf16.xpose.msra.mxu0 0
    %1967 = vmatprep.subr.bf16.mxu0 0
    %1968 = vmatpush1.bf16.xpose.msra.mxu0 0
    %1969 = vmatprep.subr.bf16.mxu0 0
    %1970 = vmatpush1.bf16.xpose.msra.mxu0 0
    %1971 = vmatprep.subr.bf16.mxu0 0
    %1972 = vmatpush1.bf16.xpose.msra.mxu0 0
    %1973 = vmatprep.subr.bf16.mxu0 0
    %1974 = vmatpush1.bf16.xpose.msra.mxu0 0
    %1975 = vmatprep.subr.bf16.mxu0 0
    %1976 = vmatpush1.bf16.xpose.msra.mxu0 0
    %1977 = vmatprep.subr.bf16.mxu0 0
    %1978 = vmatpush1.bf16.xpose.msra.mxu0 0
    %1979 = vmatprep.subr.bf16.mxu0 0
    %1980 = vmatpush1.bf16.xpose.msra.mxu0 %v1963
    %1981 = vmatprep.subr.bf16.mxu0 0
    %1982 = vmatpush2.bf16.xpose.msra.mxu0 0
    %1983 = vmatprep.subr.bf16.mxu0 0
    %1984 = vmatpush2.bf16.xpose.msra.mxu0 0
    %1985 = vmatprep.subr.bf16.mxu0 0
    %1986 = vmatpush2.bf16.xpose.msra.mxu0 0
    %1987 = vmatprep.subr.bf16.mxu0 0
    %1988 = vmatpush2.bf16.xpose.msra.mxu0 0
    %1989 = vmatprep.subr.bf16.mxu0 0
    %1990 = vmatpush2.bf16.xpose.msra.mxu0 0
    %1991 = vmatprep.subr.bf16.mxu0 0
    %1992 = vmatpush2.bf16.xpose.msra.mxu0 0
    %1993 = vmatprep.subr.bf16.mxu0 0
    %1994 = vmatpush2.bf16.xpose.msra.mxu0 0
    %1995 = vmatprep.subr.bf16.mxu0 0
    %1996 = vmatpush2.bf16.xpose.msra.mxu0 0
    %1997 = vmatprep.mubr.bf16.mxu0 0
    %1998 = vmatmul.mubr.bf16.gmra.mxu0 %v1960
    %v1999 = vpop.f32.mrf.mxu0
    %v2000 = vadd.f32 %v139, %v1999
    %v2001 = vpop.f32.mrf.mxu0
    %v2002 = vpop.f32.mrf.mxu0
    %v2003 = vadd.f32 %v140, %v2002
    %v2004 = vpop.f32.mrf.mxu0
    %2005 = vdwg.mxu0
    %v2006 = vsel %vm808, %v2000, -inf
    %2007 = vmax.xlane.f32.xlu0 %v2006
    %v2008 = vpop.xlane.xlu0 %2007
    %v2009 = vsel %vm808, %v2003, -inf
    %2010 = vmax.xlane.f32.xlu0 %v2009
    %v2011 = vpop.xlane.xlu0 %2010
    %v2012 = vsub.f32 %v2000, %v2008
    %v2013 = vsub.f32 %v2003, %v2011
    %v2014 = vmul.f32 %v2012, 1.442695
    %v2015 = vpow.pop %v2014
    %v2016 = vmul.f32 %v2013, 1.442695
    %v2017 = vpow.pop %v2016
    %v2018 = vmul.f32 %v2015, %v137
    %v2019 = vmul.f32 %v2017, %v138
    %v2020 = vsel %vm808, %v2018, 0.0
    %2021 = vadd.xlane.f32.xlu0 %v2020
    %v2022 = vpop.xlane.xlu0 %2021
    %v2023 = vsel %vm808, %v2019, 0.0
    %2024 = vadd.xlane.f32.xlu0 %v2023
    %v2025 = vpop.xlane.xlu0 %2024
    %vm2026 = vcmp.eq.f32.partialorder %v2022, 0.0
    %vm2027 = vcmp.eq.f32.partialorder %v2025, 0.0
    %v2028 = vsel %vm2026, 1.0, %v2022
    %v2029 = vsel %vm2027, 1.0, %v2025
    %v2030 = vpack.c.bf16 %v2019, %v2018
    %2031 = vrot.lane.b32.xlu0 %v1812, 31
    %v2032 = vpop.permute.xlu0 %2031
    %v2035 = vsel %vm808, %v2030, 0
    %2037 = vmatprep.subr.bf16.mxu0 0
    %2038 = vmatpush1.bf16.msra.mxu0 0
    %2039 = vmatprep.subr.bf16.mxu0 0
    %2040 = vmatpush1.bf16.msra.mxu0 0
    %2041 = vmatprep.subr.bf16.mxu0 0
    %2042 = vmatpush1.bf16.msra.mxu0 0
    %2043 = vmatprep.subr.bf16.mxu0 0
    %2044 = vmatpush1.bf16.msra.mxu0 0
    %2045 = vmatprep.subr.bf16.mxu0 0
    %2046 = vmatpush1.bf16.msra.mxu0 0
    %2047 = vmatprep.subr.bf16.mxu0 0
    %2048 = vmatpush1.bf16.msra.mxu0 0
    %2049 = vmatprep.subr.bf16.mxu0 0
    %2050 = vmatpush1.bf16.msra.mxu0 0
    %2051 = vmatprep.subr.bf16.mxu0 0
    %2052 = vmatpush1.bf16.msra.mxu0 %v2032
    %2053 = vmatprep.subr.bf16.mxu0 0
    %2054 = vmatpush2.bf16.msra.mxu0 0
    %2055 = vmatprep.subr.bf16.mxu0 0
    %2056 = vmatpush2.bf16.msra.mxu0 0
    %2057 = vmatprep.subr.bf16.mxu0 0
    %2058 = vmatpush2.bf16.msra.mxu0 0
    %2059 = vmatprep.subr.bf16.mxu0 0
    %2060 = vmatpush2.bf16.msra.mxu0 0
    %2061 = vmatprep.subr.bf16.mxu0 0
    %2062 = vmatpush2.bf16.msra.mxu0 0
    %2063 = vmatprep.subr.bf16.mxu0 0
    %2064 = vmatpush2.bf16.msra.mxu0 0
    %2065 = vmatprep.subr.bf16.mxu0 0
    %2066 = vmatpush2.bf16.msra.mxu0 0
    %2067 = vmatprep.subr.bf16.mxu0 0
    %2068 = vmatpush2.bf16.msra.mxu0 0
    %2069 = vmatprep.mubr.bf16.mxu0 0
    %2070 = vmatmul.mubr.bf16.gmra.mxu0 %v2035
    %v2071 = vpop.f32.mrf.mxu0
    %v2072 = vadd.f32 0.0, %v2071
    %v2073 = vpop.f32.mrf.mxu0
    %v2074 = vpop.f32.mrf.mxu0
    %v2075 = vadd.f32 0.0, %v2074
    %v2076 = vpop.f32.mrf.mxu0
    %2077 = vdwg.mxu0
    %v2078 = vrcp.pop %v2028
    %v2079 = vrcp.pop %v2029
    %v2080 = vmul.f32 %v2072, %v2078
    %v2081 = vmul.f32 %v2075, %v2079
    %2082 = vrot.lane.b32.xlu0 %v1803, 59
    %v2083 = vpop.permute.xlu0 %2082
    %2084 = vrot.lane.b32.xlu0 %v1807, 59
    %v2085 = vpop.permute.xlu0 %2084
    %v2088 = vadd.f32 %v2080, %v2083
    %v2089 = vadd.f32 %v2081, %v2085
    %v2090 = vpack.c.bf16 %v1807, %v1803
    %2091 = vrot.lane.b32.xlu0 %v1811, 78
    %v2092 = vpop.permute.xlu0 %2091
    %2093 = vrot.lane.b32.xlu0 %v1812, 106
    %v2094 = vpop.permute.xlu0 %2093
    %v2096 = vsel %vm1816, %v2092, 0
    %v2099 = vsel %vm1816, %v2094, 0
    %2101 = vmatprep.subr.bf16.mxu0 0
    %2102 = vmatpush1.bf16.xpose.msra.mxu0 0
    %2103 = vmatprep.subr.bf16.mxu0 0
    %2104 = vmatpush1.bf16.xpose.msra.mxu0 0
    %2105 = vmatprep.subr.bf16.mxu0 0
    %2106 = vmatpush1.bf16.xpose.msra.mxu0 0
    %2107 = vmatprep.subr.bf16.mxu0 0
    %2108 = vmatpush1.bf16.xpose.msra.mxu0 0
    %2109 = vmatprep.subr.bf16.mxu0 0
    %2110 = vmatpush1.bf16.xpose.msra.mxu0 0
    %2111 = vmatprep.subr.bf16.mxu0 0
    %2112 = vmatpush1.bf16.xpose.msra.mxu0 0
    %2113 = vmatprep.subr.bf16.mxu0 0
    %2114 = vmatpush1.bf16.xpose.msra.mxu0 0
    %2115 = vmatprep.subr.bf16.mxu0 0
    %2116 = vmatpush1.bf16.xpose.msra.mxu0 %v2099
    %2117 = vmatprep.subr.bf16.mxu0 0
    %2118 = vmatpush2.bf16.xpose.msra.mxu0 0
    %2119 = vmatprep.subr.bf16.mxu0 0
    %2120 = vmatpush2.bf16.xpose.msra.mxu0 0
    %2121 = vmatprep.subr.bf16.mxu0 0
    %2122 = vmatpush2.bf16.xpose.msra.mxu0 0
    %2123 = vmatprep.subr.bf16.mxu0 0
    %2124 = vmatpush2.bf16.xpose.msra.mxu0 0
    %2125 = vmatprep.subr.bf16.mxu0 0
    %2126 = vmatpush2.bf16.xpose.msra.mxu0 0
    %2127 = vmatprep.subr.bf16.mxu0 0
    %2128 = vmatpush2.bf16.xpose.msra.mxu0 0
    %2129 = vmatprep.subr.bf16.mxu0 0
    %2130 = vmatpush2.bf16.xpose.msra.mxu0 0
    %2131 = vmatprep.subr.bf16.mxu0 0
    %2132 = vmatpush2.bf16.xpose.msra.mxu0 0
    %2133 = vmatprep.mubr.bf16.mxu0 0
    %2134 = vmatmul.mubr.bf16.gmra.mxu0 %v2096
    %v2135 = vpop.f32.mrf.mxu0
    %v2136 = vadd.f32 %v139, %v2135
    %v2137 = vpop.f32.mrf.mxu0
    %v2138 = vpop.f32.mrf.mxu0
    %v2139 = vadd.f32 %v140, %v2138
    %v2140 = vpop.f32.mrf.mxu0
    %2141 = vdwg.mxu0
    %v2142 = vsel %vm808, %v2136, -inf
    %2143 = vmax.xlane.f32.xlu0 %v2142
    %v2144 = vpop.xlane.xlu0 %2143
    %v2145 = vsel %vm808, %v2139, -inf
    %2146 = vmax.xlane.f32.xlu0 %v2145
    %v2147 = vpop.xlane.xlu0 %2146
    %v2148 = vsub.f32 %v2136, %v2144
    %v2149 = vsub.f32 %v2139, %v2147
    %v2150 = vmul.f32 %v2148, 1.442695
    %v2151 = vpow.pop %v2150
    %v2152 = vmul.f32 %v2149, 1.442695
    %v2153 = vpow.pop %v2152
    %v2154 = vmul.f32 %v2151, %v137
    %v2155 = vmul.f32 %v2153, %v138
    %v2156 = vsel %vm808, %v2154, 0.0
    %2157 = vadd.xlane.f32.xlu0 %v2156
    %v2158 = vpop.xlane.xlu0 %2157
    %v2159 = vsel %vm808, %v2155, 0.0
    %2160 = vadd.xlane.f32.xlu0 %v2159
    %v2161 = vpop.xlane.xlu0 %2160
    %vm2162 = vcmp.eq.f32.partialorder %v2158, 0.0
    %vm2163 = vcmp.eq.f32.partialorder %v2161, 0.0
    %v2164 = vsel %vm2162, 1.0, %v2158
    %v2165 = vsel %vm2163, 1.0, %v2161
    %v2166 = vpack.c.bf16 %v2155, %v2154
    %2168 = vrot.lane.b32.xlu0 %v1812, 6
    %v2169 = vpop.permute.xlu0 %2168
    %2170 = vrot.lane.b32.xlu0 %v2090, 6
    %v2171 = vpop.permute.xlu0 %2170
    %v2172 = vsel %vm914, %v2169, %v2171
    %v2175 = vsel %vm808, %v2166, 0
    %2177 = vmatprep.subr.bf16.mxu0 0
    %2178 = vmatpush1.bf16.msra.mxu0 0
    %2179 = vmatprep.subr.bf16.mxu0 0
    %2180 = vmatpush1.bf16.msra.mxu0 0
    %2181 = vmatprep.subr.bf16.mxu0 0
    %2182 = vmatpush1.bf16.msra.mxu0 0
    %2183 = vmatprep.subr.bf16.mxu0 0
    %2184 = vmatpush1.bf16.msra.mxu0 0
    %2185 = vmatprep.subr.bf16.mxu0 0
    %2186 = vmatpush1.bf16.msra.mxu0 0
    %2187 = vmatprep.subr.bf16.mxu0 0
    %2188 = vmatpush1.bf16.msra.mxu0 0
    %2189 = vmatprep.subr.bf16.mxu0 0
    %2190 = vmatpush1.bf16.msra.mxu0 0
    %2191 = vmatprep.subr.bf16.mxu0 0
    %2192 = vmatpush1.bf16.msra.mxu0 %v2172
    %2193 = vmatprep.subr.bf16.mxu0 0
    %2194 = vmatpush2.bf16.msra.mxu0 0
    %2195 = vmatprep.subr.bf16.mxu0 0
    %2196 = vmatpush2.bf16.msra.mxu0 0
    %2197 = vmatprep.subr.bf16.mxu0 0
    %2198 = vmatpush2.bf16.msra.mxu0 0
    %2199 = vmatprep.subr.bf16.mxu0 0
    %2200 = vmatpush2.bf16.msra.mxu0 0
    %2201 = vmatprep.subr.bf16.mxu0 0
    %2202 = vmatpush2.bf16.msra.mxu0 0
    %2203 = vmatprep.subr.bf16.mxu0 0
    %2204 = vmatpush2.bf16.msra.mxu0 0
    %2205 = vmatprep.subr.bf16.mxu0 0
    %2206 = vmatpush2.bf16.msra.mxu0 0
    %2207 = vmatprep.subr.bf16.mxu0 0
    %2208 = vmatpush2.bf16.msra.mxu0 0
    %2209 = vmatprep.mubr.bf16.mxu0 0
    %2210 = vmatmul.mubr.bf16.gmra.mxu0 %v2175
    %v2211 = vpop.f32.mrf.mxu0
    %v2212 = vadd.f32 0.0, %v2211
    %v2213 = vpop.f32.mrf.mxu0
    %v2214 = vpop.f32.mrf.mxu0
    %v2215 = vadd.f32 0.0, %v2214
    %v2216 = vpop.f32.mrf.mxu0
    %2217 = vdwg.mxu0
    %v2218 = vrcp.pop %v2164
    %v2219 = vrcp.pop %v2165
    %v2220 = vmul.f32 %v2212, %v2218
    %v2221 = vmul.f32 %v2215, %v2219
    %2222 = vrot.lane.b32.xlu0 %v1803, 34
    %v2223 = vpop.permute.xlu0 %2222
    %2224 = vrot.lane.b32.xlu0 %v1807, 34
    %v2225 = vpop.permute.xlu0 %2224
    %v2228 = vadd.f32 %v2220, %v2223
    %v2229 = vadd.f32 %v2221, %v2225
    %2230 = vrot.lane.b32.xlu0 %v1811, 53
    %v2231 = vpop.permute.xlu0 %2230
    %2232 = vrot.lane.b32.xlu0 %v1812, 81
    %v2233 = vpop.permute.xlu0 %2232
    %v2235 = vsel %vm1816, %v2231, 0
    %v2238 = vsel %vm1816, %v2233, 0
    %2240 = vmatprep.subr.bf16.mxu0 0
    %2241 = vmatpush1.bf16.xpose.msra.mxu0 0
    %2242 = vmatprep.subr.bf16.mxu0 0
    %2243 = vmatpush1.bf16.xpose.msra.mxu0 0
    %2244 = vmatprep.subr.bf16.mxu0 0
    %2245 = vmatpush1.bf16.xpose.msra.mxu0 0
    %2246 = vmatprep.subr.bf16.mxu0 0
    %2247 = vmatpush1.bf16.xpose.msra.mxu0 0
    %2248 = vmatprep.subr.bf16.mxu0 0
    %2249 = vmatpush1.bf16.xpose.msra.mxu0 0
    %2250 = vmatprep.subr.bf16.mxu0 0
    %2251 = vmatpush1.bf16.xpose.msra.mxu0 0
    %2252 = vmatprep.subr.bf16.mxu0 0
    %2253 = vmatpush1.bf16.xpose.msra.mxu0 0
    %2254 = vmatprep.subr.bf16.mxu0 0
    %2255 = vmatpush1.bf16.xpose.msra.mxu0 %v2238
    %2256 = vmatprep.subr.bf16.mxu0 0
    %2257 = vmatpush2.bf16.xpose.msra.mxu0 0
    %2258 = vmatprep.subr.bf16.mxu0 0
    %2259 = vmatpush2.bf16.xpose.msra.mxu0 0
    %2260 = vmatprep.subr.bf16.mxu0 0
    %2261 = vmatpush2.bf16.xpose.msra.mxu0 0
    %2262 = vmatprep.subr.bf16.mxu0 0
    %2263 = vmatpush2.bf16.xpose.msra.mxu0 0
    %2264 = vmatprep.subr.bf16.mxu0 0
    %2265 = vmatpush2.bf16.xpose.msra.mxu0 0
    %2266 = vmatprep.subr.bf16.mxu0 0
    %2267 = vmatpush2.bf16.xpose.msra.mxu0 0
    %2268 = vmatprep.subr.bf16.mxu0 0
    %2269 = vmatpush2.bf16.xpose.msra.mxu0 0
    %2270 = vmatprep.subr.bf16.mxu0 0
    %2271 = vmatpush2.bf16.xpose.msra.mxu0 0
    %2272 = vmatprep.mubr.bf16.mxu0 0
    %2273 = vmatmul.mubr.bf16.gmra.mxu0 %v2235
    %v2274 = vpop.f32.mrf.mxu0
    %v2275 = vadd.f32 %v139, %v2274
    %v2276 = vpop.f32.mrf.mxu0
    %v2277 = vpop.f32.mrf.mxu0
    %v2278 = vadd.f32 %v140, %v2277
    %v2279 = vpop.f32.mrf.mxu0
    %2280 = vdwg.mxu0
    %v2281 = vsel %vm808, %v2275, -inf
    %2282 = vmax.xlane.f32.xlu0 %v2281
    %v2283 = vpop.xlane.xlu0 %2282
    %v2284 = vsel %vm808, %v2278, -inf
    %2285 = vmax.xlane.f32.xlu0 %v2284
    %v2286 = vpop.xlane.xlu0 %2285
    %v2287 = vsub.f32 %v2275, %v2283
    %v2288 = vsub.f32 %v2278, %v2286
    %v2289 = vmul.f32 %v2287, 1.442695
    %v2290 = vpow.pop %v2289
    %v2291 = vmul.f32 %v2288, 1.442695
    %v2292 = vpow.pop %v2291
    %v2293 = vmul.f32 %v2290, %v137
    %v2294 = vmul.f32 %v2292, %v138
    %v2295 = vsel %vm808, %v2293, 0.0
    %2296 = vadd.xlane.f32.xlu0 %v2295
    %v2297 = vpop.xlane.xlu0 %2296
    %v2298 = vsel %vm808, %v2294, 0.0
    %2299 = vadd.xlane.f32.xlu0 %v2298
    %v2300 = vpop.xlane.xlu0 %2299
    %vm2301 = vcmp.eq.f32.partialorder %v2297, 0.0
    %vm2302 = vcmp.eq.f32.partialorder %v2300, 0.0
    %v2303 = vsel %vm2301, 1.0, %v2297
    %v2304 = vsel %vm2302, 1.0, %v2300
    %v2305 = vpack.c.bf16 %v2294, %v2293
    %2306 = vrot.lane.b32.xlu0 %v2090, 109
    %v2307 = vpop.permute.xlu0 %2306
    %v2310 = vsel %vm808, %v2305, 0
    %2312 = vmatprep.subr.bf16.mxu0 0
    %2313 = vmatpush1.bf16.msra.mxu0 0
    %2314 = vmatprep.subr.bf16.mxu0 0
    %2315 = vmatpush1.bf16.msra.mxu0 0
    %2316 = vmatprep.subr.bf16.mxu0 0
    %2317 = vmatpush1.bf16.msra.mxu0 0
    %2318 = vmatprep.subr.bf16.mxu0 0
    %2319 = vmatpush1.bf16.msra.mxu0 0
    %2320 = vmatprep.subr.bf16.mxu0 0
    %2321 = vmatpush1.bf16.msra.mxu0 0
    %2322 = vmatprep.subr.bf16.mxu0 0
    %2323 = vmatpush1.bf16.msra.mxu0 0
    %2324 = vmatprep.subr.bf16.mxu0 0
    %2325 = vmatpush1.bf16.msra.mxu0 0
    %2326 = vmatprep.subr.bf16.mxu0 0
    %2327 = vmatpush1.bf16.msra.mxu0 %v2307
    %2328 = vmatprep.subr.bf16.mxu0 0
    %2329 = vmatpush2.bf16.msra.mxu0 0
    %2330 = vmatprep.subr.bf16.mxu0 0
    %2331 = vmatpush2.bf16.msra.mxu0 0
    %2332 = vmatprep.subr.bf16.mxu0 0
    %2333 = vmatpush2.bf16.msra.mxu0 0
    %2334 = vmatprep.subr.bf16.mxu0 0
    %2335 = vmatpush2.bf16.msra.mxu0 0
    %2336 = vmatprep.subr.bf16.mxu0 0
    %2337 = vmatpush2.bf16.msra.mxu0 0
    %2338 = vmatprep.subr.bf16.mxu0 0
    %2339 = vmatpush2.bf16.msra.mxu0 0
    %2340 = vmatprep.subr.bf16.mxu0 0
    %2341 = vmatpush2.bf16.msra.mxu0 0
    %2342 = vmatprep.subr.bf16.mxu0 0
    %2343 = vmatpush2.bf16.msra.mxu0 0
    %2344 = vmatprep.mubr.bf16.mxu0 0
    %2345 = vmatmul.mubr.bf16.gmra.mxu0 %v2310
    %v2346 = vpop.f32.mrf.mxu0
    %v2347 = vadd.f32 0.0, %v2346
    %v2348 = vpop.f32.mrf.mxu0
    %v2349 = vpop.f32.mrf.mxu0
    %v2350 = vadd.f32 0.0, %v2349
    %v2351 = vpop.f32.mrf.mxu0
    %2352 = vdwg.mxu0
    %v2353 = vrcp.pop %v2303
    %v2354 = vrcp.pop %v2304
    %v2355 = vmul.f32 %v2347, %v2353
    %v2356 = vmul.f32 %v2350, %v2354
    %2359 = vrot.lane.b32.xlu0 %v1803, 9
    %v2360 = vpop.permute.xlu0 %2359
    %2361 = vrot.lane.b32.xlu0 %v1805, 9
    %v2362 = vpop.permute.xlu0 %2361
    %2363 = vrot.lane.b32.xlu0 %v1807, 9
    %v2364 = vpop.permute.xlu0 %2363
    %2365 = vrot.lane.b32.xlu0 %v1809, 9
    %v2366 = vpop.permute.xlu0 %2365
    %vm2367 = vcmask 72704
    %v2368 = vsel %vm2367, %v2360, %v2362
    %v2369 = vsel %vm2367, %v2364, %v2366
    %v2372 = vadd.f32 %v2355, %v2368
    %v2373 = vadd.f32 %v2356, %v2369
    %2376 = vrot.lane.b32.xlu0 %v2088, 25
    %v2377 = vpop.permute.xlu0 %2376
    %2378 = vrot.lane.b32.xlu0 %v2089, 25
    %v2379 = vpop.permute.xlu0 %2378
    %2384 = vrot.lane.b32.xlu0 %v2228, 50
    %v2385 = vpop.permute.xlu0 %2384
    %2386 = vrot.lane.b32.xlu0 %v2229, 50
    %v2387 = vpop.permute.xlu0 %2386
    %2392 = vrot.lane.b32.xlu0 %v2372, 75
    %v2393 = vpop.permute.xlu0 %2392
    %2394 = vrot.lane.b32.xlu0 %v2373, 75
    %v2395 = vpop.permute.xlu0 %2394
    %v2398 = vsel %vm1816, %v1949, %v2377
    %v2399 = vsel %vm1816, %v1950, %v2379
    %v2400 = vsel %vm760, %v2398, %v2385
    %v2401 = vsel %vm760, %v2399, %v2387
    %vm2402 = vcmask 613376
    %v2403 = vsel %vm2402, %v2400, %v2393
    %v2404 = vsel %vm2402, %v2401, %v2395
    %vm2405 = vcmp.ge.f32.partialorder %v2403, 0.0
    %vm2406 = vcmp.ge.f32.partialorder %v2404, 0.0
    %v2407 = vmul.f32 %v2403, 0.1
    %v2408 = vmul.f32 %v2404, 0.1
    %v2409 = vsel %vm2405, %v2403, %v2407
    %v2410 = vsel %vm2406, %v2404, %v2408
    %v2411 = vpack.c.bf16 %v2410, %v2409
    %v2412 = vld [vmem:[%s6] sm:$0xff]
    %v2413 = vld [vmem:[%s6 + $0x8] sm:$0xff]
    %v2414 = vld [vmem:[%s6 + $0x10] sm:$0xff]
    %v2415 = vld [vmem:[%s6 + $0x18] sm:$0xff]
    %v2416 = vld [vmem:[%s6 + $0x20] sm:$0xff]
    %v2417 = vld [vmem:[%s6 + $0x28] sm:$0xff]
    %v2418 = vld [vmem:[%s6 + $0x30] sm:$0xff]
    %v2419 = vld [vmem:[%s6 + $0x38] sm:$0xff]
    %v2420 = vld [vmem:[%s6 + $0x40] sm:$0xff]
    %v2421 = vld [vmem:[%s6 + $0x48] sm:$0xff]
    %v2422 = vld [vmem:[%s6 + $0x50] sm:$0xff]
    %v2423 = vld [vmem:[%s6 + $0x58] sm:$0xff]
    %v2424 = vld [vmem:[%s6 + $0x60] sm:$0x33]
    %v2425 = vld [vmem:[%s7] sm:$0x3]
    %v2427 = vlaneseq
    %v2428 = vshrl.u32 %v2427, 7
    %v2429 = vsub.s32 0, %v2428
    %v2430 = vrot.slane %v2425, %v2429
    %v2431 = vlaneseq
    %v2432 = vshrl.u32 %v2431, 7
    %v2433 = vsub.s32 1, %v2432
    %v2434 = vrot.slane %v2425, %v2433
    %v2450 = vunpack.c.l.b16 %v2412
    %v2451 = vunpack.c.h.b16 %v2412
    %v2452 = vunpack.c.l.b16 %v2413
    %v2453 = vunpack.c.h.b16 %v2413
    %v2454 = vunpack.c.l.b16 %v2414
    %v2455 = vunpack.c.h.b16 %v2414
    %v2456 = vunpack.c.l.b16 %v2415
    %v2457 = vunpack.c.h.b16 %v2415
    %v2458 = vunpack.c.l.b16 %v2416
    %v2459 = vunpack.c.h.b16 %v2416
    %v2460 = vunpack.c.l.b16 %v2417
    %v2461 = vunpack.c.h.b16 %v2417
    %v2462 = vunpack.c.l.b16 %v2418
    %v2463 = vunpack.c.h.b16 %v2418
    %v2464 = vunpack.c.l.b16 %v2419
    %v2465 = vunpack.c.h.b16 %v2419
    %v2466 = vunpack.c.l.b16 %v2420
    %v2467 = vunpack.c.h.b16 %v2420
    %v2468 = vunpack.c.l.b16 %v2421
    %v2469 = vunpack.c.h.b16 %v2421
    %v2470 = vunpack.c.l.b16 %v2422
    %v2471 = vunpack.c.h.b16 %v2422
    %v2472 = vunpack.c.l.b16 %v2423
    %v2473 = vunpack.c.h.b16 %v2423
    %v2474 = vunpack.c.l.b16 %v2424
    %v2475 = vunpack.c.h.b16 %v2424
    %v2476 = vpack.c.b16 %v2452, %v2450
    %v2477 = vpack.c.b16 %v2453, %v2451
    %v2478 = vpack.c.b16 %v2456, %v2454
    %v2479 = vpack.c.b16 %v2457, %v2455
    %v2480 = vpack.c.b16 %v2460, %v2458
    %v2481 = vpack.c.b16 %v2461, %v2459
    %v2482 = vpack.c.b16 %v2464, %v2462
    %v2483 = vpack.c.b16 %v2465, %v2463
    %v2484 = vpack.c.b16 %v2468, %v2466
    %v2485 = vpack.c.b16 %v2469, %v2467
    %v2486 = vpack.c.b16 %v2472, %v2470
    %v2487 = vpack.c.b16 %v2473, %v2471
    %v2488 = vpack.c.b16 %v2474, %v2474
    %v2489 = vpack.c.b16 %v2475, %v2475
    %v2503 = vsel %vm1366, %v2411, 0
    %vm2505 = vcmask 1041408
    %v2507 = vsel %vm2505, %v2488, 0
    %v2510 = vsel %vm2505, %v2489, 0
    %2512 = vmatprep.subr.bf16.mxu0 0
    %2513 = vmatpush1.bf16.msra.mxu0 0
    %2514 = vmatprep.subr.bf16.mxu0 %v2510
    %2515 = vmatpush1.bf16.msra.mxu0 %v2507
    %2516 = vmatprep.subr.bf16.mxu0 %v2487
    %2517 = vmatpush1.bf16.msra.mxu0 %v2486
    %2518 = vmatprep.subr.bf16.mxu0 %v2485
    %2519 = vmatpush1.bf16.msra.mxu0 %v2484
    %2520 = vmatprep.subr.bf16.mxu0 %v2483
    %2521 = vmatpush1.bf16.msra.mxu0 %v2482
    %2522 = vmatprep.subr.bf16.mxu0 %v2481
    %2523 = vmatpush1.bf16.msra.mxu0 %v2480
    %2524 = vmatprep.subr.bf16.mxu0 %v2479
    %2525 = vmatpush1.bf16.msra.mxu0 %v2478
    %2526 = vmatprep.subr.bf16.mxu0 %v2477
    %2527 = vmatpush1.bf16.msra.mxu0 %v2476
    %2528 = vmatprep.subr.bf16.mxu0 0
    %2529 = vmatpush2.bf16.msra.mxu0 0
    %2530 = vmatprep.subr.bf16.mxu0 0
    %2531 = vmatpush2.bf16.msra.mxu0 0
    %2532 = vmatprep.subr.bf16.mxu0 0
    %2533 = vmatpush2.bf16.msra.mxu0 0
    %2534 = vmatprep.subr.bf16.mxu0 0
    %2535 = vmatpush2.bf16.msra.mxu0 0
    %2536 = vmatprep.subr.bf16.mxu0 0
    %2537 = vmatpush2.bf16.msra.mxu0 0
    %2538 = vmatprep.subr.bf16.mxu0 0
    %2539 = vmatpush2.bf16.msra.mxu0 0
    %2540 = vmatprep.subr.bf16.mxu0 0
    %2541 = vmatpush2.bf16.msra.mxu0 0
    %2542 = vmatprep.subr.bf16.mxu0 0
    %2543 = vmatpush2.bf16.msra.mxu0 0
    %2544 = vmatprep.mubr.bf16.mxu0 0
    %2545 = vmatmul.mubr.bf16.gmra.mxu0 %v2503
    %v2546 = vpop.f32.mrf.mxu0
    %v2547 = vadd.f32 %v2430, %v2546
    %v2548 = vpop.f32.mrf.mxu0
    %v2549 = vadd.f32 %v2434, %v2548
    %v2550 = vpop.f32.mrf.mxu0
    %v2551 = vadd.f32 %v2430, %v2550
    %v2552 = vpop.f32.mrf.mxu0
    %v2553 = vadd.f32 %v2434, %v2552
    %2554 = vdwg.mxu0
    %v2555 = vpack.c.bf16 %v2551, %v2547
    %2557 = vrot.lane.b32.xlu0 %v2555, 88
    %v2558 = vpop.permute.xlu0 %2557
    %vm2559 = vcmask 80896
    %v2561 = vsel %vm2559, %v2555, 0
    %v2564 = vsel %vm2559, %v2558, 0
    %2566 = vmatprep.subr.bf16.mxu0 0
    %2567 = vmatpush1.bf16.xpose.msra.mxu0 0
    %2568 = vmatprep.subr.bf16.mxu0 0
    %2569 = vmatpush1.bf16.xpose.msra.mxu0 0
    %2570 = vmatprep.subr.bf16.mxu0 0
    %2571 = vmatpush1.bf16.xpose.msra.mxu0 0
    %2572 = vmatprep.subr.bf16.mxu0 0
    %2573 = vmatpush1.bf16.xpose.msra.mxu0 0
    %2574 = vmatprep.subr.bf16.mxu0 0
    %2575 = vmatpush1.bf16.xpose.msra.mxu0 0
    %2576 = vmatprep.subr.bf16.mxu0 0
    %2577 = vmatpush1.bf16.xpose.msra.mxu0 0
    %2578 = vmatprep.subr.bf16.mxu0 0
    %2579 = vmatpush1.bf16.xpose.msra.mxu0 0
    %2580 = vmatprep.subr.bf16.mxu0 0
    %2581 = vmatpush1.bf16.xpose.msra.mxu0 %v2564
    %2582 = vmatprep.subr.bf16.mxu0 0
    %2583 = vmatpush2.bf16.xpose.msra.mxu0 0
    %2584 = vmatprep.subr.bf16.mxu0 0
    %2585 = vmatpush2.bf16.xpose.msra.mxu0 0
    %2586 = vmatprep.subr.bf16.mxu0 0
    %2587 = vmatpush2.bf16.xpose.msra.mxu0 0
    %2588 = vmatprep.subr.bf16.mxu0 0
    %2589 = vmatpush2.bf16.xpose.msra.mxu0 0
    %2590 = vmatprep.subr.bf16.mxu0 0
    %2591 = vmatpush2.bf16.xpose.msra.mxu0 0
    %2592 = vmatprep.subr.bf16.mxu0 0
    %2593 = vmatpush2.bf16.xpose.msra.mxu0 0
    %2594 = vmatprep.subr.bf16.mxu0 0
    %2595 = vmatpush2.bf16.xpose.msra.mxu0 0
    %2596 = vmatprep.subr.bf16.mxu0 0
    %2597 = vmatpush2.bf16.xpose.msra.mxu0 0
    %2598 = vmatprep.mubr.bf16.mxu0 0
    %2599 = vmatmul.mubr.bf16.gmra.mxu0 %v2561
    %v2600 = vpop.f32.mrf.mxu0
    %v2601 = vadd.f32 %v139, %v2600
    %v2602 = vpop.f32.mrf.mxu0
    %v2603 = vpop.f32.mrf.mxu0
    %v2604 = vadd.f32 %v140, %v2603
    %v2605 = vpop.f32.mrf.mxu0
    %2606 = vdwg.mxu0
    %v2607 = vsel %vm808, %v2601, -inf
    %2608 = vmax.xlane.f32.xlu0 %v2607
    %v2609 = vpop.xlane.xlu0 %2608
    %v2610 = vsel %vm808, %v2604, -inf
    %2611 = vmax.xlane.f32.xlu0 %v2610
    %v2612 = vpop.xlane.xlu0 %2611
    %v2613 = vsub.f32 %v2601, %v2609
    %v2614 = vsub.f32 %v2604, %v2612
    %v2615 = vmul.f32 %v2613, 1.442695
    %v2616 = vpow.pop %v2615
    %v2617 = vmul.f32 %v2614, 1.442695
    %v2618 = vpow.pop %v2617
    %v2619 = vmul.f32 %v2616, %v137
    %v2620 = vmul.f32 %v2618, %v138
    %v2621 = vsel %vm808, %v2619, 0.0
    %2622 = vadd.xlane.f32.xlu0 %v2621
    %v2623 = vpop.xlane.xlu0 %2622
    %v2624 = vsel %vm808, %v2620, 0.0
    %2625 = vadd.xlane.f32.xlu0 %v2624
    %v2626 = vpop.xlane.xlu0 %2625
    %vm2627 = vcmp.eq.f32.partialorder %v2623, 0.0
    %vm2628 = vcmp.eq.f32.partialorder %v2626, 0.0
    %v2629 = vsel %vm2627, 1.0, %v2623
    %v2630 = vsel %vm2628, 1.0, %v2626
    %v2631 = vpack.c.bf16 %v2620, %v2619
    %2632 = vrot.lane.b32.xlu0 %v2555, 48
    %v2633 = vpop.permute.xlu0 %2632
    %v2636 = vsel %vm808, %v2631, 0
    %2638 = vmatprep.subr.bf16.mxu0 0
    %2639 = vmatpush1.bf16.msra.mxu0 0
    %2640 = vmatprep.subr.bf16.mxu0 0
    %2641 = vmatpush1.bf16.msra.mxu0 0
    %2642 = vmatprep.subr.bf16.mxu0 0
    %2643 = vmatpush1.bf16.msra.mxu0 0
    %2644 = vmatprep.subr.bf16.mxu0 0
    %2645 = vmatpush1.bf16.msra.mxu0 0
    %2646 = vmatprep.subr.bf16.mxu0 0
    %2647 = vmatpush1.bf16.msra.mxu0 0
    %2648 = vmatprep.subr.bf16.mxu0 0
    %2649 = vmatpush1.bf16.msra.mxu0 0
    %2650 = vmatprep.subr.bf16.mxu0 0
    %2651 = vmatpush1.bf16.msra.mxu0 0
    %2652 = vmatprep.subr.bf16.mxu0 0
    %2653 = vmatpush1.bf16.msra.mxu0 %v2633
    %2654 = vmatprep.subr.bf16.mxu0 0
    %2655 = vmatpush2.bf16.msra.mxu0 0
    %2656 = vmatprep.subr.bf16.mxu0 0
    %2657 = vmatpush2.bf16.msra.mxu0 0
    %2658 = vmatprep.subr.bf16.mxu0 0
    %2659 = vmatpush2.bf16.msra.mxu0 0
    %2660 = vmatprep.subr.bf16.mxu0 0
    %2661 = vmatpush2.bf16.msra.mxu0 0
    %2662 = vmatprep.subr.bf16.mxu0 0
    %2663 = vmatpush2.bf16.msra.mxu0 0
    %2664 = vmatprep.subr.bf16.mxu0 0
    %2665 = vmatpush2.bf16.msra.mxu0 0
    %2666 = vmatprep.subr.bf16.mxu0 0
    %2667 = vmatpush2.bf16.msra.mxu0 0
    %2668 = vmatprep.subr.bf16.mxu0 0
    %2669 = vmatpush2.bf16.msra.mxu0 0
    %2670 = vmatprep.mubr.bf16.mxu0 0
    %2671 = vmatmul.mubr.bf16.gmra.mxu0 %v2636
    %v2672 = vpop.f32.mrf.mxu0
    %v2673 = vadd.f32 0.0, %v2672
    %v2674 = vpop.f32.mrf.mxu0
    %v2675 = vpop.f32.mrf.mxu0
    %v2676 = vadd.f32 0.0, %v2675
    %v2677 = vpop.f32.mrf.mxu0
    %2678 = vdwg.mxu0
    %v2679 = vrcp.pop %v2629
    %v2680 = vrcp.pop %v2630
    %v2681 = vmul.f32 %v2673, %v2679
    %v2682 = vmul.f32 %v2676, %v2680
    %2687 = vrot.lane.b32.xlu0 %v2547, 8
    %v2688 = vpop.permute.xlu0 %2687
    %2689 = vrot.lane.b32.xlu0 %v2549, 8
    %v2690 = vpop.permute.xlu0 %2689
    %2691 = vrot.lane.b32.xlu0 %v2551, 8
    %v2692 = vpop.permute.xlu0 %2691
    %2693 = vrot.lane.b32.xlu0 %v2553, 8
    %v2694 = vpop.permute.xlu0 %2693
    %vm2695 = vcmask 64512
    %v2696 = vsel %vm2695, %v2688, %v2690
    %v2697 = vsel %vm2695, %v2692, %v2694
    %v2700 = vadd.f32 %v2681, %v2696
    %v2701 = vadd.f32 %v2682, %v2697
    %2702 = vrot.lane.b32.xlu0 %v2555, 118
    %v2703 = vpop.permute.xlu0 %2702
    %2704 = vrot.lane.b32.xlu0 %v2555, 78
    %v2705 = vpop.permute.xlu0 %2704
    %v2707 = vsel %vm2559, %v2703, 0
    %v2710 = vsel %vm2559, %v2705, 0
    %2712 = vmatprep.subr.bf16.mxu0 0
    %2713 = vmatpush1.bf16.xpose.msra.mxu0 0
    %2714 = vmatprep.subr.bf16.mxu0 0
    %2715 = vmatpush1.bf16.xpose.msra.mxu0 0
    %2716 = vmatprep.subr.bf16.mxu0 0
    %2717 = vmatpush1.bf16.xpose.msra.mxu0 0
    %2718 = vmatprep.subr.bf16.mxu0 0
    %2719 = vmatpush1.bf16.xpose.msra.mxu0 0
    %2720 = vmatprep.subr.bf16.mxu0 0
    %2721 = vmatpush1.bf16.xpose.msra.mxu0 0
    %2722 = vmatprep.subr.bf16.mxu0 0
    %2723 = vmatpush1.bf16.xpose.msra.mxu0 0
    %2724 = vmatprep.subr.bf16.mxu0 0
    %2725 = vmatpush1.bf16.xpose.msra.mxu0 0
    %2726 = vmatprep.subr.bf16.mxu0 0
    %2727 = vmatpush1.bf16.xpose.msra.mxu0 %v2710
    %2728 = vmatprep.subr.bf16.mxu0 0
    %2729 = vmatpush2.bf16.xpose.msra.mxu0 0
    %2730 = vmatprep.subr.bf16.mxu0 0
    %2731 = vmatpush2.bf16.xpose.msra.mxu0 0
    %2732 = vmatprep.subr.bf16.mxu0 0
    %2733 = vmatpush2.bf16.xpose.msra.mxu0 0
    %2734 = vmatprep.subr.bf16.mxu0 0
    %2735 = vmatpush2.bf16.xpose.msra.mxu0 0
    %2736 = vmatprep.subr.bf16.mxu0 0
    %2737 = vmatpush2.bf16.xpose.msra.mxu0 0
    %2738 = vmatprep.subr.bf16.mxu0 0
    %2739 = vmatpush2.bf16.xpose.msra.mxu0 0
    %2740 = vmatprep.subr.bf16.mxu0 0
    %2741 = vmatpush2.bf16.xpose.msra.mxu0 0
    %2742 = vmatprep.subr.bf16.mxu0 0
    %2743 = vmatpush2.bf16.xpose.msra.mxu0 0
    %2744 = vmatprep.mubr.bf16.mxu0 0
    %2745 = vmatmul.mubr.bf16.gmra.mxu0 %v2707
    %v2746 = vpop.f32.mrf.mxu0
    %v2747 = vadd.f32 %v139, %v2746
    %v2748 = vpop.f32.mrf.mxu0
    %v2749 = vpop.f32.mrf.mxu0
    %v2750 = vadd.f32 %v140, %v2749
    %v2751 = vpop.f32.mrf.mxu0
    %2752 = vdwg.mxu0
    %v2753 = vsel %vm808, %v2747, -inf
    %2754 = vmax.xlane.f32.xlu0 %v2753
    %v2755 = vpop.xlane.xlu0 %2754
    %v2756 = vsel %vm808, %v2750, -inf
    %2757 = vmax.xlane.f32.xlu0 %v2756
    %v2758 = vpop.xlane.xlu0 %2757
    %v2759 = vsub.f32 %v2747, %v2755
    %v2760 = vsub.f32 %v2750, %v2758
    %v2761 = vmul.f32 %v2759, 1.442695
    %v2762 = vpow.pop %v2761
    %v2763 = vmul.f32 %v2760, 1.442695
    %v2764 = vpow.pop %v2763
    %v2765 = vmul.f32 %v2762, %v137
    %v2766 = vmul.f32 %v2764, %v138
    %v2767 = vsel %vm808, %v2765, 0.0
    %2768 = vadd.xlane.f32.xlu0 %v2767
    %v2769 = vpop.xlane.xlu0 %2768
    %v2770 = vsel %vm808, %v2766, 0.0
    %2771 = vadd.xlane.f32.xlu0 %v2770
    %v2772 = vpop.xlane.xlu0 %2771
    %vm2773 = vcmp.eq.f32.partialorder %v2769, 0.0
    %vm2774 = vcmp.eq.f32.partialorder %v2772, 0.0
    %v2775 = vsel %vm2773, 1.0, %v2769
    %v2776 = vsel %vm2774, 1.0, %v2772
    %v2777 = vpack.c.bf16 %v2766, %v2765
    %2778 = vrot.lane.b32.xlu0 %v2555, 38
    %v2779 = vpop.permute.xlu0 %2778
    %v2782 = vsel %vm808, %v2777, 0
    %2784 = vmatprep.subr.bf16.mxu0 0
    %2785 = vmatpush1.bf16.msra.mxu0 0
    %2786 = vmatprep.subr.bf16.mxu0 0
    %2787 = vmatpush1.bf16.msra.mxu0 0
    %2788 = vmatprep.subr.bf16.mxu0 0
    %2789 = vmatpush1.bf16.msra.mxu0 0
    %2790 = vmatprep.subr.bf16.mxu0 0
    %2791 = vmatpush1.bf16.msra.mxu0 0
    %2792 = vmatprep.subr.bf16.mxu0 0
    %2793 = vmatpush1.bf16.msra.mxu0 0
    %2794 = vmatprep.subr.bf16.mxu0 0
    %2795 = vmatpush1.bf16.msra.mxu0 0
    %2796 = vmatprep.subr.bf16.mxu0 0
    %2797 = vmatpush1.bf16.msra.mxu0 0
    %2798 = vmatprep.subr.bf16.mxu0 0
    %2799 = vmatpush1.bf16.msra.mxu0 %v2779
    %2800 = vmatprep.subr.bf16.mxu0 0
    %2801 = vmatpush2.bf16.msra.mxu0 0
    %2802 = vmatprep.subr.bf16.mxu0 0
    %2803 = vmatpush2.bf16.msra.mxu0 0
    %2804 = vmatprep.subr.bf16.mxu0 0
    %2805 = vmatpush2.bf16.msra.mxu0 0
    %2806 = vmatprep.subr.bf16.mxu0 0
    %2807 = vmatpush2.bf16.msra.mxu0 0
    %2808 = vmatprep.subr.bf16.mxu0 0
    %2809 = vmatpush2.bf16.msra.mxu0 0
    %2810 = vmatprep.subr.bf16.mxu0 0
    %2811 = vmatpush2.bf16.msra.mxu0 0
    %2812 = vmatprep.subr.bf16.mxu0 0
    %2813 = vmatpush2.bf16.msra.mxu0 0
    %2814 = vmatprep.subr.bf16.mxu0 0
    %2815 = vmatpush2.bf16.msra.mxu0 0
    %2816 = vmatprep.mubr.bf16.mxu0 0
    %2817 = vmatmul.mubr.bf16.gmra.mxu0 %v2782
    %v2818 = vpop.f32.mrf.mxu0
    %v2819 = vadd.f32 0.0, %v2818
    %v2820 = vpop.f32.mrf.mxu0
    %v2821 = vpop.f32.mrf.mxu0
    %v2822 = vadd.f32 0.0, %v2821
    %v2823 = vpop.f32.mrf.mxu0
    %2824 = vdwg.mxu0
    %v2825 = vrcp.pop %v2775
    %v2826 = vrcp.pop %v2776
    %v2827 = vmul.f32 %v2819, %v2825
    %v2828 = vmul.f32 %v2822, %v2826
    %2829 = vrot.lane.b32.xlu0 %v2549, 126
    %v2830 = vpop.permute.xlu0 %2829
    %2831 = vrot.lane.b32.xlu0 %v2553, 126
    %v2832 = vpop.permute.xlu0 %2831
    %v2835 = vadd.f32 %v2827, %v2830
    %v2836 = vadd.f32 %v2828, %v2832
    %2837 = vrot.lane.b32.xlu0 %v2555, 108
    %v2838 = vpop.permute.xlu0 %2837
    %2839 = vrot.lane.b32.xlu0 %v2555, 68
    %v2840 = vpop.permute.xlu0 %2839
    %v2842 = vsel %vm2559, %v2838, 0
    %v2845 = vsel %vm2559, %v2840, 0
    %2847 = vmatprep.subr.bf16.mxu0 0
    %2848 = vmatpush1.bf16.xpose.msra.mxu0 0
    %2849 = vmatprep.subr.bf16.mxu0 0
    %2850 = vmatpush1.bf16.xpose.msra.mxu0 0
    %2851 = vmatprep.subr.bf16.mxu0 0
    %2852 = vmatpush1.bf16.xpose.msra.mxu0 0
    %2853 = vmatprep.subr.bf16.mxu0 0
    %2854 = vmatpush1.bf16.xpose.msra.mxu0 0
    %2855 = vmatprep.subr.bf16.mxu0 0
    %2856 = vmatpush1.bf16.xpose.msra.mxu0 0
    %2857 = vmatprep.subr.bf16.mxu0 0
    %2858 = vmatpush1.bf16.xpose.msra.mxu0 0
    %2859 = vmatprep.subr.bf16.mxu0 0
    %2860 = vmatpush1.bf16.xpose.msra.mxu0 0
    %2861 = vmatprep.subr.bf16.mxu0 0
    %2862 = vmatpush1.bf16.xpose.msra.mxu0 %v2845
    %2863 = vmatprep.subr.bf16.mxu0 0
    %2864 = vmatpush2.bf16.xpose.msra.mxu0 0
    %2865 = vmatprep.subr.bf16.mxu0 0
    %2866 = vmatpush2.bf16.xpose.msra.mxu0 0
    %2867 = vmatprep.subr.bf16.mxu0 0
    %2868 = vmatpush2.bf16.xpose.msra.mxu0 0
    %2869 = vmatprep.subr.bf16.mxu0 0
    %2870 = vmatpush2.bf16.xpose.msra.mxu0 0
    %2871 = vmatprep.subr.bf16.mxu0 0
    %2872 = vmatpush2.bf16.xpose.msra.mxu0 0
    %2873 = vmatprep.subr.bf16.mxu0 0
    %2874 = vmatpush2.bf16.xpose.msra.mxu0 0
    %2875 = vmatprep.subr.bf16.mxu0 0
    %2876 = vmatpush2.bf16.xpose.msra.mxu0 0
    %2877 = vmatprep.subr.bf16.mxu0 0
    %2878 = vmatpush2.bf16.xpose.msra.mxu0 0
    %2879 = vmatprep.mubr.bf16.mxu0 0
    %2880 = vmatmul.mubr.bf16.gmra.mxu0 %v2842
    %v2881 = vpop.f32.mrf.mxu0
    %v2882 = vadd.f32 %v139, %v2881
    %v2883 = vpop.f32.mrf.mxu0
    %v2884 = vpop.f32.mrf.mxu0
    %v2885 = vadd.f32 %v140, %v2884
    %v2886 = vpop.f32.mrf.mxu0
    %2887 = vdwg.mxu0
    %v2888 = vsel %vm808, %v2882, -inf
    %2889 = vmax.xlane.f32.xlu0 %v2888
    %v2890 = vpop.xlane.xlu0 %2889
    %v2891 = vsel %vm808, %v2885, -inf
    %2892 = vmax.xlane.f32.xlu0 %v2891
    %v2893 = vpop.xlane.xlu0 %2892
    %v2894 = vsub.f32 %v2882, %v2890
    %v2895 = vsub.f32 %v2885, %v2893
    %v2896 = vmul.f32 %v2894, 1.442695
    %v2897 = vpow.pop %v2896
    %v2898 = vmul.f32 %v2895, 1.442695
    %v2899 = vpow.pop %v2898
    %v2900 = vmul.f32 %v2897, %v137
    %v2901 = vmul.f32 %v2899, %v138
    %v2902 = vsel %vm808, %v2900, 0.0
    %2903 = vadd.xlane.f32.xlu0 %v2902
    %v2904 = vpop.xlane.xlu0 %2903
    %v2905 = vsel %vm808, %v2901, 0.0
    %2906 = vadd.xlane.f32.xlu0 %v2905
    %v2907 = vpop.xlane.xlu0 %2906
    %vm2908 = vcmp.eq.f32.partialorder %v2904, 0.0
    %vm2909 = vcmp.eq.f32.partialorder %v2907, 0.0
    %v2910 = vsel %vm2908, 1.0, %v2904
    %v2911 = vsel %vm2909, 1.0, %v2907
    %v2912 = vpack.c.bf16 %v2901, %v2900
    %2913 = vrot.lane.b32.xlu0 %v2555, 28
    %v2914 = vpop.permute.xlu0 %2913
    %v2917 = vsel %vm808, %v2912, 0
    %2919 = vmatprep.subr.bf16.mxu0 0
    %2920 = vmatpush1.bf16.msra.mxu0 0
    %2921 = vmatprep.subr.bf16.mxu0 0
    %2922 = vmatpush1.bf16.msra.mxu0 0
    %2923 = vmatprep.subr.bf16.mxu0 0
    %2924 = vmatpush1.bf16.msra.mxu0 0
    %2925 = vmatprep.subr.bf16.mxu0 0
    %2926 = vmatpush1.bf16.msra.mxu0 0
    %2927 = vmatprep.subr.bf16.mxu0 0
    %2928 = vmatpush1.bf16.msra.mxu0 0
    %2929 = vmatprep.subr.bf16.mxu0 0
    %2930 = vmatpush1.bf16.msra.mxu0 0
    %2931 = vmatprep.subr.bf16.mxu0 0
    %2932 = vmatpush1.bf16.msra.mxu0 0
    %2933 = vmatprep.subr.bf16.mxu0 0
    %2934 = vmatpush1.bf16.msra.mxu0 %v2914
    %2935 = vmatprep.subr.bf16.mxu0 0
    %2936 = vmatpush2.bf16.msra.mxu0 0
    %2937 = vmatprep.subr.bf16.mxu0 0
    %2938 = vmatpush2.bf16.msra.mxu0 0
    %2939 = vmatprep.subr.bf16.mxu0 0
    %2940 = vmatpush2.bf16.msra.mxu0 0
    %2941 = vmatprep.subr.bf16.mxu0 0
    %2942 = vmatpush2.bf16.msra.mxu0 0
    %2943 = vmatprep.subr.bf16.mxu0 0
    %2944 = vmatpush2.bf16.msra.mxu0 0
    %2945 = vmatprep.subr.bf16.mxu0 0
    %2946 = vmatpush2.bf16.msra.mxu0 0
    %2947 = vmatprep.subr.bf16.mxu0 0
    %2948 = vmatpush2.bf16.msra.mxu0 0
    %2949 = vmatprep.subr.bf16.mxu0 0
    %2950 = vmatpush2.bf16.msra.mxu0 0
    %2951 = vmatprep.mubr.bf16.mxu0 0
    %2952 = vmatmul.mubr.bf16.gmra.mxu0 %v2917
    %v2953 = vpop.f32.mrf.mxu0
    %v2954 = vadd.f32 0.0, %v2953
    %v2955 = vpop.f32.mrf.mxu0
    %v2956 = vpop.f32.mrf.mxu0
    %v2957 = vadd.f32 0.0, %v2956
    %v2958 = vpop.f32.mrf.mxu0
    %2959 = vdwg.mxu0
    %v2960 = vrcp.pop %v2910
    %v2961 = vrcp.pop %v2911
    %v2962 = vmul.f32 %v2954, %v2960
    %v2963 = vmul.f32 %v2957, %v2961
    %2964 = vrot.lane.b32.xlu0 %v2549, 116
    %v2965 = vpop.permute.xlu0 %2964
    %2966 = vrot.lane.b32.xlu0 %v2553, 116
    %v2967 = vpop.permute.xlu0 %2966
    %v2970 = vadd.f32 %v2962, %v2965
    %v2971 = vadd.f32 %v2963, %v2967
    %2972 = vrot.lane.b32.xlu0 %v2555, 98
    %v2973 = vpop.permute.xlu0 %2972
    %2974 = vrot.lane.b32.xlu0 %v2555, 58
    %v2975 = vpop.permute.xlu0 %2974
    %v2977 = vsel %vm2559, %v2973, 0
    %v2980 = vsel %vm2559, %v2975, 0
    %2982 = vmatprep.subr.bf16.mxu0 0
    %2983 = vmatpush1.bf16.xpose.msra.mxu0 0
    %2984 = vmatprep.subr.bf16.mxu0 0
    %2985 = vmatpush1.bf16.xpose.msra.mxu0 0
    %2986 = vmatprep.subr.bf16.mxu0 0
    %2987 = vmatpush1.bf16.xpose.msra.mxu0 0
    %2988 = vmatprep.subr.bf16.mxu0 0
    %2989 = vmatpush1.bf16.xpose.msra.mxu0 0
    %2990 = vmatprep.subr.bf16.mxu0 0
    %2991 = vmatpush1.bf16.xpose.msra.mxu0 0
    %2992 = vmatprep.subr.bf16.mxu0 0
    %2993 = vmatpush1.bf16.xpose.msra.mxu0 0
    %2994 = vmatprep.subr.bf16.mxu0 0
    %2995 = vmatpush1.bf16.xpose.msra.mxu0 0
    %2996 = vmatprep.subr.bf16.mxu0 0
    %2997 = vmatpush1.bf16.xpose.msra.mxu0 %v2980
    %2998 = vmatprep.subr.bf16.mxu0 0
    %2999 = vmatpush2.bf16.xpose.msra.mxu0 0
    %3000 = vmatprep.subr.bf16.mxu0 0
    %3001 = vmatpush2.bf16.xpose.msra.mxu0 0
    %3002 = vmatprep.subr.bf16.mxu0 0
    %3003 = vmatpush2.bf16.xpose.msra.mxu0 0
    %3004 = vmatprep.subr.bf16.mxu0 0
    %3005 = vmatpush2.bf16.xpose.msra.mxu0 0
    %3006 = vmatprep.subr.bf16.mxu0 0
    %3007 = vmatpush2.bf16.xpose.msra.mxu0 0
    %3008 = vmatprep.subr.bf16.mxu0 0
    %3009 = vmatpush2.bf16.xpose.msra.mxu0 0
    %3010 = vmatprep.subr.bf16.mxu0 0
    %3011 = vmatpush2.bf16.xpose.msra.mxu0 0
    %3012 = vmatprep.subr.bf16.mxu0 0
    %3013 = vmatpush2.bf16.xpose.msra.mxu0 0
    %3014 = vmatprep.mubr.bf16.mxu0 0
    %3015 = vmatmul.mubr.bf16.gmra.mxu0 %v2977
    %v3016 = vpop.f32.mrf.mxu0
    %v3017 = vadd.f32 %v139, %v3016
    %v3018 = vpop.f32.mrf.mxu0
    %v3019 = vpop.f32.mrf.mxu0
    %v3020 = vadd.f32 %v140, %v3019
    %v3021 = vpop.f32.mrf.mxu0
    %3022 = vdwg.mxu0
    %v3023 = vsel %vm808, %v3017, -inf
    %3024 = vmax.xlane.f32.xlu0 %v3023
    %v3025 = vpop.xlane.xlu0 %3024
    %v3026 = vsel %vm808, %v3020, -inf
    %3027 = vmax.xlane.f32.xlu0 %v3026
    %v3028 = vpop.xlane.xlu0 %3027
    %v3029 = vsub.f32 %v3017, %v3025
    %v3030 = vsub.f32 %v3020, %v3028
    %v3031 = vmul.f32 %v3029, 1.442695
    %v3032 = vpow.pop %v3031
    %v3033 = vmul.f32 %v3030, 1.442695
    %v3034 = vpow.pop %v3033
    %v3035 = vmul.f32 %v3032, %v137
    %v3036 = vmul.f32 %v3034, %v138
    %v3037 = vsel %vm808, %v3035, 0.0
    %3038 = vadd.xlane.f32.xlu0 %v3037
    %v3039 = vpop.xlane.xlu0 %3038
    %v3040 = vsel %vm808, %v3036, 0.0
    %3041 = vadd.xlane.f32.xlu0 %v3040
    %v3042 = vpop.xlane.xlu0 %3041
    %vm3043 = vcmp.eq.f32.partialorder %v3039, 0.0
    %vm3044 = vcmp.eq.f32.partialorder %v3042, 0.0
    %v3045 = vsel %vm3043, 1.0, %v3039
    %v3046 = vsel %vm3044, 1.0, %v3042
    %v3047 = vpack.c.bf16 %v3036, %v3035
    %3048 = vrot.lane.b32.xlu0 %v2555, 18
    %v3049 = vpop.permute.xlu0 %3048
    %v3052 = vsel %vm808, %v3047, 0
    %3054 = vmatprep.subr.bf16.mxu0 0
    %3055 = vmatpush1.bf16.msra.mxu0 0
    %3056 = vmatprep.subr.bf16.mxu0 0
    %3057 = vmatpush1.bf16.msra.mxu0 0
    %3058 = vmatprep.subr.bf16.mxu0 0
    %3059 = vmatpush1.bf16.msra.mxu0 0
    %3060 = vmatprep.subr.bf16.mxu0 0
    %3061 = vmatpush1.bf16.msra.mxu0 0
    %3062 = vmatprep.subr.bf16.mxu0 0
    %3063 = vmatpush1.bf16.msra.mxu0 0
    %3064 = vmatprep.subr.bf16.mxu0 0
    %3065 = vmatpush1.bf16.msra.mxu0 0
    %3066 = vmatprep.subr.bf16.mxu0 0
    %3067 = vmatpush1.bf16.msra.mxu0 0
    %3068 = vmatprep.subr.bf16.mxu0 0
    %3069 = vmatpush1.bf16.msra.mxu0 %v3049
    %3070 = vmatprep.subr.bf16.mxu0 0
    %3071 = vmatpush2.bf16.msra.mxu0 0
    %3072 = vmatprep.subr.bf16.mxu0 0
    %3073 = vmatpush2.bf16.msra.mxu0 0
    %3074 = vmatprep.subr.bf16.mxu0 0
    %3075 = vmatpush2.bf16.msra.mxu0 0
    %3076 = vmatprep.subr.bf16.mxu0 0
    %3077 = vmatpush2.bf16.msra.mxu0 0
    %3078 = vmatprep.subr.bf16.mxu0 0
    %3079 = vmatpush2.bf16.msra.mxu0 0
    %3080 = vmatprep.subr.bf16.mxu0 0
    %3081 = vmatpush2.bf16.msra.mxu0 0
    %3082 = vmatprep.subr.bf16.mxu0 0
    %3083 = vmatpush2.bf16.msra.mxu0 0
    %3084 = vmatprep.subr.bf16.mxu0 0
    %3085 = vmatpush2.bf16.msra.mxu0 0
    %3086 = vmatprep.mubr.bf16.mxu0 0
    %3087 = vmatmul.mubr.bf16.gmra.mxu0 %v3052
    %v3088 = vpop.f32.mrf.mxu0
    %v3089 = vadd.f32 0.0, %v3088
    %v3090 = vpop.f32.mrf.mxu0
    %v3091 = vpop.f32.mrf.mxu0
    %v3092 = vadd.f32 0.0, %v3091
    %v3093 = vpop.f32.mrf.mxu0
    %3094 = vdwg.mxu0
    %v3095 = vrcp.pop %v3045
    %v3096 = vrcp.pop %v3046
    %v3097 = vmul.f32 %v3089, %v3095
    %v3098 = vmul.f32 %v3092, %v3096
    %3099 = vrot.lane.b32.xlu0 %v2549, 106
    %v3100 = vpop.permute.xlu0 %3099
    %3101 = vrot.lane.b32.xlu0 %v2553, 106
    %v3102 = vpop.permute.xlu0 %3101
    %v3105 = vadd.f32 %v3097, %v3100
    %v3106 = vadd.f32 %v3098, %v3102
    %3109 = vrot.lane.b32.xlu0 %v2835, 10
    %v3110 = vpop.permute.xlu0 %3109
    %3111 = vrot.lane.b32.xlu0 %v2836, 10
    %v3112 = vpop.permute.xlu0 %3111
    %3117 = vrot.lane.b32.xlu0 %v2970, 20
    %v3118 = vpop.permute.xlu0 %3117
    %3119 = vrot.lane.b32.xlu0 %v2971, 20
    %v3120 = vpop.permute.xlu0 %3119
    %3125 = vrot.lane.b32.xlu0 %v3105, 30
    %v3126 = vpop.permute.xlu0 %3125
    %3127 = vrot.lane.b32.xlu0 %v3106, 30
    %v3128 = vpop.permute.xlu0 %3127
    %v3131 = vsel %vm2559, %v2700, %v3110
    %v3132 = vsel %vm2559, %v2701, %v3112
    %vm3133 = vcmask 162816
    %v3134 = vsel %vm3133, %v3131, %v3118
    %v3135 = vsel %vm3133, %v3132, %v3120
    %vm3136 = vcmask 244736
    %v3137 = vsel %vm3136, %v3134, %v3126
    %v3138 = vsel %vm3136, %v3135, %v3128
    %v3139 = vsel %vm898, %v3137, -inf
    %3140 = vmax.xlane.f32.xlu0 %v3139
    %v3141 = vpop.xlane.xlu0 %3140
    %v3142 = vsel %vm898, %v3138, -inf
    %3143 = vmax.xlane.f32.xlu0 %v3142
    %v3144 = vpop.xlane.xlu0 %3143
    %v3145 = vsub.f32 %v3137, %v3141
    %v3146 = vsub.f32 %v3138, %v3144
    %v3147 = vmul.f32 %v3145, 1.442695
    %v3148 = vpow.pop %v3147
    %v3149 = vmul.f32 %v3146, 1.442695
    %v3150 = vpow.pop %v3149
    %v3151 = vsel %vm898, %v3148, 0.0
    %3152 = vadd.xlane.f32.xlu0 %v3151
    %v3153 = vpop.xlane.xlu0 %3152
    %v3154 = vsel %vm898, %v3150, 0.0
    %3155 = vadd.xlane.f32.xlu0 %v3154
    %v3156 = vpop.xlane.xlu0 %3155
    %v3157 = vlog2.pop %v3153
    %v3158 = vmul.f32 %v3157, 0.6931472
    %v3159 = vlog2.pop %v3156
    %v3160 = vmul.f32 %v3159, 0.6931472
    %v3161 = vsub.f32 %v3145, %v3158
    %v3162 = vsub.f32 %v3146, %v3160
    %3163 = vst.msk [vmem:[#allocation7] sm:$0xff] %vm898, %v3161
    %3164 = vst.msk [vmem:[#allocation7 + $0x8] sm:$0xff] %vm898, %v3162
    // Predicated region
    $region42: #{net_forward.1} parent=1 // pred_check
      _
    $region43: #{net_forward.1} parent=1 // pred_check_branch
      %3166 = sbr.rel (0) target = $region45
    $region44: #{net_forward.1} parent=1 // pred_region
      %s3168 = ssub.s32 256, 256
      %3169 = vsyncadd [#allocation4], %s3168
      %s3170 = sshll.u32 [#allocation7], 4
      %s3171 = int_to_ptr.vmem [resolvable:$true] %s3170
      %3176 = dma.vmem_to_hbm [thread:$0]  %s3171, 256, %s8, [#allocation4], 128, 128, 8
    $region45: #{net_forward.1} parent=1 // pred_fallthru
      _
    // Predicated region
    $region46: #{net_forward.1} parent=1 // pred_check
      _
    $region47: #{net_forward.1} parent=1 // pred_check_branch
      %3178 = sbr.rel (0) target = $region49
    $region48: #{net_forward.1} parent=1 // pred_region
      %3179 = dma.done [#allocation4], 256
    $region49: #{net_forward.1} parent=1 // pred_fallthru
      _
    %3180 = vsyncpa [#allocation3], 1
    %3181 = vsyncpa [#allocation6], 1
    %3182 = vsyncpa [#allocation4], 1

</llo_original>
